<compile_context>
chip_gen: v7x
topology: tpu7x:2x2x1
jax: 0.10.0
libtpu: 0.0.40
codegen_flags: <defaults>
</compile_context>

<pallas_src>
import itertools

import jax
import jax.numpy as jnp
from jax import lax
from jax.experimental import pallas as pl
from jax.experimental.pallas import tpu as pltpu


_VMEM_LIMIT = 32 * 1024 * 1024        # explicit scoped-VMEM budget (all gens)
_UNROLL = 8                           # partial unroll of the recurrences


def _pick_batch_block(B, target=None):
    # Default: one full-batch block (the recurrence is latency-bound, so the
    # fewest serial grid repeats wins on v5e/v6e).  On v7x pass target=B//2 so
    # the "parallel" batch grid spreads over both TensorCores.
    if target is None or B <= target or B % 8:
        return B
    blk = max((target // 8) * 8, 8)
    while B % blk:
        blk -= 8
    return max(blk, 8)


def _full_spec(shape):
    return pl.BlockSpec(shape, lambda b: (0,) * len(shape))


# ---------------------------------------------------------------------------
# Bi-directional LSTM recurrence (merged fwd/bwd, one MXU push per step)
# ---------------------------------------------------------------------------
# Gate-column layout (H-blocks, interleaved per direction):
#   [ i_f, i_b, f_f, f_b, o_f, o_b, g_f, g_b ]        (G = 8H)
# State layout: h_cat = [h_fwd | h_bwd] (2H lanes).  W_hh is block-structured
# (fwd rows -> fwd columns, bwd rows -> bwd columns), built at init.
# gx_ref already holds the blended, biased input pre-activations:
#   gx[t] = where(fwd_cols, x[t] @ W_ih + b, x[S-1-t] @ W_ih + b)

def _bilstm_kernel(gx_ref, whh_ref, o_ref):
    S, B, _ = gx_ref.shape
    H2 = o_ref.shape[2]                     # 2H
    H = H2 // 2

    whh = whh_ref[...].astype(jnp.bfloat16)             # hoisted bf16 cast

    def step(t, carry):
        h, c = carry
        g = gx_ref[t] + jnp.dot(h.astype(jnp.bfloat16), whh,
                                preferred_element_type=jnp.float32)   # (B, 8H)
        sig = jax.nn.sigmoid(g[:, 0:3 * H2])            # [i | f | o]
        gg = jnp.tanh(g[:, 3 * H2:4 * H2])              # candidate
        i_g = sig[:, 0:H2]
        f_g = sig[:, H2:2 * H2]
        o_g = sig[:, 2 * H2:3 * H2]
        c_new = f_g * c + i_g * gg
        h_new = o_g * jnp.tanh(c_new)
        o_ref[t] = h_new                                 # forward-time order
        return (h_new, c_new)

    zeros = jnp.zeros((B, H2), jnp.float32)
    lax.fori_loop(0, S, step, (zeros, zeros), unroll=min(S, _UNROLL))

    # Swap backward-direction lanes into sequence order, in place, with a
    # lane-iota vselect (no lane-64 slicing / concat, no extra buffer).
    lane = lax.broadcasted_iota(jnp.int32, (B, H2), 1)
    is_fwd = lane < H

    def fix(t, c):
        a = o_ref[t]
        b = o_ref[S - 1 - t]
        o_ref[t] = jnp.where(is_fwd, a, b)
        o_ref[S - 1 - t] = jnp.where(is_fwd, b, a)
        return c

    lax.fori_loop(0, (S + 1) // 2, fix, 0, unroll=min((S + 1) // 2, _UNROLL))


def bilstm(gx, whh, *, b_blk=None):
    S, B, G = gx.shape
    H2 = whh.shape[0]
    b_blk = _pick_batch_block(B, b_blk)
    return pl.pallas_call(
        _bilstm_kernel,
        out_shape=jax.ShapeDtypeStruct((S, B, H2), jnp.float32),
        grid=(pl.cdiv(B, b_blk),),
        in_specs=[
            pl.BlockSpec((S, b_blk, G), lambda b: (0, b, 0)),
            _full_spec((H2, G)),
        ],
        out_specs=pl.BlockSpec((S, b_blk, H2), lambda b: (0, b, 0)),
        compiler_params=pltpu.CompilerParams(
            dimension_semantics=("parallel",),
            vmem_limit_bytes=_VMEM_LIMIT),
    )(gx, whh)


# ---------------------------------------------------------------------------
# Bi-directional GRU recurrence (gate layout [r_f, r_b, z_f, z_b, n_f, n_b])
# ---------------------------------------------------------------------------

def _bigru_kernel(gx_ref, whh_ref, bhh_ref, o_ref):
    S, B, G = gx_ref.shape
    H2 = o_ref.shape[2]
    H = H2 // 2

    whh = whh_ref[...].astype(jnp.bfloat16)
    bhh = jnp.broadcast_to(bhh_ref[...], (B, G))         # hoisted broadcast

    def step(t, h):
        gi = gx_ref[t]                                    # x-side gates (+b_ih)
        gh = jnp.dot(h.astype(jnp.bfloat16), whh,
                     preferred_element_type=jnp.float32) + bhh
        rz = jax.nn.sigmoid(gi[:, 0:2 * H2] + gh[:, 0:2 * H2])   # [r | z]
        r = rz[:, 0:H2]
        z = rz[:, H2:2 * H2]
        n = jnp.tanh(gi[:, 2 * H2:3 * H2] + r * gh[:, 2 * H2:3 * H2])
        h_new = (1.0 - z) * n + z * h
        o_ref[t] = h_new
        return h_new

    lax.fori_loop(0, S, step, jnp.zeros((B, H2), jnp.float32),
                  unroll=min(S, _UNROLL))

    lane = lax.broadcasted_iota(jnp.int32, (B, H2), 1)
    is_fwd = lane < H

    def fix(t, c):
        a = o_ref[t]
        b = o_ref[S - 1 - t]
        o_ref[t] = jnp.where(is_fwd, a, b)
        o_ref[S - 1 - t] = jnp.where(is_fwd, b, a)
        return c

    lax.fori_loop(0, (S + 1) // 2, fix, 0, unroll=min((S + 1) // 2, _UNROLL))


def bigru(gx, whh, bhh, *, b_blk=None):
    S, B, G = gx.shape
    H2 = whh.shape[0]
    b_blk = _pick_batch_block(B, b_blk)
    return pl.pallas_call(
        _bigru_kernel,
        out_shape=jax.ShapeDtypeStruct((S, B, H2), jnp.float32),
        grid=(pl.cdiv(B, b_blk),),
        in_specs=[
            pl.BlockSpec((S, b_blk, G), lambda b: (0, b, 0)),
            _full_spec((H2, G)),
            _full_spec((1, G)),
        ],
        out_specs=pl.BlockSpec((S, b_blk, H2), lambda b: (0, b, 0)),
        compiler_params=pltpu.CompilerParams(
            dimension_semantics=("parallel",),
            vmem_limit_bytes=_VMEM_LIMIT),
    )(gx, whh, bhh)


# ---------------------------------------------------------------------------
# Fused head: attention x2 + masked avg/max pool + interactions + NLP MLPs
#             + upper dense + output dense, one launch.
# ---------------------------------------------------------------------------
# TODO(synk): for very large S on v7x, tile the S axis ("arbitrary") with
# attention-numerator/denominator, avg-sum and running-max accumulators.

def _head_kernel(lstm_ref, gru_ref, mask_ref,
                 wa1_ref, ba1_ref, wa2_ref, ba2_ref,
                 xnlp_ref, w1_ref, b1_ref, w2_ref, b2_ref,
                 wu_ref, bu_ref, wo_ref, bo_ref,
                 o_ref):
    S, B, D = lstm_ref.shape
    mask = mask_ref[...]                                  # (S, B, 1)
    lstm = lstm_ref[...]
    gru = gru_ref[...]

    def att(x, w_ref, b_ref):
        w = w_ref[...]                                    # (1, D)
        b = b_ref[...]                                    # (S, 1)
        e = jnp.tanh(jnp.sum(x * w[None], axis=-1, keepdims=True)
                     + b[:, None, :])                     # (S, B, 1)
        a = jnp.exp(e) * mask
        denom = jnp.sum(a, axis=0, keepdims=True) + 1e-10  # (1, B, 1)
        a = a / denom                                     # exact (parity)
        return jnp.sum(x * a, axis=0)                     # (B, D)

    att_lstm = att(lstm, wa1_ref, ba1_ref)
    att_gru = att(gru, wa2_ref, ba2_ref)

    gm = gru * mask                                       # zero-masked (as in ref)
    avg_pool = jnp.mean(gm, axis=0)                       # (B, D)
    max_pool = jnp.max(gm, axis=0)                        # (B, D)

    first = [avg_pool, max_pool, att_lstm, att_gru]
    feats = list(first)
    for i, j in itertools.combinations(range(len(first)), 2):
        feats.append(first[i] * first[j])                 # second-order terms

    # per-feature NLP MLPs (Dense->relu->Dense->relu), stacked params
    K = xnlp_ref.shape[0]
    for k in range(K):
        h1 = jnp.maximum(xnlp_ref[k] * w1_ref[k] + b1_ref[k], 0.0)   # (B, d1)
        h2 = jnp.dot(h1, w2_ref[k], preferred_element_type=jnp.float32) + b2_ref[k]
        feats.append(jnp.maximum(h2, 0.0))                           # (B, d2)

    # Upper dense accumulated from lane-aligned per-feature slices
    # (no ragged (B, 10*D + K*d2) concat).
    U = bu_ref.shape[1]
    hu = jnp.broadcast_to(bu_ref[...], (B, U))
    off = 0
    for f in feats:
        w_blk = wu_ref[off:off + f.shape[1], :].astype(jnp.bfloat16)
        hu = hu + jnp.dot(f.astype(jnp.bfloat16), w_blk,
                          preferred_element_type=jnp.float32)
        off += f.shape[1]
    hu = jnp.maximum(hu, 0.0)                                        # (B, U)

    o_ref[...] = (jnp.dot(hu, wo_ref[...], preferred_element_type=jnp.float32)
                  + bo_ref[...])                                     # (B, 1)


def fused_head(lstm_out, gru_out, mask_sb1, x_nlp, params, *, b_blk=None):
    S, B, D = lstm_out.shape
    a1, a2 = params['attention']
    nlp = params['nlp']
    up, out = params['upper'], params['out']
    K, _, d1 = nlp['w1'].shape
    d2 = nlp['w2'].shape[2]
    U = up['w'].shape[1]
    UI = up['w'].shape[0]
    b_blk = _pick_batch_block(B, b_blk)
    return pl.pallas_call(
        _head_kernel,
        out_shape=jax.ShapeDtypeStruct((B, 1), jnp.float32),
        grid=(pl.cdiv(B, b_blk),),
        in_specs=[
            pl.BlockSpec((S, b_blk, D), lambda b: (0, b, 0)),   # lstm
            pl.BlockSpec((S, b_blk, D), lambda b: (0, b, 0)),   # gru
            pl.BlockSpec((S, b_blk, 1), lambda b: (0, b, 0)),   # mask
            _full_spec((1, D)), _full_spec((S, 1)),             # attention 1
            _full_spec((1, D)), _full_spec((S, 1)),             # attention 2
            pl.BlockSpec((K, b_blk, 1), lambda b: (0, b, 0)),   # nlp inputs
            _full_spec((K, 1, d1)), _full_spec((K, 1, d1)),
            _full_spec((K, d1, d2)), _full_spec((K, 1, d2)),
            _full_spec((UI, U)), _full_spec((1, U)),            # upper dense
            _full_spec((U, 1)), _full_spec((1, 1)),             # output dense
        ],
        out_specs=pl.BlockSpec((b_blk, 1), lambda b: (b, 0)),
        compiler_params=pltpu.CompilerParams(
            dimension_semantics=("parallel",),
            vmem_limit_bytes=_VMEM_LIMIT),
    )(lstm_out, gru_out, mask_sb1,
      a1['w'], a1['b'].reshape(S, 1), a2['w'], a2['b'].reshape(S, 1),
      x_nlp, nlp['w1'], nlp['b1'], nlp['w2'], nlp['b2'],
      up['w'], up['b'].reshape(1, U), out['w'], out['b'].reshape(1, 1))


# ---------------------------------------------------------------------------
# Parameters + forward (glue in plain JAX)
# ---------------------------------------------------------------------------

def init_params(key, vocab, embed_dim, seq_len, nlp_size, hidden,
                nlp_dims=(16, 16), upper_dim=64):
    ks = iter(jax.random.split(key, 64))

    def rnd(shape, scale=0.1):
        return scale * jax.random.normal(next(ks), shape, dtype=jnp.float32)

    H = hidden
    params = {'embedding': rnd((vocab, embed_dim), 1.0)}

    d1, d2 = nlp_dims
    params['nlp'] = dict(
        w1=rnd((nlp_size, 1, d1)), b1=rnd((nlp_size, 1, d1)),
        w2=rnd((nlp_size, d1, d2)), b2=rnd((nlp_size, 1, d2)),
    )

    def birnn_masks(n_gates):
        # interleaved gate-column layout: [g0_f, g0_b, g1_f, g1_b, ...]
        fmask = jnp.tile(jnp.concatenate(
            [jnp.ones((H,), jnp.float32), jnp.zeros((H,), jnp.float32)]), n_gates)
        row_f = jnp.concatenate(
            [jnp.ones((H, 1), jnp.float32), jnp.zeros((H, 1), jnp.float32)], axis=0)
        block_mask = row_f * fmask[None, :] + (1.0 - row_f) * (1.0 - fmask[None, :])
        return fmask, block_mask

    # NOTE: real PyTorch checkpoints must be permuted into this interleaved
    # [gate_f | gate_b] column layout (and the block-diagonal W_hh) at load time.
    fmask_l, bm_l = birnn_masks(4)                 # LSTM: G = 8H, fused bias
    G_l = 4 * 2 * H
    params['lstm'] = dict(
        w_ih=rnd((embed_dim, G_l)),
        b=rnd((G_l,)),                             # b_ih + b_hh fused
        w_hh=rnd((2 * H, G_l)) * bm_l,
        fmask=fmask_l,
    )

    fmask_g, bm_g = birnn_masks(3)                 # GRU: G = 6H, b_hh kept separate
    G_g = 3 * 2 * H
    params['gru'] = dict(
        w_ih=rnd((2 * H, G_g)),
        b_ih=rnd((G_g,)),
        b_hh=rnd((G_g,)),
        w_hh=rnd((2 * H, G_g)) * bm_g,
        fmask=fmask_g,
    )

    D = 2 * H
    params['attention'] = [dict(w=rnd((1, D)), b=rnd((seq_len,))) for _ in range(2)]

    upper_in = D * 4 + D * 6 + d2 * nlp_size
    params['upper'] = dict(w=rnd((upper_in, upper_dim)), b=rnd((upper_dim,)))
    params['out'] = dict(w=rnd((upper_dim, 1)), b=rnd((1,)))
    return params


def _proj_and_blend(x_sbe, w_ih, bias, fmask):
    # Hoisted input-to-hidden projection for all timesteps & both directions:
    # one big XLA MXU matmul (effectively (S*B, E) @ (E, G)), then the fwd/bwd
    # column blend — all off the serial recurrence critical path.
    gx = jnp.einsum('sbe,eg->sbg', x_sbe, w_ih) + bias          # (S, B, G)
    return jnp.where(fmask > 0.5, gx, jnp.flip(gx, axis=0))


def forward(params, text, nlp_list):
    B = text.shape[0]
    # Time-major layout everywhere; embedding gather produces it directly.
    text_sb = text.T                                            # (S, B)
    x_emb = params['embedding'][text_sb]                        # (S, B, E)
    mask_sb1 = (text_sb != 0).astype(jnp.float32)[:, :, None]   # (S, B, 1)

    lp = params['lstm']
    gx_l = _proj_and_blend(x_emb, lp['w_ih'], lp['b'], lp['fmask'])
    lstm_out = bilstm(gx_l, lp['w_hh'])                         # (S, B, 2H)

    gp = params['gru']
    gx_g = _proj_and_blend(lstm_out, gp['w_ih'], gp['b_ih'], gp['fmask'])
    gru_out = bigru(gx_g, gp['w_hh'], gp['b_hh'].reshape(1, -1))  # (S, B, 2H)

    x_nlp = jnp.stack([x.reshape(B, 1) for x in nlp_list], axis=0)  # (K, B, 1)

    return fused_head(lstm_out, gru_out, mask_sb1, x_nlp, params)   # (B, 1)


if __name__ == "__main__":
    key = jax.random.PRNGKey(0)
    B, S, E, V, H, NLP = 2, 8, 32, 50, 64, 3

    k_par, k_txt, k_nlp = jax.random.split(key, 3)
    params = init_params(k_par, vocab=V, embed_dim=E, seq_len=S,
                         nlp_size=NLP, hidden=H)

    text = jax.random.randint(k_txt, (B, S), 0, V, dtype=jnp.int32)
    nlp_list = [jax.random.normal(k, (B, 1), dtype=jnp.float32)
                for k in jax.random.split(k_nlp, NLP)]

    fwd = jax.jit(forward)
    out = fwd(params, text, nlp_list)
    out = jax.block_until_ready(out)
    assert out.shape == (B, 1) and out.dtype == jnp.float32
    print("KERNEL_OK")
</pallas_src>

<mosaic_0001>
module attributes {stable_mosaic.version = 11 : i64} {
  func.func @_bilstm_kernel(%arg0: i32, %arg1: memref<8x2x512xf32, #tpu.memory_space<vmem>>, %arg2: memref<128x512xf32, #tpu.memory_space<vmem>>, %arg3: memref<8x2x128xf32, #tpu.memory_space<vmem>>) attributes {dimension_semantics = [#tpu.dimension_semantics<parallel>], iteration_bounds = array<i64: 1>, scalar_prefetch = 0 : i64, scratch_operands = 0 : i64, tpu.core_type = #tpu.core_type<tc>, window_params = [{transform_indices = @transform_0, window_bounds = array<i64: 8, 2, 512>}, {pipeline_mode = #tpu.pipeline_mode<synchronous>, transform_indices = @transform_1, window_bounds = array<i64: 128, 512>}, {transform_indices = @transform_2, window_bounds = array<i64: 8, 2, 128>}]} {
    %c0 = arith.constant 0 : index
    %c0_0 = arith.constant 0 : index
    %0 = vector.load %arg2[%c0, %c0_0] : memref<128x512xf32, #tpu.memory_space<vmem>>, vector<128x512xf32>
    %1 = arith.truncf %0 : vector<128x512xf32> to vector<128x512xbf16>
    %cst = arith.constant 0.000000e+00 : f32
    %2 = vector.broadcast %cst : f32 to vector<2x128xf32>
    %c0_i32 = arith.constant 0 : i32
    %3 = arith.index_cast %c0_i32 : i32 to index
    %c0_1 = arith.constant 0 : index
    %c0_2 = arith.constant 0 : index
    %4 = vector.load %arg1[%3, %c0_1, %c0_2] : memref<8x2x512xf32, #tpu.memory_space<vmem>>, vector<1x2x512xf32>
    %5 = vector.shape_cast %4 : vector<1x2x512xf32> to vector<2x512xf32>
    %6 = arith.truncf %2 : vector<2x128xf32> to vector<2x128xbf16>
    %cst_3 = arith.constant dense<0.000000e+00> : vector<2x512xf32>
    %7 = tpu.matmul %6, %1, %cst_3 {dimension_numbers = #tpu.dot_dimension_numbers<[1], [0], [0], [1], [0, 0, 1, 1], [], []>} : vector<2x128xbf16>, vector<128x512xbf16>, vector<2x512xf32> -> vector<2x512xf32>
    %8 = arith.addf %5, %7 : vector<2x512xf32>
    %9 = vector.extract_strided_slice %8 {offsets = [0, 0], sizes = [2, 384], strides = [1, 1]} : vector<2x512xf32> to vector<2x384xf32>
    %10 = arith.negf %9 : vector<2x384xf32>
    %11 = math.exp %10 : vector<2x384xf32>
    %cst_4 = arith.constant 1.000000e+00 : f32
    %12 = vector.broadcast %cst_4 : f32 to vector<2x384xf32>
    %13 = arith.addf %12, %11 : vector<2x384xf32>
    %14 = arith.divf %12, %13 : vector<2x384xf32>
    %15 = vector.extract_strided_slice %8 {offsets = [0, 384], sizes = [2, 128], strides = [1, 1]} : vector<2x512xf32> to vector<2x128xf32>
    %16 = math.tanh %15 : vector<2x128xf32>
    %17 = vector.extract_strided_slice %14 {offsets = [0, 0], sizes = [2, 128], strides = [1, 1]} : vector<2x384xf32> to vector<2x128xf32>
    %18 = vector.extract_strided_slice %14 {offsets = [0, 128], sizes = [2, 128], strides = [1, 1]} : vector<2x384xf32> to vector<2x128xf32>
    %19 = vector.extract_strided_slice %14 {offsets = [0, 256], sizes = [2, 128], strides = [1, 1]} : vector<2x384xf32> to vector<2x128xf32>
    %20 = arith.mulf %18, %2 : vector<2x128xf32>
    %21 = arith.mulf %17, %16 : vector<2x128xf32>
    %22 = arith.addf %20, %21 : vector<2x128xf32>
    %23 = math.tanh %22 : vector<2x128xf32>
    %24 = arith.mulf %19, %23 : vector<2x128xf32>
    %25 = arith.index_cast %c0_i32 : i32 to index
    %c0_5 = arith.constant 0 : index
    %c0_6 = arith.constant 0 : index
    %26 = vector.load %arg3[%25, %c0_5, %c0_6] : memref<8x2x128xf32, #tpu.memory_space<vmem>>, vector<1x2x128xf32>
    %27 = vector.shape_cast %26 : vector<1x2x128xf32> to vector<2x128xf32>
    %28 = vector.shape_cast %24 : vector<2x128xf32> to vector<1x2x128xf32>
    tpu.vector_store %arg3[%25, %c0_5, %c0_6], %28 {strides = array<i32>} : memref<8x2x128xf32, #tpu.memory_space<vmem>>, vector<1x2x128xf32>,
    %c1_i32 = arith.constant 1 : i32
    %29 = arith.index_cast %c1_i32 : i32 to index
    %c0_7 = arith.constant 0 : index
    %c0_8 = arith.constant 0 : index
    %30 = vector.load %arg1[%29, %c0_7, %c0_8] : memref<8x2x512xf32, #tpu.memory_space<vmem>>, vector<1x2x512xf32>
    %31 = vector.shape_cast %30 : vector<1x2x512xf32> to vector<2x512xf32>
    %32 = arith.truncf %24 : vector<2x128xf32> to vector<2x128xbf16>
    %cst_9 = arith.constant dense<0.000000e+00> : vector<2x512xf32>
    %33 = tpu.matmul %32, %1, %cst_9 {dimension_numbers = #tpu.dot_dimension_numbers<[1], [0], [0], [1], [0, 0, 1, 1], [], []>} : vector<2x128xbf16>, vector<128x512xbf16>, vector<2x512xf32> -> vector<2x512xf32>
    %34 = arith.addf %31, %33 : vector<2x512xf32>
    %35 = vector.extract_strided_slice %34 {offsets = [0, 0], sizes = [2, 384], strides = [1, 1]} : vector<2x512xf32> to vector<2x384xf32>
    %36 = arith.negf %35 : vector<2x384xf32>
    %37 = math.exp %36 : vector<2x384xf32>
    %cst_10 = arith.constant 1.000000e+00 : f32
    %38 = vector.broadcast %cst_10 : f32 to vector<2x384xf32>
    %39 = arith.addf %38, %37 : vector<2x384xf32>
    %40 = arith.divf %38, %39 : vector<2x384xf32>
    %41 = vector.extract_strided_slice %34 {offsets = [0, 384], sizes = [2, 128], strides = [1, 1]} : vector<2x512xf32> to vector<2x128xf32>
    %42 = math.tanh %41 : vector<2x128xf32>
    %43 = vector.extract_strided_slice %40 {offsets = [0, 0], sizes = [2, 128], strides = [1, 1]} : vector<2x384xf32> to vector<2x128xf32>
    %44 = vector.extract_strided_slice %40 {offsets = [0, 128], sizes = [2, 128], strides = [1, 1]} : vector<2x384xf32> to vector<2x128xf32>
    %45 = vector.extract_strided_slice %40 {offsets = [0, 256], sizes = [2, 128], strides = [1, 1]} : vector<2x384xf32> to vector<2x128xf32>
    %46 = arith.mulf %44, %22 : vector<2x128xf32>
    %47 = arith.mulf %43, %42 : vector<2x128xf32>
    %48 = arith.addf %46, %47 : vector<2x128xf32>
    %49 = math.tanh %48 : vector<2x128xf32>
    %50 = arith.mulf %45, %49 : vector<2x128xf32>
    %51 = arith.index_cast %c1_i32 : i32 to index
    %c0_11 = arith.constant 0 : index
    %c0_12 = arith.constant 0 : index
    %52 = vector.load %arg3[%51, %c0_11, %c0_12] : memref<8x2x128xf32, #tpu.memory_space<vmem>>, vector<1x2x128xf32>
    %53 = vector.shape_cast %52 : vector<1x2x128xf32> to vector<2x128xf32>
    %54 = vector.shape_cast %50 : vector<2x128xf32> to vector<1x2x128xf32>
    tpu.vector_store %arg3[%51, %c0_11, %c0_12], %54 {strides = array<i32>} : memref<8x2x128xf32, #tpu.memory_space<vmem>>, vector<1x2x128xf32>,
    %c2_i32 = arith.constant 2 : i32
    %55 = arith.index_cast %c2_i32 : i32 to index
    %c0_13 = arith.constant 0 : index
    %c0_14 = arith.constant 0 : index
    %56 = vector.load %arg1[%55, %c0_13, %c0_14] : memref<8x2x512xf32, #tpu.memory_space<vmem>>, vector<1x2x512xf32>
    %57 = vector.shape_cast %56 : vector<1x2x512xf32> to vector<2x512xf32>
    %58 = arith.truncf %50 : vector<2x128xf32> to vector<2x128xbf16>
    %cst_15 = arith.constant dense<0.000000e+00> : vector<2x512xf32>
    %59 = tpu.matmul %58, %1, %cst_15 {dimension_numbers = #tpu.dot_dimension_numbers<[1], [0], [0], [1], [0, 0, 1, 1], [], []>} : vector<2x128xbf16>, vector<128x512xbf16>, vector<2x512xf32> -> vector<2x512xf32>
    %60 = arith.addf %57, %59 : vector<2x512xf32>
    %61 = vector.extract_strided_slice %60 {offsets = [0, 0], sizes = [2, 384], strides = [1, 1]} : vector<2x512xf32> to vector<2x384xf32>
    %62 = arith.negf %61 : vector<2x384xf32>
    %63 = math.exp %62 : vector<2x384xf32>
    %cst_16 = arith.constant 1.000000e+00 : f32
    %64 = vector.broadcast %cst_16 : f32 to vector<2x384xf32>
    %65 = arith.addf %64, %63 : vector<2x384xf32>
    %66 = arith.divf %64, %65 : vector<2x384xf32>
    %67 = vector.extract_strided_slice %60 {offsets = [0, 384], sizes = [2, 128], strides = [1, 1]} : vector<2x512xf32> to vector<2x128xf32>
    %68 = math.tanh %67 : vector<2x128xf32>
    %69 = vector.extract_strided_slice %66 {offsets = [0, 0], sizes = [2, 128], strides = [1, 1]} : vector<2x384xf32> to vector<2x128xf32>
    %70 = vector.extract_strided_slice %66 {offsets = [0, 128], sizes = [2, 128], strides = [1, 1]} : vector<2x384xf32> to vector<2x128xf32>
    %71 = vector.extract_strided_slice %66 {offsets = [0, 256], sizes = [2, 128], strides = [1, 1]} : vector<2x384xf32> to vector<2x128xf32>
    %72 = arith.mulf %70, %48 : vector<2x128xf32>
    %73 = arith.mulf %69, %68 : vector<2x128xf32>
    %74 = arith.addf %72, %73 : vector<2x128xf32>
    %75 = math.tanh %74 : vector<2x128xf32>
    %76 = arith.mulf %71, %75 : vector<2x128xf32>
    %77 = arith.index_cast %c2_i32 : i32 to index
    %c0_17 = arith.constant 0 : index
    %c0_18 = arith.constant 0 : index
    %78 = vector.load %arg3[%77, %c0_17, %c0_18] : memref<8x2x128xf32, #tpu.memory_space<vmem>>, vector<1x2x128xf32>
    %79 = vector.shape_cast %78 : vector<1x2x128xf32> to vector<2x128xf32>
    %80 = vector.shape_cast %76 : vector<2x128xf32> to vector<1x2x128xf32>
    tpu.vector_store %arg3[%77, %c0_17, %c0_18], %80 {strides = array<i32>} : memref<8x2x128xf32, #tpu.memory_space<vmem>>, vector<1x2x128xf32>,
    %c3_i32 = arith.constant 3 : i32
    %81 = arith.index_cast %c3_i32 : i32 to index
    %c0_19 = arith.constant 0 : index
    %c0_20 = arith.constant 0 : index
    %82 = vector.load %arg1[%81, %c0_19, %c0_20] : memref<8x2x512xf32, #tpu.memory_space<vmem>>, vector<1x2x512xf32>
    %83 = vector.shape_cast %82 : vector<1x2x512xf32> to vector<2x512xf32>
    %84 = arith.truncf %76 : vector<2x128xf32> to vector<2x128xbf16>
    %cst_21 = arith.constant dense<0.000000e+00> : vector<2x512xf32>
    %85 = tpu.matmul %84, %1, %cst_21 {dimension_numbers = #tpu.dot_dimension_numbers<[1], [0], [0], [1], [0, 0, 1, 1], [], []>} : vector<2x128xbf16>, vector<128x512xbf16>, vector<2x512xf32> -> vector<2x512xf32>
    %86 = arith.addf %83, %85 : vector<2x512xf32>
    %87 = vector.extract_strided_slice %86 {offsets = [0, 0], sizes = [2, 384], strides = [1, 1]} : vector<2x512xf32> to vector<2x384xf32>
    %88 = arith.negf %87 : vector<2x384xf32>
    %89 = math.exp %88 : vector<2x384xf32>
    %cst_22 = arith.constant 1.000000e+00 : f32
    %90 = vector.broadcast %cst_22 : f32 to vector<2x384xf32>
    %91 = arith.addf %90, %89 : vector<2x384xf32>
    %92 = arith.divf %90, %91 : vector<2x384xf32>
    %93 = vector.extract_strided_slice %86 {offsets = [0, 384], sizes = [2, 128], strides = [1, 1]} : vector<2x512xf32> to vector<2x128xf32>
    %94 = math.tanh %93 : vector<2x128xf32>
    %95 = vector.extract_strided_slice %92 {offsets = [0, 0], sizes = [2, 128], strides = [1, 1]} : vector<2x384xf32> to vector<2x128xf32>
    %96 = vector.extract_strided_slice %92 {offsets = [0, 128], sizes = [2, 128], strides = [1, 1]} : vector<2x384xf32> to vector<2x128xf32>
    %97 = vector.extract_strided_slice %92 {offsets = [0, 256], sizes = [2, 128], strides = [1, 1]} : vector<2x384xf32> to vector<2x128xf32>
    %98 = arith.mulf %96, %74 : vector<2x128xf32>
    %99 = arith.mulf %95, %94 : vector<2x128xf32>
    %100 = arith.addf %98, %99 : vector<2x128xf32>
    %101 = math.tanh %100 : vector<2x128xf32>
    %102 = arith.mulf %97, %101 : vector<2x128xf32>
    %103 = arith.index_cast %c3_i32 : i32 to index
    %c0_23 = arith.constant 0 : index
    %c0_24 = arith.constant 0 : index
    %104 = vector.load %arg3[%103, %c0_23, %c0_24] : memref<8x2x128xf32, #tpu.memory_space<vmem>>, vector<1x2x128xf32>
    %105 = vector.shape_cast %104 : vector<1x2x128xf32> to vector<2x128xf32>
    %106 = vector.shape_cast %102 : vector<2x128xf32> to vector<1x2x128xf32>
    tpu.vector_store %arg3[%103, %c0_23, %c0_24], %106 {strides = array<i32>} : memref<8x2x128xf32, #tpu.memory_space<vmem>>, vector<1x2x128xf32>,
    %c4_i32 = arith.constant 4 : i32
    %107 = arith.index_cast %c4_i32 : i32 to index
    %c0_25 = arith.constant 0 : index
    %c0_26 = arith.constant 0 : index
    %108 = vector.load %arg1[%107, %c0_25, %c0_26] : memref<8x2x512xf32, #tpu.memory_space<vmem>>, vector<1x2x512xf32>
    %109 = vector.shape_cast %108 : vector<1x2x512xf32> to vector<2x512xf32>
    %110 = arith.truncf %102 : vector<2x128xf32> to vector<2x128xbf16>
    %cst_27 = arith.constant dense<0.000000e+00> : vector<2x512xf32>
    %111 = tpu.matmul %110, %1, %cst_27 {dimension_numbers = #tpu.dot_dimension_numbers<[1], [0], [0], [1], [0, 0, 1, 1], [], []>} : vector<2x128xbf16>, vector<128x512xbf16>, vector<2x512xf32> -> vector<2x512xf32>
    %112 = arith.addf %109, %111 : vector<2x512xf32>
    %113 = vector.extract_strided_slice %112 {offsets = [0, 0], sizes = [2, 384], strides = [1, 1]} : vector<2x512xf32> to vector<2x384xf32>
    %114 = arith.negf %113 : vector<2x384xf32>
    %115 = math.exp %114 : vector<2x384xf32>
    %cst_28 = arith.constant 1.000000e+00 : f32
    %116 = vector.broadcast %cst_28 : f32 to vector<2x384xf32>
    %117 = arith.addf %116, %115 : vector<2x384xf32>
    %118 = arith.divf %116, %117 : vector<2x384xf32>
    %119 = vector.extract_strided_slice %112 {offsets = [0, 384], sizes = [2, 128], strides = [1, 1]} : vector<2x512xf32> to vector<2x128xf32>
    %120 = math.tanh %119 : vector<2x128xf32>
    %121 = vector.extract_strided_slice %118 {offsets = [0, 0], sizes = [2, 128], strides = [1, 1]} : vector<2x384xf32> to vector<2x128xf32>
    %122 = vector.extract_strided_slice %118 {offsets = [0, 128], sizes = [2, 128], strides = [1, 1]} : vector<2x384xf32> to vector<2x128xf32>
    %123 = vector.extract_strided_slice %118 {offsets = [0, 256], sizes = [2, 128], strides = [1, 1]} : vector<2x384xf32> to vector<2x128xf32>
    %124 = arith.mulf %122, %100 : vector<2x128xf32>
    %125 = arith.mulf %121, %120 : vector<2x128xf32>
    %126 = arith.addf %124, %125 : vector<2x128xf32>
    %127 = math.tanh %126 : vector<2x128xf32>
    %128 = arith.mulf %123, %127 : vector<2x128xf32>
    %129 = arith.index_cast %c4_i32 : i32 to index
    %c0_29 = arith.constant 0 : index
    %c0_30 = arith.constant 0 : index
    %130 = vector.load %arg3[%129, %c0_29, %c0_30] : memref<8x2x128xf32, #tpu.memory_space<vmem>>, vector<1x2x128xf32>
    %131 = vector.shape_cast %130 : vector<1x2x128xf32> to vector<2x128xf32>
    %132 = vector.shape_cast %128 : vector<2x128xf32> to vector<1x2x128xf32>
    tpu.vector_store %arg3[%129, %c0_29, %c0_30], %132 {strides = array<i32>} : memref<8x2x128xf32, #tpu.memory_space<vmem>>, vector<1x2x128xf32>,
    %c5_i32 = arith.constant 5 : i32
    %133 = arith.index_cast %c5_i32 : i32 to index
    %c0_31 = arith.constant 0 : index
    %c0_32 = arith.constant 0 : index
    %134 = vector.load %arg1[%133, %c0_31, %c0_32] : memref<8x2x512xf32, #tpu.memory_space<vmem>>, vector<1x2x512xf32>
    %135 = vector.shape_cast %134 : vector<1x2x512xf32> to vector<2x512xf32>
    %136 = arith.truncf %128 : vector<2x128xf32> to vector<2x128xbf16>
    %cst_33 = arith.constant dense<0.000000e+00> : vector<2x512xf32>
    %137 = tpu.matmul %136, %1, %cst_33 {dimension_numbers = #tpu.dot_dimension_numbers<[1], [0], [0], [1], [0, 0, 1, 1], [], []>} : vector<2x128xbf16>, vector<128x512xbf16>, vector<2x512xf32> -> vector<2x512xf32>
    %138 = arith.addf %135, %137 : vector<2x512xf32>
    %139 = vector.extract_strided_slice %138 {offsets = [0, 0], sizes = [2, 384], strides = [1, 1]} : vector<2x512xf32> to vector<2x384xf32>
    %140 = arith.negf %139 : vector<2x384xf32>
    %141 = math.exp %140 : vector<2x384xf32>
    %cst_34 = arith.constant 1.000000e+00 : f32
    %142 = vector.broadcast %cst_34 : f32 to vector<2x384xf32>
    %143 = arith.addf %142, %141 : vector<2x384xf32>
    %144 = arith.divf %142, %143 : vector<2x384xf32>
    %145 = vector.extract_strided_slice %138 {offsets = [0, 384], sizes = [2, 128], strides = [1, 1]} : vector<2x512xf32> to vector<2x128xf32>
    %146 = math.tanh %145 : vector<2x128xf32>
    %147 = vector.extract_strided_slice %144 {offsets = [0, 0], sizes = [2, 128], strides = [1, 1]} : vector<2x384xf32> to vector<2x128xf32>
    %148 = vector.extract_strided_slice %144 {offsets = [0, 128], sizes = [2, 128], strides = [1, 1]} : vector<2x384xf32> to vector<2x128xf32>
    %149 = vector.extract_strided_slice %144 {offsets = [0, 256], sizes = [2, 128], strides = [1, 1]} : vector<2x384xf32> to vector<2x128xf32>
    %150 = arith.mulf %148, %126 : vector<2x128xf32>
    %151 = arith.mulf %147, %146 : vector<2x128xf32>
    %152 = arith.addf %150, %151 : vector<2x128xf32>
    %153 = math.tanh %152 : vector<2x128xf32>
    %154 = arith.mulf %149, %153 : vector<2x128xf32>
    %155 = arith.index_cast %c5_i32 : i32 to index
    %c0_35 = arith.constant 0 : index
    %c0_36 = arith.constant 0 : index
    %156 = vector.load %arg3[%155, %c0_35, %c0_36] : memref<8x2x128xf32, #tpu.memory_space<vmem>>, vector<1x2x128xf32>
    %157 = vector.shape_cast %156 : vector<1x2x128xf32> to vector<2x128xf32>
    %158 = vector.shape_cast %154 : vector<2x128xf32> to vector<1x2x128xf32>
    tpu.vector_store %arg3[%155, %c0_35, %c0_36], %158 {strides = array<i32>} : memref<8x2x128xf32, #tpu.memory_space<vmem>>, vector<1x2x128xf32>,
    %c6_i32 = arith.constant 6 : i32
    %159 = arith.index_cast %c6_i32 : i32 to index
    %c0_37 = arith.constant 0 : index
    %c0_38 = arith.constant 0 : index
    %160 = vector.load %arg1[%159, %c0_37, %c0_38] : memref<8x2x512xf32, #tpu.memory_space<vmem>>, vector<1x2x512xf32>
    %161 = vector.shape_cast %160 : vector<1x2x512xf32> to vector<2x512xf32>
    %162 = arith.truncf %154 : vector<2x128xf32> to vector<2x128xbf16>
    %cst_39 = arith.constant dense<0.000000e+00> : vector<2x512xf32>
    %163 = tpu.matmul %162, %1, %cst_39 {dimension_numbers = #tpu.dot_dimension_numbers<[1], [0], [0], [1], [0, 0, 1, 1], [], []>} : vector<2x128xbf16>, vector<128x512xbf16>, vector<2x512xf32> -> vector<2x512xf32>
    %164 = arith.addf %161, %163 : vector<2x512xf32>
    %165 = vector.extract_strided_slice %164 {offsets = [0, 0], sizes = [2, 384], strides = [1, 1]} : vector<2x512xf32> to vector<2x384xf32>
    %166 = arith.negf %165 : vector<2x384xf32>
    %167 = math.exp %166 : vector<2x384xf32>
    %cst_40 = arith.constant 1.000000e+00 : f32
    %168 = vector.broadcast %cst_40 : f32 to vector<2x384xf32>
    %169 = arith.addf %168, %167 : vector<2x384xf32>
    %170 = arith.divf %168, %169 : vector<2x384xf32>
    %171 = vector.extract_strided_slice %164 {offsets = [0, 384], sizes = [2, 128], strides = [1, 1]} : vector<2x512xf32> to vector<2x128xf32>
    %172 = math.tanh %171 : vector<2x128xf32>
    %173 = vector.extract_strided_slice %170 {offsets = [0, 0], sizes = [2, 128], strides = [1, 1]} : vector<2x384xf32> to vector<2x128xf32>
    %174 = vector.extract_strided_slice %170 {offsets = [0, 128], sizes = [2, 128], strides = [1, 1]} : vector<2x384xf32> to vector<2x128xf32>
    %175 = vector.extract_strided_slice %170 {offsets = [0, 256], sizes = [2, 128], strides = [1, 1]} : vector<2x384xf32> to vector<2x128xf32>
    %176 = arith.mulf %174, %152 : vector<2x128xf32>
    %177 = arith.mulf %173, %172 : vector<2x128xf32>
    %178 = arith.addf %176, %177 : vector<2x128xf32>
    %179 = math.tanh %178 : vector<2x128xf32>
    %180 = arith.mulf %175, %179 : vector<2x128xf32>
    %181 = arith.index_cast %c6_i32 : i32 to index
    %c0_41 = arith.constant 0 : index
    %c0_42 = arith.constant 0 : index
    %182 = vector.load %arg3[%181, %c0_41, %c0_42] : memref<8x2x128xf32, #tpu.memory_space<vmem>>, vector<1x2x128xf32>
    %183 = vector.shape_cast %182 : vector<1x2x128xf32> to vector<2x128xf32>
    %184 = vector.shape_cast %180 : vector<2x128xf32> to vector<1x2x128xf32>
    tpu.vector_store %arg3[%181, %c0_41, %c0_42], %184 {strides = array<i32>} : memref<8x2x128xf32, #tpu.memory_space<vmem>>, vector<1x2x128xf32>,
    %c7_i32 = arith.constant 7 : i32
    %185 = arith.index_cast %c7_i32 : i32 to index
    %c0_43 = arith.constant 0 : index
    %c0_44 = arith.constant 0 : index
    %186 = vector.load %arg1[%185, %c0_43, %c0_44] : memref<8x2x512xf32, #tpu.memory_space<vmem>>, vector<1x2x512xf32>
    %187 = vector.shape_cast %186 : vector<1x2x512xf32> to vector<2x512xf32>
    %188 = arith.truncf %180 : vector<2x128xf32> to vector<2x128xbf16>
    %cst_45 = arith.constant dense<0.000000e+00> : vector<2x512xf32>
    %189 = tpu.matmul %188, %1, %cst_45 {dimension_numbers = #tpu.dot_dimension_numbers<[1], [0], [0], [1], [0, 0, 1, 1], [], []>} : vector<2x128xbf16>, vector<128x512xbf16>, vector<2x512xf32> -> vector<2x512xf32>
    %190 = arith.addf %187, %189 : vector<2x512xf32>
    %191 = vector.extract_strided_slice %190 {offsets = [0, 0], sizes = [2, 384], strides = [1, 1]} : vector<2x512xf32> to vector<2x384xf32>
    %192 = arith.negf %191 : vector<2x384xf32>
    %193 = math.exp %192 : vector<2x384xf32>
    %cst_46 = arith.constant 1.000000e+00 : f32
    %194 = vector.broadcast %cst_46 : f32 to vector<2x384xf32>
    %195 = arith.addf %194, %193 : vector<2x384xf32>
    %196 = arith.divf %194, %195 : vector<2x384xf32>
    %197 = vector.extract_strided_slice %190 {offsets = [0, 384], sizes = [2, 128], strides = [1, 1]} : vector<2x512xf32> to vector<2x128xf32>
    %198 = math.tanh %197 : vector<2x128xf32>
    %199 = vector.extract_strided_slice %196 {offsets = [0, 0], sizes = [2, 128], strides = [1, 1]} : vector<2x384xf32> to vector<2x128xf32>
    %200 = vector.extract_strided_slice %196 {offsets = [0, 128], sizes = [2, 128], strides = [1, 1]} : vector<2x384xf32> to vector<2x128xf32>
    %201 = vector.extract_strided_slice %196 {offsets = [0, 256], sizes = [2, 128], strides = [1, 1]} : vector<2x384xf32> to vector<2x128xf32>
    %202 = arith.mulf %200, %178 : vector<2x128xf32>
    %203 = arith.mulf %199, %198 : vector<2x128xf32>
    %204 = arith.addf %202, %203 : vector<2x128xf32>
    %205 = math.tanh %204 : vector<2x128xf32>
    %206 = arith.mulf %201, %205 : vector<2x128xf32>
    %207 = arith.index_cast %c7_i32 : i32 to index
    %c0_47 = arith.constant 0 : index
    %c0_48 = arith.constant 0 : index
    %208 = vector.load %arg3[%207, %c0_47, %c0_48] : memref<8x2x128xf32, #tpu.memory_space<vmem>>, vector<1x2x128xf32>
    %209 = vector.shape_cast %208 : vector<1x2x128xf32> to vector<2x128xf32>
    %210 = vector.shape_cast %206 : vector<2x128xf32> to vector<1x2x128xf32>
    tpu.vector_store %arg3[%207, %c0_47, %c0_48], %210 {strides = array<i32>} : memref<8x2x128xf32, #tpu.memory_space<vmem>>, vector<1x2x128xf32>,
    %c8_i32 = arith.constant 8 : i32
    %211 = tpu.iota {dimensions = array<i32: 1>} : vector<2x128xi32>
    %c64_i32 = arith.constant 64 : i32
    %212 = vector.broadcast %c64_i32 : i32 to vector<2x128xi32>
    %213 = arith.cmpi slt, %211, %212 : vector<2x128xi32>
    %c0_i32_49 = arith.constant 0 : i32
    %214 = arith.index_cast %c0_i32_49 : i32 to index
    %c0_50 = arith.constant 0 : index
    %c0_51 = arith.constant 0 : index
    %215 = vector.load %arg3[%214, %c0_50, %c0_51] : memref<8x2x128xf32, #tpu.memory_space<vmem>>, vector<1x2x128xf32>
    %216 = vector.shape_cast %215 : vector<1x2x128xf32> to vector<2x128xf32>
    %c7_i32_52 = arith.constant 7 : i32
    %217 = arith.subi %c7_i32_52, %c0_i32_49 : i32
    %218 = arith.index_cast %217 : i32 to index
    %c0_53 = arith.constant 0 : index
    %c0_54 = arith.constant 0 : index
    %219 = vector.load %arg3[%218, %c0_53, %c0_54] : memref<8x2x128xf32, #tpu.memory_space<vmem>>, vector<1x2x128xf32>
    %220 = vector.shape_cast %219 : vector<1x2x128xf32> to vector<2x128xf32>
    %221 = arith.select %213, %216, %220 : vector<2x128xi1>, vector<2x128xf32>
    %222 = arith.index_cast %c0_i32_49 : i32 to index
    %c0_55 = arith.constant 0 : index
    %c0_56 = arith.constant 0 : index
    %223 = vector.load %arg3[%222, %c0_55, %c0_56] : memref<8x2x128xf32, #tpu.memory_space<vmem>>, vector<1x2x128xf32>
    %224 = vector.shape_cast %223 : vector<1x2x128xf32> to vector<2x128xf32>
    %225 = vector.shape_cast %221 : vector<2x128xf32> to vector<1x2x128xf32>
    tpu.vector_store %arg3[%222, %c0_55, %c0_56], %225 {strides = array<i32>} : memref<8x2x128xf32, #tpu.memory_space<vmem>>, vector<1x2x128xf32>,
    %226 = arith.select %213, %220, %216 : vector<2x128xi1>, vector<2x128xf32>
    %c7_i32_57 = arith.constant 7 : i32
    %227 = arith.subi %c7_i32_57, %c0_i32_49 : i32
    %228 = arith.index_cast %227 : i32 to index
    %c0_58 = arith.constant 0 : index
    %c0_59 = arith.constant 0 : index
    %229 = vector.load %arg3[%228, %c0_58, %c0_59] : memref<8x2x128xf32, #tpu.memory_space<vmem>>, vector<1x2x128xf32>
    %230 = vector.shape_cast %229 : vector<1x2x128xf32> to vector<2x128xf32>
    %231 = vector.shape_cast %226 : vector<2x128xf32> to vector<1x2x128xf32>
    tpu.vector_store %arg3[%228, %c0_58, %c0_59], %231 {strides = array<i32>} : memref<8x2x128xf32, #tpu.memory_space<vmem>>, vector<1x2x128xf32>,
    %c1_i32_60 = arith.constant 1 : i32
    %232 = arith.index_cast %c1_i32_60 : i32 to index
    %c0_61 = arith.constant 0 : index
    %c0_62 = arith.constant 0 : index
    %233 = vector.load %arg3[%232, %c0_61, %c0_62] : memref<8x2x128xf32, #tpu.memory_space<vmem>>, vector<1x2x128xf32>
    %234 = vector.shape_cast %233 : vector<1x2x128xf32> to vector<2x128xf32>
    %c7_i32_63 = arith.constant 7 : i32
    %235 = arith.subi %c7_i32_63, %c1_i32_60 : i32
    %236 = arith.index_cast %235 : i32 to index
    %c0_64 = arith.constant 0 : index
    %c0_65 = arith.constant 0 : index
    %237 = vector.load %arg3[%236, %c0_64, %c0_65] : memref<8x2x128xf32, #tpu.memory_space<vmem>>, vector<1x2x128xf32>
    %238 = vector.shape_cast %237 : vector<1x2x128xf32> to vector<2x128xf32>
    %239 = arith.select %213, %234, %238 : vector<2x128xi1>, vector<2x128xf32>
    %240 = arith.index_cast %c1_i32_60 : i32 to index
    %c0_66 = arith.constant 0 : index
    %c0_67 = arith.constant 0 : index
    %241 = vector.load %arg3[%240, %c0_66, %c0_67] : memref<8x2x128xf32, #tpu.memory_space<vmem>>, vector<1x2x128xf32>
    %242 = vector.shape_cast %241 : vector<1x2x128xf32> to vector<2x128xf32>
    %243 = vector.shape_cast %239 : vector<2x128xf32> to vector<1x2x128xf32>
    tpu.vector_store %arg3[%240, %c0_66, %c0_67], %243 {strides = array<i32>} : memref<8x2x128xf32, #tpu.memory_space<vmem>>, vector<1x2x128xf32>,
    %244 = arith.select %213, %238, %234 : vector<2x128xi1>, vector<2x128xf32>
    %c7_i32_68 = arith.constant 7 : i32
    %245 = arith.subi %c7_i32_68, %c1_i32_60 : i32
    %246 = arith.index_cast %245 : i32 to index
    %c0_69 = arith.constant 0 : index
    %c0_70 = arith.constant 0 : index
    %247 = vector.load %arg3[%246, %c0_69, %c0_70] : memref<8x2x128xf32, #tpu.memory_space<vmem>>, vector<1x2x128xf32>
    %248 = vector.shape_cast %247 : vector<1x2x128xf32> to vector<2x128xf32>
    %249 = vector.shape_cast %244 : vector<2x128xf32> to vector<1x2x128xf32>
    tpu.vector_store %arg3[%246, %c0_69, %c0_70], %249 {strides = array<i32>} : memref<8x2x128xf32, #tpu.memory_space<vmem>>, vector<1x2x128xf32>,
    %c2_i32_71 = arith.constant 2 : i32
    %250 = arith.index_cast %c2_i32_71 : i32 to index
    %c0_72 = arith.constant 0 : index
    %c0_73 = arith.constant 0 : index
    %251 = vector.load %arg3[%250, %c0_72, %c0_73] : memref<8x2x128xf32, #tpu.memory_space<vmem>>, vector<1x2x128xf32>
    %252 = vector.shape_cast %251 : vector<1x2x128xf32> to vector<2x128xf32>
    %c7_i32_74 = arith.constant 7 : i32
    %253 = arith.subi %c7_i32_74, %c2_i32_71 : i32
    %254 = arith.index_cast %253 : i32 to index
    %c0_75 = arith.constant 0 : index
    %c0_76 = arith.constant 0 : index
    %255 = vector.load %arg3[%254, %c0_75, %c0_76] : memref<8x2x128xf32, #tpu.memory_space<vmem>>, vector<1x2x128xf32>
    %256 = vector.shape_cast %255 : vector<1x2x128xf32> to vector<2x128xf32>
    %257 = arith.select %213, %252, %256 : vector<2x128xi1>, vector<2x128xf32>
    %258 = arith.index_cast %c2_i32_71 : i32 to index
    %c0_77 = arith.constant 0 : index
    %c0_78 = arith.constant 0 : index
    %259 = vector.load %arg3[%258, %c0_77, %c0_78] : memref<8x2x128xf32, #tpu.memory_space<vmem>>, vector<1x2x128xf32>
    %260 = vector.shape_cast %259 : vector<1x2x128xf32> to vector<2x128xf32>
    %261 = vector.shape_cast %257 : vector<2x128xf32> to vector<1x2x128xf32>
    tpu.vector_store %arg3[%258, %c0_77, %c0_78], %261 {strides = array<i32>} : memref<8x2x128xf32, #tpu.memory_space<vmem>>, vector<1x2x128xf32>,
    %262 = arith.select %213, %256, %252 : vector<2x128xi1>, vector<2x128xf32>
    %c7_i32_79 = arith.constant 7 : i32
    %263 = arith.subi %c7_i32_79, %c2_i32_71 : i32
    %264 = arith.index_cast %263 : i32 to index
    %c0_80 = arith.constant 0 : index
    %c0_81 = arith.constant 0 : index
    %265 = vector.load %arg3[%264, %c0_80, %c0_81] : memref<8x2x128xf32, #tpu.memory_space<vmem>>, vector<1x2x128xf32>
    %266 = vector.shape_cast %265 : vector<1x2x128xf32> to vector<2x128xf32>
    %267 = vector.shape_cast %262 : vector<2x128xf32> to vector<1x2x128xf32>
    tpu.vector_store %arg3[%264, %c0_80, %c0_81], %267 {strides = array<i32>} : memref<8x2x128xf32, #tpu.memory_space<vmem>>, vector<1x2x128xf32>,
    %c3_i32_82 = arith.constant 3 : i32
    %268 = arith.index_cast %c3_i32_82 : i32 to index
    %c0_83 = arith.constant 0 : index
    %c0_84 = arith.constant 0 : index
    %269 = vector.load %arg3[%268, %c0_83, %c0_84] : memref<8x2x128xf32, #tpu.memory_space<vmem>>, vector<1x2x128xf32>
    %270 = vector.shape_cast %269 : vector<1x2x128xf32> to vector<2x128xf32>
    %c7_i32_85 = arith.constant 7 : i32
    %271 = arith.subi %c7_i32_85, %c3_i32_82 : i32
    %272 = arith.index_cast %271 : i32 to index
    %c0_86 = arith.constant 0 : index
    %c0_87 = arith.constant 0 : index
    %273 = vector.load %arg3[%272, %c0_86, %c0_87] : memref<8x2x128xf32, #tpu.memory_space<vmem>>, vector<1x2x128xf32>
    %274 = vector.shape_cast %273 : vector<1x2x128xf32> to vector<2x128xf32>
    %275 = arith.select %213, %270, %274 : vector<2x128xi1>, vector<2x128xf32>
    %276 = arith.index_cast %c3_i32_82 : i32 to index
    %c0_88 = arith.constant 0 : index
    %c0_89 = arith.constant 0 : index
    %277 = vector.load %arg3[%276, %c0_88, %c0_89] : memref<8x2x128xf32, #tpu.memory_space<vmem>>, vector<1x2x128xf32>
    %278 = vector.shape_cast %277 : vector<1x2x128xf32> to vector<2x128xf32>
    %279 = vector.shape_cast %275 : vector<2x128xf32> to vector<1x2x128xf32>
    tpu.vector_store %arg3[%276, %c0_88, %c0_89], %279 {strides = array<i32>} : memref<8x2x128xf32, #tpu.memory_space<vmem>>, vector<1x2x128xf32>,
    %280 = arith.select %213, %274, %270 : vector<2x128xi1>, vector<2x128xf32>
    %c7_i32_90 = arith.constant 7 : i32
    %281 = arith.subi %c7_i32_90, %c3_i32_82 : i32
    %282 = arith.index_cast %281 : i32 to index
    %c0_91 = arith.constant 0 : index
    %c0_92 = arith.constant 0 : index
    %283 = vector.load %arg3[%282, %c0_91, %c0_92] : memref<8x2x128xf32, #tpu.memory_space<vmem>>, vector<1x2x128xf32>
    %284 = vector.shape_cast %283 : vector<1x2x128xf32> to vector<2x128xf32>
    %285 = vector.shape_cast %280 : vector<2x128xf32> to vector<1x2x128xf32>
    tpu.vector_store %arg3[%282, %c0_91, %c0_92], %285 {strides = array<i32>} : memref<8x2x128xf32, #tpu.memory_space<vmem>>, vector<1x2x128xf32>,
    %c4_i32_93 = arith.constant 4 : i32
    return
  }
  func.func @transform_0(%arg0: i32) -> (i32, i32, i32) {
    %c0_i32 = arith.constant 0 : i32
    %c0_i32_0 = arith.constant 0 : i32
    %c0_i32_1 = arith.constant 0 : i32
    return %c0_i32, %arg0, %c0_i32_0 : i32, i32, i32
  }
  func.func @transform_1(%arg0: i32) -> (i32, i32) {
    %c0_i32 = arith.constant 0 : i32
    %c0_i32_0 = arith.constant 0 : i32
    %c0_i32_1 = arith.constant 0 : i32
    return %c0_i32, %c0_i32_0 : i32, i32
  }
  func.func @transform_2(%arg0: i32) -> (i32, i32, i32) {
    %c0_i32 = arith.constant 0 : i32
    %c0_i32_0 = arith.constant 0 : i32
    %c0_i32_1 = arith.constant 0 : i32
    return %c0_i32, %arg0, %c0_i32_0 : i32, i32, i32
  }
}

module attributes {stable_mosaic.version = 11 : i64} {
  func.func @_bigru_kernel(%arg0: i32, %arg1: memref<8x2x384xf32, #tpu.memory_space<vmem>>, %arg2: memref<128x384xf32, #tpu.memory_space<vmem>>, %arg3: memref<1x384xf32, #tpu.memory_space<vmem>>, %arg4: memref<8x2x128xf32, #tpu.memory_space<vmem>>) attributes {dimension_semantics = [#tpu.dimension_semantics<parallel>], iteration_bounds = array<i64: 1>, scalar_prefetch = 0 : i64, scratch_operands = 0 : i64, tpu.core_type = #tpu.core_type<tc>, window_params = [{transform_indices = @transform_0, window_bounds = array<i64: 8, 2, 384>}, {pipeline_mode = #tpu.pipeline_mode<synchronous>, transform_indices = @transform_1, window_bounds = array<i64: 128, 384>}, {pipeline_mode = #tpu.pipeline_mode<synchronous>, transform_indices = @transform_2, window_bounds = array<i64: 1, 384>}, {transform_indices = @transform_3, window_bounds = array<i64: 8, 2, 128>}]} {
    %c0 = arith.constant 0 : index
    %c0_0 = arith.constant 0 : index
    %0 = vector.load %arg2[%c0, %c0_0] : memref<128x384xf32, #tpu.memory_space<vmem>>, vector<128x384xf32>
    %1 = arith.truncf %0 : vector<128x384xf32> to vector<128x384xbf16>
    %c0_1 = arith.constant 0 : index
    %c0_2 = arith.constant 0 : index
    %2 = vector.load %arg3[%c0_1, %c0_2] : memref<1x384xf32, #tpu.memory_space<vmem>>, vector<1x384xf32>
    %3 = vector.shape_cast %2 : vector<1x384xf32> to vector<1x384xf32>
    %4 = vector.broadcast %3 : vector<1x384xf32> to vector<2x384xf32>
    %cst = arith.constant 0.000000e+00 : f32
    %5 = vector.broadcast %cst : f32 to vector<2x128xf32>
    %c0_i32 = arith.constant 0 : i32
    %6 = arith.index_cast %c0_i32 : i32 to index
    %c0_3 = arith.constant 0 : index
    %c0_4 = arith.constant 0 : index
    %7 = vector.load %arg1[%6, %c0_3, %c0_4] : memref<8x2x384xf32, #tpu.memory_space<vmem>>, vector<1x2x384xf32>
    %8 = vector.shape_cast %7 : vector<1x2x384xf32> to vector<2x384xf32>
    %9 = arith.truncf %5 : vector<2x128xf32> to vector<2x128xbf16>
    %cst_5 = arith.constant dense<0.000000e+00> : vector<2x384xf32>
    %10 = tpu.matmul %9, %1, %cst_5 {dimension_numbers = #tpu.dot_dimension_numbers<[1], [0], [0], [1], [0, 0, 1, 1], [], []>} : vector<2x128xbf16>, vector<128x384xbf16>, vector<2x384xf32> -> vector<2x384xf32>
    %11 = arith.addf %10, %4 : vector<2x384xf32>
    %12 = vector.extract_strided_slice %8 {offsets = [0, 0], sizes = [2, 256], strides = [1, 1]} : vector<2x384xf32> to vector<2x256xf32>
    %13 = vector.extract_strided_slice %11 {offsets = [0, 0], sizes = [2, 256], strides = [1, 1]} : vector<2x384xf32> to vector<2x256xf32>
    %14 = arith.addf %12, %13 : vector<2x256xf32>
    %15 = arith.negf %14 : vector<2x256xf32>
    %16 = math.exp %15 : vector<2x256xf32>
    %cst_6 = arith.constant 1.000000e+00 : f32
    %17 = vector.broadcast %cst_6 : f32 to vector<2x256xf32>
    %18 = arith.addf %17, %16 : vector<2x256xf32>
    %19 = arith.divf %17, %18 : vector<2x256xf32>
    %20 = vector.extract_strided_slice %19 {offsets = [0, 0], sizes = [2, 128], strides = [1, 1]} : vector<2x256xf32> to vector<2x128xf32>
    %21 = vector.extract_strided_slice %19 {offsets = [0, 128], sizes = [2, 128], strides = [1, 1]} : vector<2x256xf32> to vector<2x128xf32>
    %22 = vector.extract_strided_slice %8 {offsets = [0, 256], sizes = [2, 128], strides = [1, 1]} : vector<2x384xf32> to vector<2x128xf32>
    %23 = vector.extract_strided_slice %11 {offsets = [0, 256], sizes = [2, 128], strides = [1, 1]} : vector<2x384xf32> to vector<2x128xf32>
    %24 = arith.mulf %20, %23 : vector<2x128xf32>
    %25 = arith.addf %22, %24 : vector<2x128xf32>
    %26 = math.tanh %25 : vector<2x128xf32>
    %cst_7 = arith.constant 1.000000e+00 : f32
    %27 = vector.broadcast %cst_7 : f32 to vector<2x128xf32>
    %28 = arith.subf %27, %21 : vector<2x128xf32>
    %29 = arith.mulf %28, %26 : vector<2x128xf32>
    %30 = arith.mulf %21, %5 : vector<2x128xf32>
    %31 = arith.addf %29, %30 : vector<2x128xf32>
    %32 = arith.index_cast %c0_i32 : i32 to index
    %c0_8 = arith.constant 0 : index
    %c0_9 = arith.constant 0 : index
    %33 = vector.load %arg4[%32, %c0_8, %c0_9] : memref<8x2x128xf32, #tpu.memory_space<vmem>>, vector<1x2x128xf32>
    %34 = vector.shape_cast %33 : vector<1x2x128xf32> to vector<2x128xf32>
    %35 = vector.shape_cast %31 : vector<2x128xf32> to vector<1x2x128xf32>
    tpu.vector_store %arg4[%32, %c0_8, %c0_9], %35 {strides = array<i32>} : memref<8x2x128xf32, #tpu.memory_space<vmem>>, vector<1x2x128xf32>,
    %c1_i32 = arith.constant 1 : i32
    %36 = arith.index_cast %c1_i32 : i32 to index
    %c0_10 = arith.constant 0 : index
    %c0_11 = arith.constant 0 : index
    %37 = vector.load %arg1[%36, %c0_10, %c0_11] : memref<8x2x384xf32, #tpu.memory_space<vmem>>, vector<1x2x384xf32>
    %38 = vector.shape_cast %37 : vector<1x2x384xf32> to vector<2x384xf32>
    %39 = arith.truncf %31 : vector<2x128xf32> to vector<2x128xbf16>
    %cst_12 = arith.constant dense<0.000000e+00> : vector<2x384xf32>
    %40 = tpu.matmul %39, %1, %cst_12 {dimension_numbers = #tpu.dot_dimension_numbers<[1], [0], [0], [1], [0, 0, 1, 1], [], []>} : vector<2x128xbf16>, vector<128x384xbf16>, vector<2x384xf32> -> vector<2x384xf32>
    %41 = arith.addf %40, %4 : vector<2x384xf32>
    %42 = vector.extract_strided_slice %38 {offsets = [0, 0], sizes = [2, 256], strides = [1, 1]} : vector<2x384xf32> to vector<2x256xf32>
    %43 = vector.extract_strided_slice %41 {offsets = [0, 0], sizes = [2, 256], strides = [1, 1]} : vector<2x384xf32> to vector<2x256xf32>
    %44 = arith.addf %42, %43 : vector<2x256xf32>
    %45 = arith.negf %44 : vector<2x256xf32>
    %46 = math.exp %45 : vector<2x256xf32>
    %cst_13 = arith.constant 1.000000e+00 : f32
    %47 = vector.broadcast %cst_13 : f32 to vector<2x256xf32>
    %48 = arith.addf %47, %46 : vector<2x256xf32>
    %49 = arith.divf %47, %48 : vector<2x256xf32>
    %50 = vector.extract_strided_slice %49 {offsets = [0, 0], sizes = [2, 128], strides = [1, 1]} : vector<2x256xf32> to vector<2x128xf32>
    %51 = vector.extract_strided_slice %49 {offsets = [0, 128], sizes = [2, 128], strides = [1, 1]} : vector<2x256xf32> to vector<2x128xf32>
    %52 = vector.extract_strided_slice %38 {offsets = [0, 256], sizes = [2, 128], strides = [1, 1]} : vector<2x384xf32> to vector<2x128xf32>
    %53 = vector.extract_strided_slice %41 {offsets = [0, 256], sizes = [2, 128], strides = [1, 1]} : vector<2x384xf32> to vector<2x128xf32>
    %54 = arith.mulf %50, %53 : vector<2x128xf32>
    %55 = arith.addf %52, %54 : vector<2x128xf32>
    %56 = math.tanh %55 : vector<2x128xf32>
    %cst_14 = arith.constant 1.000000e+00 : f32
    %57 = vector.broadcast %cst_14 : f32 to vector<2x128xf32>
    %58 = arith.subf %57, %51 : vector<2x128xf32>
    %59 = arith.mulf %58, %56 : vector<2x128xf32>
    %60 = arith.mulf %51, %31 : vector<2x128xf32>
    %61 = arith.addf %59, %60 : vector<2x128xf32>
    %62 = arith.index_cast %c1_i32 : i32 to index
    %c0_15 = arith.constant 0 : index
    %c0_16 = arith.constant 0 : index
    %63 = vector.load %arg4[%62, %c0_15, %c0_16] : memref<8x2x128xf32, #tpu.memory_space<vmem>>, vector<1x2x128xf32>
    %64 = vector.shape_cast %63 : vector<1x2x128xf32> to vector<2x128xf32>
    %65 = vector.shape_cast %61 : vector<2x128xf32> to vector<1x2x128xf32>
    tpu.vector_store %arg4[%62, %c0_15, %c0_16], %65 {strides = array<i32>} : memref<8x2x128xf32, #tpu.memory_space<vmem>>, vector<1x2x128xf32>,
    %c2_i32 = arith.constant 2 : i32
    %66 = arith.index_cast %c2_i32 : i32 to index
    %c0_17 = arith.constant 0 : index
    %c0_18 = arith.constant 0 : index
    %67 = vector.load %arg1[%66, %c0_17, %c0_18] : memref<8x2x384xf32, #tpu.memory_space<vmem>>, vector<1x2x384xf32>
    %68 = vector.shape_cast %67 : vector<1x2x384xf32> to vector<2x384xf32>
    %69 = arith.truncf %61 : vector<2x128xf32> to vector<2x128xbf16>
    %cst_19 = arith.constant dense<0.000000e+00> : vector<2x384xf32>
    %70 = tpu.matmul %69, %1, %cst_19 {dimension_numbers = #tpu.dot_dimension_numbers<[1], [0], [0], [1], [0, 0, 1, 1], [], []>} : vector<2x128xbf16>, vector<128x384xbf16>, vector<2x384xf32> -> vector<2x384xf32>
    %71 = arith.addf %70, %4 : vector<2x384xf32>
    %72 = vector.extract_strided_slice %68 {offsets = [0, 0], sizes = [2, 256], strides = [1, 1]} : vector<2x384xf32> to vector<2x256xf32>
    %73 = vector.extract_strided_slice %71 {offsets = [0, 0], sizes = [2, 256], strides = [1, 1]} : vector<2x384xf32> to vector<2x256xf32>
    %74 = arith.addf %72, %73 : vector<2x256xf32>
    %75 = arith.negf %74 : vector<2x256xf32>
    %76 = math.exp %75 : vector<2x256xf32>
    %cst_20 = arith.constant 1.000000e+00 : f32
    %77 = vector.broadcast %cst_20 : f32 to vector<2x256xf32>
    %78 = arith.addf %77, %76 : vector<2x256xf32>
    %79 = arith.divf %77, %78 : vector<2x256xf32>
    %80 = vector.extract_strided_slice %79 {offsets = [0, 0], sizes = [2, 128], strides = [1, 1]} : vector<2x256xf32> to vector<2x128xf32>
    %81 = vector.extract_strided_slice %79 {offsets = [0, 128], sizes = [2, 128], strides = [1, 1]} : vector<2x256xf32> to vector<2x128xf32>
    %82 = vector.extract_strided_slice %68 {offsets = [0, 256], sizes = [2, 128], strides = [1, 1]} : vector<2x384xf32> to vector<2x128xf32>
    %83 = vector.extract_strided_slice %71 {offsets = [0, 256], sizes = [2, 128], strides = [1, 1]} : vector<2x384xf32> to vector<2x128xf32>
    %84 = arith.mulf %80, %83 : vector<2x128xf32>
    %85 = arith.addf %82, %84 : vector<2x128xf32>
    %86 = math.tanh %85 : vector<2x128xf32>
    %cst_21 = arith.constant 1.000000e+00 : f32
    %87 = vector.broadcast %cst_21 : f32 to vector<2x128xf32>
    %88 = arith.subf %87, %81 : vector<2x128xf32>
    %89 = arith.mulf %88, %86 : vector<2x128xf32>
    %90 = arith.mulf %81, %61 : vector<2x128xf32>
    %91 = arith.addf %89, %90 : vector<2x128xf32>
    %92 = arith.index_cast %c2_i32 : i32 to index
    %c0_22 = arith.constant 0 : index
    %c0_23 = arith.constant 0 : index
    %93 = vector.load %arg4[%92, %c0_22, %c0_23] : memref<8x2x128xf32, #tpu.memory_space<vmem>>, vector<1x2x128xf32>
    %94 = vector.shape_cast %93 : vector<1x2x128xf32> to vector<2x128xf32>
    %95 = vector.shape_cast %91 : vector<2x128xf32> to vector<1x2x128xf32>
    tpu.vector_store %arg4[%92, %c0_22, %c0_23], %95 {strides = array<i32>} : memref<8x2x128xf32, #tpu.memory_space<vmem>>, vector<1x2x128xf32>,
    %c3_i32 = arith.constant 3 : i32
    %96 = arith.index_cast %c3_i32 : i32 to index
    %c0_24 = arith.constant 0 : index
    %c0_25 = arith.constant 0 : index
    %97 = vector.load %arg1[%96, %c0_24, %c0_25] : memref<8x2x384xf32, #tpu.memory_space<vmem>>, vector<1x2x384xf32>
    %98 = vector.shape_cast %97 : vector<1x2x384xf32> to vector<2x384xf32>
    %99 = arith.truncf %91 : vector<2x128xf32> to vector<2x128xbf16>
    %cst_26 = arith.constant dense<0.000000e+00> : vector<2x384xf32>
    %100 = tpu.matmul %99, %1, %cst_26 {dimension_numbers = #tpu.dot_dimension_numbers<[1], [0], [0], [1], [0, 0, 1, 1], [], []>} : vector<2x128xbf16>, vector<128x384xbf16>, vector<2x384xf32> -> vector<2x384xf32>
    %101 = arith.addf %100, %4 : vector<2x384xf32>
    %102 = vector.extract_strided_slice %98 {offsets = [0, 0], sizes = [2, 256], strides = [1, 1]} : vector<2x384xf32> to vector<2x256xf32>
    %103 = vector.extract_strided_slice %101 {offsets = [0, 0], sizes = [2, 256], strides = [1, 1]} : vector<2x384xf32> to vector<2x256xf32>
    %104 = arith.addf %102, %103 : vector<2x256xf32>
    %105 = arith.negf %104 : vector<2x256xf32>
    %106 = math.exp %105 : vector<2x256xf32>
    %cst_27 = arith.constant 1.000000e+00 : f32
    %107 = vector.broadcast %cst_27 : f32 to vector<2x256xf32>
    %108 = arith.addf %107, %106 : vector<2x256xf32>
    %109 = arith.divf %107, %108 : vector<2x256xf32>
    %110 = vector.extract_strided_slice %109 {offsets = [0, 0], sizes = [2, 128], strides = [1, 1]} : vector<2x256xf32> to vector<2x128xf32>
    %111 = vector.extract_strided_slice %109 {offsets = [0, 128], sizes = [2, 128], strides = [1, 1]} : vector<2x256xf32> to vector<2x128xf32>
    %112 = vector.extract_strided_slice %98 {offsets = [0, 256], sizes = [2, 128], strides = [1, 1]} : vector<2x384xf32> to vector<2x128xf32>
    %113 = vector.extract_strided_slice %101 {offsets = [0, 256], sizes = [2, 128], strides = [1, 1]} : vector<2x384xf32> to vector<2x128xf32>
    %114 = arith.mulf %110, %113 : vector<2x128xf32>
    %115 = arith.addf %112, %114 : vector<2x128xf32>
    %116 = math.tanh %115 : vector<2x128xf32>
    %cst_28 = arith.constant 1.000000e+00 : f32
    %117 = vector.broadcast %cst_28 : f32 to vector<2x128xf32>
    %118 = arith.subf %117, %111 : vector<2x128xf32>
    %119 = arith.mulf %118, %116 : vector<2x128xf32>
    %120 = arith.mulf %111, %91 : vector<2x128xf32>
    %121 = arith.addf %119, %120 : vector<2x128xf32>
    %122 = arith.index_cast %c3_i32 : i32 to index
    %c0_29 = arith.constant 0 : index
    %c0_30 = arith.constant 0 : index
    %123 = vector.load %arg4[%122, %c0_29, %c0_30] : memref<8x2x128xf32, #tpu.memory_space<vmem>>, vector<1x2x128xf32>
    %124 = vector.shape_cast %123 : vector<1x2x128xf32> to vector<2x128xf32>
    %125 = vector.shape_cast %121 : vector<2x128xf32> to vector<1x2x128xf32>
    tpu.vector_store %arg4[%122, %c0_29, %c0_30], %125 {strides = array<i32>} : memref<8x2x128xf32, #tpu.memory_space<vmem>>, vector<1x2x128xf32>,
    %c4_i32 = arith.constant 4 : i32
    %126 = arith.index_cast %c4_i32 : i32 to index
    %c0_31 = arith.constant 0 : index
    %c0_32 = arith.constant 0 : index
    %127 = vector.load %arg1[%126, %c0_31, %c0_32] : memref<8x2x384xf32, #tpu.memory_space<vmem>>, vector<1x2x384xf32>
    %128 = vector.shape_cast %127 : vector<1x2x384xf32> to vector<2x384xf32>
    %129 = arith.truncf %121 : vector<2x128xf32> to vector<2x128xbf16>
    %cst_33 = arith.constant dense<0.000000e+00> : vector<2x384xf32>
    %130 = tpu.matmul %129, %1, %cst_33 {dimension_numbers = #tpu.dot_dimension_numbers<[1], [0], [0], [1], [0, 0, 1, 1], [], []>} : vector<2x128xbf16>, vector<128x384xbf16>, vector<2x384xf32> -> vector<2x384xf32>
    %131 = arith.addf %130, %4 : vector<2x384xf32>
    %132 = vector.extract_strided_slice %128 {offsets = [0, 0], sizes = [2, 256], strides = [1, 1]} : vector<2x384xf32> to vector<2x256xf32>
    %133 = vector.extract_strided_slice %131 {offsets = [0, 0], sizes = [2, 256], strides = [1, 1]} : vector<2x384xf32> to vector<2x256xf32>
    %134 = arith.addf %132, %133 : vector<2x256xf32>
    %135 = arith.negf %134 : vector<2x256xf32>
    %136 = math.exp %135 : vector<2x256xf32>
    %cst_34 = arith.constant 1.000000e+00 : f32
    %137 = vector.broadcast %cst_34 : f32 to vector<2x256xf32>
    %138 = arith.addf %137, %136 : vector<2x256xf32>
    %139 = arith.divf %137, %138 : vector<2x256xf32>
    %140 = vector.extract_strided_slice %139 {offsets = [0, 0], sizes = [2, 128], strides = [1, 1]} : vector<2x256xf32> to vector<2x128xf32>
    %141 = vector.extract_strided_slice %139 {offsets = [0, 128], sizes = [2, 128], strides = [1, 1]} : vector<2x256xf32> to vector<2x128xf32>
    %142 = vector.extract_strided_slice %128 {offsets = [0, 256], sizes = [2, 128], strides = [1, 1]} : vector<2x384xf32> to vector<2x128xf32>
    %143 = vector.extract_strided_slice %131 {offsets = [0, 256], sizes = [2, 128], strides = [1, 1]} : vector<2x384xf32> to vector<2x128xf32>
    %144 = arith.mulf %140, %143 : vector<2x128xf32>
    %145 = arith.addf %142, %144 : vector<2x128xf32>
    %146 = math.tanh %145 : vector<2x128xf32>
    %cst_35 = arith.constant 1.000000e+00 : f32
    %147 = vector.broadcast %cst_35 : f32 to vector<2x128xf32>
    %148 = arith.subf %147, %141 : vector<2x128xf32>
    %149 = arith.mulf %148, %146 : vector<2x128xf32>
    %150 = arith.mulf %141, %121 : vector<2x128xf32>
    %151 = arith.addf %149, %150 : vector<2x128xf32>
    %152 = arith.index_cast %c4_i32 : i32 to index
    %c0_36 = arith.constant 0 : index
    %c0_37 = arith.constant 0 : index
    %153 = vector.load %arg4[%152, %c0_36, %c0_37] : memref<8x2x128xf32, #tpu.memory_space<vmem>>, vector<1x2x128xf32>
    %154 = vector.shape_cast %153 : vector<1x2x128xf32> to vector<2x128xf32>
    %155 = vector.shape_cast %151 : vector<2x128xf32> to vector<1x2x128xf32>
    tpu.vector_store %arg4[%152, %c0_36, %c0_37], %155 {strides = array<i32>} : memref<8x2x128xf32, #tpu.memory_space<vmem>>, vector<1x2x128xf32>,
    %c5_i32 = arith.constant 5 : i32
    %156 = arith.index_cast %c5_i32 : i32 to index
    %c0_38 = arith.constant 0 : index
    %c0_39 = arith.constant 0 : index
    %157 = vector.load %arg1[%156, %c0_38, %c0_39] : memref<8x2x384xf32, #tpu.memory_space<vmem>>, vector<1x2x384xf32>
    %158 = vector.shape_cast %157 : vector<1x2x384xf32> to vector<2x384xf32>
    %159 = arith.truncf %151 : vector<2x128xf32> to vector<2x128xbf16>
    %cst_40 = arith.constant dense<0.000000e+00> : vector<2x384xf32>
    %160 = tpu.matmul %159, %1, %cst_40 {dimension_numbers = #tpu.dot_dimension_numbers<[1], [0], [0], [1], [0, 0, 1, 1], [], []>} : vector<2x128xbf16>, vector<128x384xbf16>, vector<2x384xf32> -> vector<2x384xf32>
    %161 = arith.addf %160, %4 : vector<2x384xf32>
    %162 = vector.extract_strided_slice %158 {offsets = [0, 0], sizes = [2, 256], strides = [1, 1]} : vector<2x384xf32> to vector<2x256xf32>
    %163 = vector.extract_strided_slice %161 {offsets = [0, 0], sizes = [2, 256], strides = [1, 1]} : vector<2x384xf32> to vector<2x256xf32>
    %164 = arith.addf %162, %163 : vector<2x256xf32>
    %165 = arith.negf %164 : vector<2x256xf32>
    %166 = math.exp %165 : vector<2x256xf32>
    %cst_41 = arith.constant 1.000000e+00 : f32
    %167 = vector.broadcast %cst_41 : f32 to vector<2x256xf32>
    %168 = arith.addf %167, %166 : vector<2x256xf32>
    %169 = arith.divf %167, %168 : vector<2x256xf32>
    %170 = vector.extract_strided_slice %169 {offsets = [0, 0], sizes = [2, 128], strides = [1, 1]} : vector<2x256xf32> to vector<2x128xf32>
    %171 = vector.extract_strided_slice %169 {offsets = [0, 128], sizes = [2, 128], strides = [1, 1]} : vector<2x256xf32> to vector<2x128xf32>
    %172 = vector.extract_strided_slice %158 {offsets = [0, 256], sizes = [2, 128], strides = [1, 1]} : vector<2x384xf32> to vector<2x128xf32>
    %173 = vector.extract_strided_slice %161 {offsets = [0, 256], sizes = [2, 128], strides = [1, 1]} : vector<2x384xf32> to vector<2x128xf32>
    %174 = arith.mulf %170, %173 : vector<2x128xf32>
    %175 = arith.addf %172, %174 : vector<2x128xf32>
    %176 = math.tanh %175 : vector<2x128xf32>
    %cst_42 = arith.constant 1.000000e+00 : f32
    %177 = vector.broadcast %cst_42 : f32 to vector<2x128xf32>
    %178 = arith.subf %177, %171 : vector<2x128xf32>
    %179 = arith.mulf %178, %176 : vector<2x128xf32>
    %180 = arith.mulf %171, %151 : vector<2x128xf32>
    %181 = arith.addf %179, %180 : vector<2x128xf32>
    %182 = arith.index_cast %c5_i32 : i32 to index
    %c0_43 = arith.constant 0 : index
    %c0_44 = arith.constant 0 : index
    %183 = vector.load %arg4[%182, %c0_43, %c0_44] : memref<8x2x128xf32, #tpu.memory_space<vmem>>, vector<1x2x128xf32>
    %184 = vector.shape_cast %183 : vector<1x2x128xf32> to vector<2x128xf32>
    %185 = vector.shape_cast %181 : vector<2x128xf32> to vector<1x2x128xf32>
    tpu.vector_store %arg4[%182, %c0_43, %c0_44], %185 {strides = array<i32>} : memref<8x2x128xf32, #tpu.memory_space<vmem>>, vector<1x2x128xf32>,
    %c6_i32 = arith.constant 6 : i32
    %186 = arith.index_cast %c6_i32 : i32 to index
    %c0_45 = arith.constant 0 : index
    %c0_46 = arith.constant 0 : index
    %187 = vector.load %arg1[%186, %c0_45, %c0_46] : memref<8x2x384xf32, #tpu.memory_space<vmem>>, vector<1x2x384xf32>
    %188 = vector.shape_cast %187 : vector<1x2x384xf32> to vector<2x384xf32>
    %189 = arith.truncf %181 : vector<2x128xf32> to vector<2x128xbf16>
    %cst_47 = arith.constant dense<0.000000e+00> : vector<2x384xf32>
    %190 = tpu.matmul %189, %1, %cst_47 {dimension_numbers = #tpu.dot_dimension_numbers<[1], [0], [0], [1], [0, 0, 1, 1], [], []>} : vector<2x128xbf16>, vector<128x384xbf16>, vector<2x384xf32> -> vector<2x384xf32>
    %191 = arith.addf %190, %4 : vector<2x384xf32>
    %192 = vector.extract_strided_slice %188 {offsets = [0, 0], sizes = [2, 256], strides = [1, 1]} : vector<2x384xf32> to vector<2x256xf32>
    %193 = vector.extract_strided_slice %191 {offsets = [0, 0], sizes = [2, 256], strides = [1, 1]} : vector<2x384xf32> to vector<2x256xf32>
    %194 = arith.addf %192, %193 : vector<2x256xf32>
    %195 = arith.negf %194 : vector<2x256xf32>
    %196 = math.exp %195 : vector<2x256xf32>
    %cst_48 = arith.constant 1.000000e+00 : f32
    %197 = vector.broadcast %cst_48 : f32 to vector<2x256xf32>
    %198 = arith.addf %197, %196 : vector<2x256xf32>
    %199 = arith.divf %197, %198 : vector<2x256xf32>
    %200 = vector.extract_strided_slice %199 {offsets = [0, 0], sizes = [2, 128], strides = [1, 1]} : vector<2x256xf32> to vector<2x128xf32>
    %201 = vector.extract_strided_slice %199 {offsets = [0, 128], sizes = [2, 128], strides = [1, 1]} : vector<2x256xf32> to vector<2x128xf32>
    %202 = vector.extract_strided_slice %188 {offsets = [0, 256], sizes = [2, 128], strides = [1, 1]} : vector<2x384xf32> to vector<2x128xf32>
    %203 = vector.extract_strided_slice %191 {offsets = [0, 256], sizes = [2, 128], strides = [1, 1]} : vector<2x384xf32> to vector<2x128xf32>
    %204 = arith.mulf %200, %203 : vector<2x128xf32>
    %205 = arith.addf %202, %204 : vector<2x128xf32>
    %206 = math.tanh %205 : vector<2x128xf32>
    %cst_49 = arith.constant 1.000000e+00 : f32
    %207 = vector.broadcast %cst_49 : f32 to vector<2x128xf32>
    %208 = arith.subf %207, %201 : vector<2x128xf32>
    %209 = arith.mulf %208, %206 : vector<2x128xf32>
    %210 = arith.mulf %201, %181 : vector<2x128xf32>
    %211 = arith.addf %209, %210 : vector<2x128xf32>
    %212 = arith.index_cast %c6_i32 : i32 to index
    %c0_50 = arith.constant 0 : index
    %c0_51 = arith.constant 0 : index
    %213 = vector.load %arg4[%212, %c0_50, %c0_51] : memref<8x2x128xf32, #tpu.memory_space<vmem>>, vector<1x2x128xf32>
    %214 = vector.shape_cast %213 : vector<1x2x128xf32> to vector<2x128xf32>
    %215 = vector.shape_cast %211 : vector<2x128xf32> to vector<1x2x128xf32>
    tpu.vector_store %arg4[%212, %c0_50, %c0_51], %215 {strides = array<i32>} : memref<8x2x128xf32, #tpu.memory_space<vmem>>, vector<1x2x128xf32>,
    %c7_i32 = arith.constant 7 : i32
    %216 = arith.index_cast %c7_i32 : i32 to index
    %c0_52 = arith.constant 0 : index
    %c0_53 = arith.constant 0 : index
    %217 = vector.load %arg1[%216, %c0_52, %c0_53] : memref<8x2x384xf32, #tpu.memory_space<vmem>>, vector<1x2x384xf32>
    %218 = vector.shape_cast %217 : vector<1x2x384xf32> to vector<2x384xf32>
    %219 = arith.truncf %211 : vector<2x128xf32> to vector<2x128xbf16>
    %cst_54 = arith.constant dense<0.000000e+00> : vector<2x384xf32>
    %220 = tpu.matmul %219, %1, %cst_54 {dimension_numbers = #tpu.dot_dimension_numbers<[1], [0], [0], [1], [0, 0, 1, 1], [], []>} : vector<2x128xbf16>, vector<128x384xbf16>, vector<2x384xf32> -> vector<2x384xf32>
    %221 = arith.addf %220, %4 : vector<2x384xf32>
    %222 = vector.extract_strided_slice %218 {offsets = [0, 0], sizes = [2, 256], strides = [1, 1]} : vector<2x384xf32> to vector<2x256xf32>
    %223 = vector.extract_strided_slice %221 {offsets = [0, 0], sizes = [2, 256], strides = [1, 1]} : vector<2x384xf32> to vector<2x256xf32>
    %224 = arith.addf %222, %223 : vector<2x256xf32>
    %225 = arith.negf %224 : vector<2x256xf32>
    %226 = math.exp %225 : vector<2x256xf32>
    %cst_55 = arith.constant 1.000000e+00 : f32
    %227 = vector.broadcast %cst_55 : f32 to vector<2x256xf32>
    %228 = arith.addf %227, %226 : vector<2x256xf32>
    %229 = arith.divf %227, %228 : vector<2x256xf32>
    %230 = vector.extract_strided_slice %229 {offsets = [0, 0], sizes = [2, 128], strides = [1, 1]} : vector<2x256xf32> to vector<2x128xf32>
    %231 = vector.extract_strided_slice %229 {offsets = [0, 128], sizes = [2, 128], strides = [1, 1]} : vector<2x256xf32> to vector<2x128xf32>
    %232 = vector.extract_strided_slice %218 {offsets = [0, 256], sizes = [2, 128], strides = [1, 1]} : vector<2x384xf32> to vector<2x128xf32>
    %233 = vector.extract_strided_slice %221 {offsets = [0, 256], sizes = [2, 128], strides = [1, 1]} : vector<2x384xf32> to vector<2x128xf32>
    %234 = arith.mulf %230, %233 : vector<2x128xf32>
    %235 = arith.addf %232, %234 : vector<2x128xf32>
    %236 = math.tanh %235 : vector<2x128xf32>
    %cst_56 = arith.constant 1.000000e+00 : f32
    %237 = vector.broadcast %cst_56 : f32 to vector<2x128xf32>
    %238 = arith.subf %237, %231 : vector<2x128xf32>
    %239 = arith.mulf %238, %236 : vector<2x128xf32>
    %240 = arith.mulf %231, %211 : vector<2x128xf32>
    %241 = arith.addf %239, %240 : vector<2x128xf32>
    %242 = arith.index_cast %c7_i32 : i32 to index
    %c0_57 = arith.constant 0 : index
    %c0_58 = arith.constant 0 : index
    %243 = vector.load %arg4[%242, %c0_57, %c0_58] : memref<8x2x128xf32, #tpu.memory_space<vmem>>, vector<1x2x128xf32>
    %244 = vector.shape_cast %243 : vector<1x2x128xf32> to vector<2x128xf32>
    %245 = vector.shape_cast %241 : vector<2x128xf32> to vector<1x2x128xf32>
    tpu.vector_store %arg4[%242, %c0_57, %c0_58], %245 {strides = array<i32>} : memref<8x2x128xf32, #tpu.memory_space<vmem>>, vector<1x2x128xf32>,
    %c8_i32 = arith.constant 8 : i32
    %246 = tpu.iota {dimensions = array<i32: 1>} : vector<2x128xi32>
    %c64_i32 = arith.constant 64 : i32
    %247 = vector.broadcast %c64_i32 : i32 to vector<2x128xi32>
    %248 = arith.cmpi slt, %246, %247 : vector<2x128xi32>
    %c0_i32_59 = arith.constant 0 : i32
    %249 = arith.index_cast %c0_i32_59 : i32 to index
    %c0_60 = arith.constant 0 : index
    %c0_61 = arith.constant 0 : index
    %250 = vector.load %arg4[%249, %c0_60, %c0_61] : memref<8x2x128xf32, #tpu.memory_space<vmem>>, vector<1x2x128xf32>
    %251 = vector.shape_cast %250 : vector<1x2x128xf32> to vector<2x128xf32>
    %c7_i32_62 = arith.constant 7 : i32
    %252 = arith.subi %c7_i32_62, %c0_i32_59 : i32
    %253 = arith.index_cast %252 : i32 to index
    %c0_63 = arith.constant 0 : index
    %c0_64 = arith.constant 0 : index
    %254 = vector.load %arg4[%253, %c0_63, %c0_64] : memref<8x2x128xf32, #tpu.memory_space<vmem>>, vector<1x2x128xf32>
    %255 = vector.shape_cast %254 : vector<1x2x128xf32> to vector<2x128xf32>
    %256 = arith.select %248, %251, %255 : vector<2x128xi1>, vector<2x128xf32>
    %257 = arith.index_cast %c0_i32_59 : i32 to index
    %c0_65 = arith.constant 0 : index
    %c0_66 = arith.constant 0 : index
    %258 = vector.load %arg4[%257, %c0_65, %c0_66] : memref<8x2x128xf32, #tpu.memory_space<vmem>>, vector<1x2x128xf32>
    %259 = vector.shape_cast %258 : vector<1x2x128xf32> to vector<2x128xf32>
    %260 = vector.shape_cast %256 : vector<2x128xf32> to vector<1x2x128xf32>
    tpu.vector_store %arg4[%257, %c0_65, %c0_66], %260 {strides = array<i32>} : memref<8x2x128xf32, #tpu.memory_space<vmem>>, vector<1x2x128xf32>,
    %261 = arith.select %248, %255, %251 : vector<2x128xi1>, vector<2x128xf32>
    %c7_i32_67 = arith.constant 7 : i32
    %262 = arith.subi %c7_i32_67, %c0_i32_59 : i32
    %263 = arith.index_cast %262 : i32 to index
    %c0_68 = arith.constant 0 : index
    %c0_69 = arith.constant 0 : index
    %264 = vector.load %arg4[%263, %c0_68, %c0_69] : memref<8x2x128xf32, #tpu.memory_space<vmem>>, vector<1x2x128xf32>
    %265 = vector.shape_cast %264 : vector<1x2x128xf32> to vector<2x128xf32>
    %266 = vector.shape_cast %261 : vector<2x128xf32> to vector<1x2x128xf32>
    tpu.vector_store %arg4[%263, %c0_68, %c0_69], %266 {strides = array<i32>} : memref<8x2x128xf32, #tpu.memory_space<vmem>>, vector<1x2x128xf32>,
    %c1_i32_70 = arith.constant 1 : i32
    %267 = arith.index_cast %c1_i32_70 : i32 to index
    %c0_71 = arith.constant 0 : index
    %c0_72 = arith.constant 0 : index
    %268 = vector.load %arg4[%267, %c0_71, %c0_72] : memref<8x2x128xf32, #tpu.memory_space<vmem>>, vector<1x2x128xf32>
    %269 = vector.shape_cast %268 : vector<1x2x128xf32> to vector<2x128xf32>
    %c7_i32_73 = arith.constant 7 : i32
    %270 = arith.subi %c7_i32_73, %c1_i32_70 : i32
    %271 = arith.index_cast %270 : i32 to index
    %c0_74 = arith.constant 0 : index
    %c0_75 = arith.constant 0 : index
    %272 = vector.load %arg4[%271, %c0_74, %c0_75] : memref<8x2x128xf32, #tpu.memory_space<vmem>>, vector<1x2x128xf32>
    %273 = vector.shape_cast %272 : vector<1x2x128xf32> to vector<2x128xf32>
    %274 = arith.select %248, %269, %273 : vector<2x128xi1>, vector<2x128xf32>
    %275 = arith.index_cast %c1_i32_70 : i32 to index
    %c0_76 = arith.constant 0 : index
    %c0_77 = arith.constant 0 : index
    %276 = vector.load %arg4[%275, %c0_76, %c0_77] : memref<8x2x128xf32, #tpu.memory_space<vmem>>, vector<1x2x128xf32>
    %277 = vector.shape_cast %276 : vector<1x2x128xf32> to vector<2x128xf32>
    %278 = vector.shape_cast %274 : vector<2x128xf32> to vector<1x2x128xf32>
    tpu.vector_store %arg4[%275, %c0_76, %c0_77], %278 {strides = array<i32>} : memref<8x2x128xf32, #tpu.memory_space<vmem>>, vector<1x2x128xf32>,
    %279 = arith.select %248, %273, %269 : vector<2x128xi1>, vector<2x128xf32>
    %c7_i32_78 = arith.constant 7 : i32
    %280 = arith.subi %c7_i32_78, %c1_i32_70 : i32
    %281 = arith.index_cast %280 : i32 to index
    %c0_79 = arith.constant 0 : index
    %c0_80 = arith.constant 0 : index
    %282 = vector.load %arg4[%281, %c0_79, %c0_80] : memref<8x2x128xf32, #tpu.memory_space<vmem>>, vector<1x2x128xf32>
    %283 = vector.shape_cast %282 : vector<1x2x128xf32> to vector<2x128xf32>
    %284 = vector.shape_cast %279 : vector<2x128xf32> to vector<1x2x128xf32>
    tpu.vector_store %arg4[%281, %c0_79, %c0_80], %284 {strides = array<i32>} : memref<8x2x128xf32, #tpu.memory_space<vmem>>, vector<1x2x128xf32>,
    %c2_i32_81 = arith.constant 2 : i32
    %285 = arith.index_cast %c2_i32_81 : i32 to index
    %c0_82 = arith.constant 0 : index
    %c0_83 = arith.constant 0 : index
    %286 = vector.load %arg4[%285, %c0_82, %c0_83] : memref<8x2x128xf32, #tpu.memory_space<vmem>>, vector<1x2x128xf32>
    %287 = vector.shape_cast %286 : vector<1x2x128xf32> to vector<2x128xf32>
    %c7_i32_84 = arith.constant 7 : i32
    %288 = arith.subi %c7_i32_84, %c2_i32_81 : i32
    %289 = arith.index_cast %288 : i32 to index
    %c0_85 = arith.constant 0 : index
    %c0_86 = arith.constant 0 : index
    %290 = vector.load %arg4[%289, %c0_85, %c0_86] : memref<8x2x128xf32, #tpu.memory_space<vmem>>, vector<1x2x128xf32>
    %291 = vector.shape_cast %290 : vector<1x2x128xf32> to vector<2x128xf32>
    %292 = arith.select %248, %287, %291 : vector<2x128xi1>, vector<2x128xf32>
    %293 = arith.index_cast %c2_i32_81 : i32 to index
    %c0_87 = arith.constant 0 : index
    %c0_88 = arith.constant 0 : index
    %294 = vector.load %arg4[%293, %c0_87, %c0_88] : memref<8x2x128xf32, #tpu.memory_space<vmem>>, vector<1x2x128xf32>
    %295 = vector.shape_cast %294 : vector<1x2x128xf32> to vector<2x128xf32>
    %296 = vector.shape_cast %292 : vector<2x128xf32> to vector<1x2x128xf32>
    tpu.vector_store %arg4[%293, %c0_87, %c0_88], %296 {strides = array<i32>} : memref<8x2x128xf32, #tpu.memory_space<vmem>>, vector<1x2x128xf32>,
    %297 = arith.select %248, %291, %287 : vector<2x128xi1>, vector<2x128xf32>
    %c7_i32_89 = arith.constant 7 : i32
    %298 = arith.subi %c7_i32_89, %c2_i32_81 : i32
    %299 = arith.index_cast %298 : i32 to index
    %c0_90 = arith.constant 0 : index
    %c0_91 = arith.constant 0 : index
    %300 = vector.load %arg4[%299, %c0_90, %c0_91] : memref<8x2x128xf32, #tpu.memory_space<vmem>>, vector<1x2x128xf32>
    %301 = vector.shape_cast %300 : vector<1x2x128xf32> to vector<2x128xf32>
    %302 = vector.shape_cast %297 : vector<2x128xf32> to vector<1x2x128xf32>
    tpu.vector_store %arg4[%299, %c0_90, %c0_91], %302 {strides = array<i32>} : memref<8x2x128xf32, #tpu.memory_space<vmem>>, vector<1x2x128xf32>,
    %c3_i32_92 = arith.constant 3 : i32
    %303 = arith.index_cast %c3_i32_92 : i32 to index
    %c0_93 = arith.constant 0 : index
    %c0_94 = arith.constant 0 : index
    %304 = vector.load %arg4[%303, %c0_93, %c0_94] : memref<8x2x128xf32, #tpu.memory_space<vmem>>, vector<1x2x128xf32>
    %305 = vector.shape_cast %304 : vector<1x2x128xf32> to vector<2x128xf32>
    %c7_i32_95 = arith.constant 7 : i32
    %306 = arith.subi %c7_i32_95, %c3_i32_92 : i32
    %307 = arith.index_cast %306 : i32 to index
    %c0_96 = arith.constant 0 : index
    %c0_97 = arith.constant 0 : index
    %308 = vector.load %arg4[%307, %c0_96, %c0_97] : memref<8x2x128xf32, #tpu.memory_space<vmem>>, vector<1x2x128xf32>
    %309 = vector.shape_cast %308 : vector<1x2x128xf32> to vector<2x128xf32>
    %310 = arith.select %248, %305, %309 : vector<2x128xi1>, vector<2x128xf32>
    %311 = arith.index_cast %c3_i32_92 : i32 to index
    %c0_98 = arith.constant 0 : index
    %c0_99 = arith.constant 0 : index
    %312 = vector.load %arg4[%311, %c0_98, %c0_99] : memref<8x2x128xf32, #tpu.memory_space<vmem>>, vector<1x2x128xf32>
    %313 = vector.shape_cast %312 : vector<1x2x128xf32> to vector<2x128xf32>
    %314 = vector.shape_cast %310 : vector<2x128xf32> to vector<1x2x128xf32>
    tpu.vector_store %arg4[%311, %c0_98, %c0_99], %314 {strides = array<i32>} : memref<8x2x128xf32, #tpu.memory_space<vmem>>, vector<1x2x128xf32>,
    %315 = arith.select %248, %309, %305 : vector<2x128xi1>, vector<2x128xf32>
    %c7_i32_100 = arith.constant 7 : i32
    %316 = arith.subi %c7_i32_100, %c3_i32_92 : i32
    %317 = arith.index_cast %316 : i32 to index
    %c0_101 = arith.constant 0 : index
    %c0_102 = arith.constant 0 : index
    %318 = vector.load %arg4[%317, %c0_101, %c0_102] : memref<8x2x128xf32, #tpu.memory_space<vmem>>, vector<1x2x128xf32>
    %319 = vector.shape_cast %318 : vector<1x2x128xf32> to vector<2x128xf32>
    %320 = vector.shape_cast %315 : vector<2x128xf32> to vector<1x2x128xf32>
    tpu.vector_store %arg4[%317, %c0_101, %c0_102], %320 {strides = array<i32>} : memref<8x2x128xf32, #tpu.memory_space<vmem>>, vector<1x2x128xf32>,
    %c4_i32_103 = arith.constant 4 : i32
    return
  }
  func.func @transform_0(%arg0: i32) -> (i32, i32, i32) {
    %c0_i32 = arith.constant 0 : i32
    %c0_i32_0 = arith.constant 0 : i32
    %c0_i32_1 = arith.constant 0 : i32
    return %c0_i32, %arg0, %c0_i32_0 : i32, i32, i32
  }
  func.func @transform_1(%arg0: i32) -> (i32, i32) {
    %c0_i32 = arith.constant 0 : i32
    %c0_i32_0 = arith.constant 0 : i32
    %c0_i32_1 = arith.constant 0 : i32
    return %c0_i32, %c0_i32_0 : i32, i32
  }
  func.func @transform_2(%arg0: i32) -> (i32, i32) {
    %c0_i32 = arith.constant 0 : i32
    %c0_i32_0 = arith.constant 0 : i32
    %c0_i32_1 = arith.constant 0 : i32
    return %c0_i32, %c0_i32_0 : i32, i32
  }
  func.func @transform_3(%arg0: i32) -> (i32, i32, i32) {
    %c0_i32 = arith.constant 0 : i32
    %c0_i32_0 = arith.constant 0 : i32
    %c0_i32_1 = arith.constant 0 : i32
    return %c0_i32, %arg0, %c0_i32_0 : i32, i32, i32
  }
}

module attributes {stable_mosaic.version = 11 : i64} {
  func.func @_head_kernel(%arg0: i32, %arg1: memref<8x2x128xf32, #tpu.memory_space<vmem>>, %arg2: memref<8x2x128xf32, #tpu.memory_space<vmem>>, %arg3: memref<8x2x1xf32, #tpu.memory_space<vmem>>, %arg4: memref<1x128xf32, #tpu.memory_space<vmem>>, %arg5: memref<8x1xf32, #tpu.memory_space<vmem>>, %arg6: memref<1x128xf32, #tpu.memory_space<vmem>>, %arg7: memref<8x1xf32, #tpu.memory_space<vmem>>, %arg8: memref<3x2x1xf32, #tpu.memory_space<vmem>>, %arg9: memref<3x1x16xf32, #tpu.memory_space<vmem>>, %arg10: memref<3x1x16xf32, #tpu.memory_space<vmem>>, %arg11: memref<3x16x16xf32, #tpu.memory_space<vmem>>, %arg12: memref<3x1x16xf32, #tpu.memory_space<vmem>>, %arg13: memref<1328x64xf32, #tpu.memory_space<vmem>>, %arg14: memref<1x64xf32, #tpu.memory_space<vmem>>, %arg15: memref<64x1xf32, #tpu.memory_space<vmem>>, %arg16: memref<1x1xf32, #tpu.memory_space<vmem>>, %arg17: memref<2x1xf32, #tpu.memory_space<vmem>>) attributes {dimension_semantics = [#tpu.dimension_semantics<parallel>], iteration_bounds = array<i64: 1>, scalar_prefetch = 0 : i64, scratch_operands = 0 : i64, tpu.core_type = #tpu.core_type<tc>, window_params = [{transform_indices = @transform_0, window_bounds = array<i64: 8, 2, 128>}, {transform_indices = @transform_1, window_bounds = array<i64: 8, 2, 128>}, {transform_indices = @transform_2, window_bounds = array<i64: 8, 2, 1>}, {pipeline_mode = #tpu.pipeline_mode<synchronous>, transform_indices = @transform_3, window_bounds = array<i64: 1, 128>}, {pipeline_mode = #tpu.pipeline_mode<synchronous>, transform_indices = @transform_4, window_bounds = array<i64: 8, 1>}, {pipeline_mode = #tpu.pipeline_mode<synchronous>, transform_indices = @transform_5, window_bounds = array<i64: 1, 128>}, {pipeline_mode = #tpu.pipeline_mode<synchronous>, transform_indices = @transform_6, window_bounds = array<i64: 8, 1>}, {transform_indices = @transform_7, window_bounds = array<i64: 3, 2, 1>}, {pipeline_mode = #tpu.pipeline_mode<synchronous>, transform_indices = @transform_8, window_bounds = array<i64: 3, 1, 16>}, {pipeline_mode = #tpu.pipeline_mode<synchronous>, transform_indices = @transform_9, window_bounds = array<i64: 3, 1, 16>}, {pipeline_mode = #tpu.pipeline_mode<synchronous>, transform_indices = @transform_10, window_bounds = array<i64: 3, 16, 16>}, {pipeline_mode = #tpu.pipeline_mode<synchronous>, transform_indices = @transform_11, window_bounds = array<i64: 3, 1, 16>}, {pipeline_mode = #tpu.pipeline_mode<synchronous>, transform_indices = @transform_12, window_bounds = array<i64: 1328, 64>}, {pipeline_mode = #tpu.pipeline_mode<synchronous>, transform_indices = @transform_13, window_bounds = array<i64: 1, 64>}, {pipeline_mode = #tpu.pipeline_mode<synchronous>, transform_indices = @transform_14, window_bounds = array<i64: 64, 1>}, {pipeline_mode = #tpu.pipeline_mode<synchronous>, transform_indices = @transform_15, window_bounds = array<i64: 1, 1>}, {transform_indices = @transform_16, window_bounds = array<i64: 2, 1>}]} {
    %c0 = arith.constant 0 : index
    %c0_0 = arith.constant 0 : index
    %c0_1 = arith.constant 0 : index
    %0 = vector.load %arg3[%c0, %c0_0, %c0_1] : memref<8x2x1xf32, #tpu.memory_space<vmem>>, vector<8x2x1xf32>
    %c0_2 = arith.constant 0 : index
    %c0_3 = arith.constant 0 : index
    %c0_4 = arith.constant 0 : index
    %1 = vector.load %arg1[%c0_2, %c0_3, %c0_4] : memref<8x2x128xf32, #tpu.memory_space<vmem>>, vector<8x2x128xf32>
    %c0_5 = arith.constant 0 : index
    %c0_6 = arith.constant 0 : index
    %c0_7 = arith.constant 0 : index
    %2 = vector.load %arg2[%c0_5, %c0_6, %c0_7] : memref<8x2x128xf32, #tpu.memory_space<vmem>>, vector<8x2x128xf32>
    %c0_8 = arith.constant 0 : index
    %c0_9 = arith.constant 0 : index
    %3 = vector.load %arg4[%c0_8, %c0_9] : memref<1x128xf32, #tpu.memory_space<vmem>>, vector<1x128xf32>
    %c0_10 = arith.constant 0 : index
    %c0_11 = arith.constant 0 : index
    %4 = vector.load %arg5[%c0_10, %c0_11] : memref<8x1xf32, #tpu.memory_space<vmem>>, vector<8x1xf32>
    %5 = vector.shape_cast %3 : vector<1x128xf32> to vector<1x1x128xf32>
    %6 = vector.broadcast %5 : vector<1x1x128xf32> to vector<8x2x128xf32>
    %7 = arith.mulf %1, %6 : vector<8x2x128xf32>
    %cst = arith.constant dense<0.000000e+00> : vector<8x2xf32>
    %8 = vector.multi_reduction <add>, %7, %cst [2] : vector<8x2x128xf32> to vector<8x2xf32>
    %9 = vector.shape_cast %8 : vector<8x2xf32> to vector<8x2x1xf32>
    %10 = vector.shape_cast %4 : vector<8x1xf32> to vector<8x1x1xf32>
    %11 = vector.broadcast %10 : vector<8x1x1xf32> to vector<8x2x1xf32>
    %12 = arith.addf %9, %11 : vector<8x2x1xf32>
    %13 = math.tanh %12 : vector<8x2x1xf32>
    %14 = math.exp %13 : vector<8x2x1xf32>
    %15 = arith.mulf %14, %0 : vector<8x2x1xf32>
    %cst_12 = arith.constant dense<0.000000e+00> : vector<2x1xf32>
    %16 = vector.multi_reduction <add>, %15, %cst_12 [0] : vector<8x2x1xf32> to vector<2x1xf32>
    %17 = vector.shape_cast %16 : vector<2x1xf32> to vector<1x2x1xf32>
    %cst_13 = arith.constant 1.000000e-10 : f32
    %18 = vector.broadcast %cst_13 : f32 to vector<1x2x1xf32>
    %19 = arith.addf %17, %18 : vector<1x2x1xf32>
    %20 = vector.broadcast %19 : vector<1x2x1xf32> to vector<8x2x1xf32>
    %21 = arith.divf %15, %20 : vector<8x2x1xf32>
    %22 = vector.broadcast %21 : vector<8x2x1xf32> to vector<8x2x128xf32>
    %23 = arith.mulf %1, %22 : vector<8x2x128xf32>
    %cst_14 = arith.constant dense<0.000000e+00> : vector<2x128xf32>
    %24 = vector.multi_reduction <add>, %23, %cst_14 [0] : vector<8x2x128xf32> to vector<2x128xf32>
    %c0_15 = arith.constant 0 : index
    %c0_16 = arith.constant 0 : index
    %25 = vector.load %arg6[%c0_15, %c0_16] : memref<1x128xf32, #tpu.memory_space<vmem>>, vector<1x128xf32>
    %c0_17 = arith.constant 0 : index
    %c0_18 = arith.constant 0 : index
    %26 = vector.load %arg7[%c0_17, %c0_18] : memref<8x1xf32, #tpu.memory_space<vmem>>, vector<8x1xf32>
    %27 = vector.shape_cast %25 : vector<1x128xf32> to vector<1x1x128xf32>
    %28 = vector.broadcast %27 : vector<1x1x128xf32> to vector<8x2x128xf32>
    %29 = arith.mulf %2, %28 : vector<8x2x128xf32>
    %cst_19 = arith.constant dense<0.000000e+00> : vector<8x2xf32>
    %30 = vector.multi_reduction <add>, %29, %cst_19 [2] : vector<8x2x128xf32> to vector<8x2xf32>
    %31 = vector.shape_cast %30 : vector<8x2xf32> to vector<8x2x1xf32>
    %32 = vector.shape_cast %26 : vector<8x1xf32> to vector<8x1x1xf32>
    %33 = vector.broadcast %32 : vector<8x1x1xf32> to vector<8x2x1xf32>
    %34 = arith.addf %31, %33 : vector<8x2x1xf32>
    %35 = math.tanh %34 : vector<8x2x1xf32>
    %36 = math.exp %35 : vector<8x2x1xf32>
    %37 = arith.mulf %36, %0 : vector<8x2x1xf32>
    %cst_20 = arith.constant dense<0.000000e+00> : vector<2x1xf32>
    %38 = vector.multi_reduction <add>, %37, %cst_20 [0] : vector<8x2x1xf32> to vector<2x1xf32>
    %39 = vector.shape_cast %38 : vector<2x1xf32> to vector<1x2x1xf32>
    %cst_21 = arith.constant 1.000000e-10 : f32
    %40 = vector.broadcast %cst_21 : f32 to vector<1x2x1xf32>
    %41 = arith.addf %39, %40 : vector<1x2x1xf32>
    %42 = vector.broadcast %41 : vector<1x2x1xf32> to vector<8x2x1xf32>
    %43 = arith.divf %37, %42 : vector<8x2x1xf32>
    %44 = vector.broadcast %43 : vector<8x2x1xf32> to vector<8x2x128xf32>
    %45 = arith.mulf %2, %44 : vector<8x2x128xf32>
    %cst_22 = arith.constant dense<0.000000e+00> : vector<2x128xf32>
    %46 = vector.multi_reduction <add>, %45, %cst_22 [0] : vector<8x2x128xf32> to vector<2x128xf32>
    %47 = vector.broadcast %0 : vector<8x2x1xf32> to vector<8x2x128xf32>
    %48 = arith.mulf %2, %47 : vector<8x2x128xf32>
    %cst_23 = arith.constant dense<0.000000e+00> : vector<2x128xf32>
    %49 = vector.multi_reduction <add>, %48, %cst_23 [0] : vector<8x2x128xf32> to vector<2x128xf32>
    %cst_24 = arith.constant 8.000000e+00 : f32
    %50 = vector.broadcast %cst_24 : f32 to vector<2x128xf32>
    %51 = arith.divf %49, %50 : vector<2x128xf32>
    %cst_25 = arith.constant dense<0xFF800000> : vector<2x128xf32>
    %52 = vector.multi_reduction <maximumf>, %48, %cst_25 [0] : vector<8x2x128xf32> to vector<2x128xf32>
    %53 = arith.mulf %51, %52 : vector<2x128xf32>
    %54 = arith.mulf %51, %24 : vector<2x128xf32>
    %55 = arith.mulf %51, %46 : vector<2x128xf32>
    %56 = arith.mulf %52, %24 : vector<2x128xf32>
    %57 = arith.mulf %52, %46 : vector<2x128xf32>
    %58 = arith.mulf %24, %46 : vector<2x128xf32>
    %c0_26 = arith.constant 0 : index
    %c0_27 = arith.constant 0 : index
    %c0_28 = arith.constant 0 : index
    %59 = vector.load %arg8[%c0_26, %c0_27, %c0_28] : memref<3x2x1xf32, #tpu.memory_space<vmem>>, vector<1x2x1xf32>
    %60 = vector.shape_cast %59 : vector<1x2x1xf32> to vector<2x1xf32>
    %c0_29 = arith.constant 0 : index
    %c0_30 = arith.constant 0 : index
    %c0_31 = arith.constant 0 : index
    %61 = vector.load %arg9[%c0_29, %c0_30, %c0_31] : memref<3x1x16xf32, #tpu.memory_space<vmem>>, vector<1x1x16xf32>
    %62 = vector.shape_cast %61 : vector<1x1x16xf32> to vector<1x16xf32>
    %63 = vector.broadcast %60 : vector<2x1xf32> to vector<2x16xf32>
    %64 = vector.broadcast %62 : vector<1x16xf32> to vector<2x16xf32>
    %65 = arith.mulf %63, %64 : vector<2x16xf32>
    %c0_32 = arith.constant 0 : index
    %c0_33 = arith.constant 0 : index
    %c0_34 = arith.constant 0 : index
    %66 = vector.load %arg10[%c0_32, %c0_33, %c0_34] : memref<3x1x16xf32, #tpu.memory_space<vmem>>, vector<1x1x16xf32>
    %67 = vector.shape_cast %66 : vector<1x1x16xf32> to vector<1x16xf32>
    %68 = vector.broadcast %67 : vector<1x16xf32> to vector<2x16xf32>
    %69 = arith.addf %65, %68 : vector<2x16xf32>
    %cst_35 = arith.constant 0.000000e+00 : f32
    %70 = vector.broadcast %cst_35 : f32 to vector<2x16xf32>
    %71 = arith.maximumf %69, %70 : vector<2x16xf32>
    %c0_36 = arith.constant 0 : index
    %c0_37 = arith.constant 0 : index
    %c0_38 = arith.constant 0 : index
    %72 = vector.load %arg11[%c0_36, %c0_37, %c0_38] : memref<3x16x16xf32, #tpu.memory_space<vmem>>, vector<1x16x16xf32>
    %73 = vector.shape_cast %72 : vector<1x16x16xf32> to vector<16x16xf32>
    %cst_39 = arith.constant dense<0.000000e+00> : vector<2x16xf32>
    %74 = tpu.matmul %71, %73, %cst_39 {dimension_numbers = #tpu.dot_dimension_numbers<[1], [0], [0], [1], [0, 0, 1, 1], [], []>} : vector<2x16xf32>, vector<16x16xf32>, vector<2x16xf32> -> vector<2x16xf32>
    %c0_40 = arith.constant 0 : index
    %c0_41 = arith.constant 0 : index
    %c0_42 = arith.constant 0 : index
    %75 = vector.load %arg12[%c0_40, %c0_41, %c0_42] : memref<3x1x16xf32, #tpu.memory_space<vmem>>, vector<1x1x16xf32>
    %76 = vector.shape_cast %75 : vector<1x1x16xf32> to vector<1x16xf32>
    %77 = vector.broadcast %76 : vector<1x16xf32> to vector<2x16xf32>
    %78 = arith.addf %74, %77 : vector<2x16xf32>
    %cst_43 = arith.constant 0.000000e+00 : f32
    %79 = vector.broadcast %cst_43 : f32 to vector<2x16xf32>
    %80 = arith.maximumf %78, %79 : vector<2x16xf32>
    %c1 = arith.constant 1 : index
    %c0_44 = arith.constant 0 : index
    %c0_45 = arith.constant 0 : index
    %81 = vector.load %arg8[%c1, %c0_44, %c0_45] : memref<3x2x1xf32, #tpu.memory_space<vmem>>, vector<1x2x1xf32>
    %82 = vector.shape_cast %81 : vector<1x2x1xf32> to vector<2x1xf32>
    %c1_46 = arith.constant 1 : index
    %c0_47 = arith.constant 0 : index
    %c0_48 = arith.constant 0 : index
    %83 = vector.load %arg9[%c1_46, %c0_47, %c0_48] : memref<3x1x16xf32, #tpu.memory_space<vmem>>, vector<1x1x16xf32>
    %84 = vector.shape_cast %83 : vector<1x1x16xf32> to vector<1x16xf32>
    %85 = vector.broadcast %82 : vector<2x1xf32> to vector<2x16xf32>
    %86 = vector.broadcast %84 : vector<1x16xf32> to vector<2x16xf32>
    %87 = arith.mulf %85, %86 : vector<2x16xf32>
    %c1_49 = arith.constant 1 : index
    %c0_50 = arith.constant 0 : index
    %c0_51 = arith.constant 0 : index
    %88 = vector.load %arg10[%c1_49, %c0_50, %c0_51] : memref<3x1x16xf32, #tpu.memory_space<vmem>>, vector<1x1x16xf32>
    %89 = vector.shape_cast %88 : vector<1x1x16xf32> to vector<1x16xf32>
    %90 = vector.broadcast %89 : vector<1x16xf32> to vector<2x16xf32>
    %91 = arith.addf %87, %90 : vector<2x16xf32>
    %cst_52 = arith.constant 0.000000e+00 : f32
    %92 = vector.broadcast %cst_52 : f32 to vector<2x16xf32>
    %93 = arith.maximumf %91, %92 : vector<2x16xf32>
    %c1_53 = arith.constant 1 : index
    %c0_54 = arith.constant 0 : index
    %c0_55 = arith.constant 0 : index
    %94 = vector.load %arg11[%c1_53, %c0_54, %c0_55] : memref<3x16x16xf32, #tpu.memory_space<vmem>>, vector<1x16x16xf32>
    %95 = vector.shape_cast %94 : vector<1x16x16xf32> to vector<16x16xf32>
    %cst_56 = arith.constant dense<0.000000e+00> : vector<2x16xf32>
    %96 = tpu.matmul %93, %95, %cst_56 {dimension_numbers = #tpu.dot_dimension_numbers<[1], [0], [0], [1], [0, 0, 1, 1], [], []>} : vector<2x16xf32>, vector<16x16xf32>, vector<2x16xf32> -> vector<2x16xf32>
    %c1_57 = arith.constant 1 : index
    %c0_58 = arith.constant 0 : index
    %c0_59 = arith.constant 0 : index
    %97 = vector.load %arg12[%c1_57, %c0_58, %c0_59] : memref<3x1x16xf32, #tpu.memory_space<vmem>>, vector<1x1x16xf32>
    %98 = vector.shape_cast %97 : vector<1x1x16xf32> to vector<1x16xf32>
    %99 = vector.broadcast %98 : vector<1x16xf32> to vector<2x16xf32>
    %100 = arith.addf %96, %99 : vector<2x16xf32>
    %cst_60 = arith.constant 0.000000e+00 : f32
    %101 = vector.broadcast %cst_60 : f32 to vector<2x16xf32>
    %102 = arith.maximumf %100, %101 : vector<2x16xf32>
    %c2 = arith.constant 2 : index
    %c0_61 = arith.constant 0 : index
    %c0_62 = arith.constant 0 : index
    %103 = vector.load %arg8[%c2, %c0_61, %c0_62] : memref<3x2x1xf32, #tpu.memory_space<vmem>>, vector<1x2x1xf32>
    %104 = vector.shape_cast %103 : vector<1x2x1xf32> to vector<2x1xf32>
    %c2_63 = arith.constant 2 : index
    %c0_64 = arith.constant 0 : index
    %c0_65 = arith.constant 0 : index
    %105 = vector.load %arg9[%c2_63, %c0_64, %c0_65] : memref<3x1x16xf32, #tpu.memory_space<vmem>>, vector<1x1x16xf32>
    %106 = vector.shape_cast %105 : vector<1x1x16xf32> to vector<1x16xf32>
    %107 = vector.broadcast %104 : vector<2x1xf32> to vector<2x16xf32>
    %108 = vector.broadcast %106 : vector<1x16xf32> to vector<2x16xf32>
    %109 = arith.mulf %107, %108 : vector<2x16xf32>
    %c2_66 = arith.constant 2 : index
    %c0_67 = arith.constant 0 : index
    %c0_68 = arith.constant 0 : index
    %110 = vector.load %arg10[%c2_66, %c0_67, %c0_68] : memref<3x1x16xf32, #tpu.memory_space<vmem>>, vector<1x1x16xf32>
    %111 = vector.shape_cast %110 : vector<1x1x16xf32> to vector<1x16xf32>
    %112 = vector.broadcast %111 : vector<1x16xf32> to vector<2x16xf32>
    %113 = arith.addf %109, %112 : vector<2x16xf32>
    %cst_69 = arith.constant 0.000000e+00 : f32
    %114 = vector.broadcast %cst_69 : f32 to vector<2x16xf32>
    %115 = arith.maximumf %113, %114 : vector<2x16xf32>
    %c2_70 = arith.constant 2 : index
    %c0_71 = arith.constant 0 : index
    %c0_72 = arith.constant 0 : index
    %116 = vector.load %arg11[%c2_70, %c0_71, %c0_72] : memref<3x16x16xf32, #tpu.memory_space<vmem>>, vector<1x16x16xf32>
    %117 = vector.shape_cast %116 : vector<1x16x16xf32> to vector<16x16xf32>
    %cst_73 = arith.constant dense<0.000000e+00> : vector<2x16xf32>
    %118 = tpu.matmul %115, %117, %cst_73 {dimension_numbers = #tpu.dot_dimension_numbers<[1], [0], [0], [1], [0, 0, 1, 1], [], []>} : vector<2x16xf32>, vector<16x16xf32>, vector<2x16xf32> -> vector<2x16xf32>
    %c2_74 = arith.constant 2 : index
    %c0_75 = arith.constant 0 : index
    %c0_76 = arith.constant 0 : index
    %119 = vector.load %arg12[%c2_74, %c0_75, %c0_76] : memref<3x1x16xf32, #tpu.memory_space<vmem>>, vector<1x1x16xf32>
    %120 = vector.shape_cast %119 : vector<1x1x16xf32> to vector<1x16xf32>
    %121 = vector.broadcast %120 : vector<1x16xf32> to vector<2x16xf32>
    %122 = arith.addf %118, %121 : vector<2x16xf32>
    %cst_77 = arith.constant 0.000000e+00 : f32
    %123 = vector.broadcast %cst_77 : f32 to vector<2x16xf32>
    %124 = arith.maximumf %122, %123 : vector<2x16xf32>
    %c0_78 = arith.constant 0 : index
    %c0_79 = arith.constant 0 : index
    %125 = vector.load %arg14[%c0_78, %c0_79] : memref<1x64xf32, #tpu.memory_space<vmem>>, vector<1x64xf32>
    %126 = vector.shape_cast %125 : vector<1x64xf32> to vector<1x64xf32>
    %127 = vector.broadcast %126 : vector<1x64xf32> to vector<2x64xf32>
    %c0_80 = arith.constant 0 : index
    %c0_81 = arith.constant 0 : index
    %128 = vector.load %arg13[%c0_80, %c0_81] : memref<1328x64xf32, #tpu.memory_space<vmem>>, vector<128x64xf32>
    %129 = arith.truncf %128 : vector<128x64xf32> to vector<128x64xbf16>
    %130 = arith.truncf %51 : vector<2x128xf32> to vector<2x128xbf16>
    %cst_82 = arith.constant dense<0.000000e+00> : vector<2x64xf32>
    %131 = tpu.matmul %130, %129, %cst_82 {dimension_numbers = #tpu.dot_dimension_numbers<[1], [0], [0], [1], [0, 0, 1, 1], [], []>} : vector<2x128xbf16>, vector<128x64xbf16>, vector<2x64xf32> -> vector<2x64xf32>
    %132 = arith.addf %127, %131 : vector<2x64xf32>
    %c128 = arith.constant 128 : index
    %c0_83 = arith.constant 0 : index
    %133 = vector.load %arg13[%c128, %c0_83] : memref<1328x64xf32, #tpu.memory_space<vmem>>, vector<128x64xf32>
    %134 = arith.truncf %133 : vector<128x64xf32> to vector<128x64xbf16>
    %135 = arith.truncf %52 : vector<2x128xf32> to vector<2x128xbf16>
    %cst_84 = arith.constant dense<0.000000e+00> : vector<2x64xf32>
    %136 = tpu.matmul %135, %134, %cst_84 {dimension_numbers = #tpu.dot_dimension_numbers<[1], [0], [0], [1], [0, 0, 1, 1], [], []>} : vector<2x128xbf16>, vector<128x64xbf16>, vector<2x64xf32> -> vector<2x64xf32>
    %137 = arith.addf %132, %136 : vector<2x64xf32>
    %c256 = arith.constant 256 : index
    %c0_85 = arith.constant 0 : index
    %138 = vector.load %arg13[%c256, %c0_85] : memref<1328x64xf32, #tpu.memory_space<vmem>>, vector<128x64xf32>
    %139 = arith.truncf %138 : vector<128x64xf32> to vector<128x64xbf16>
    %140 = arith.truncf %24 : vector<2x128xf32> to vector<2x128xbf16>
    %cst_86 = arith.constant dense<0.000000e+00> : vector<2x64xf32>
    %141 = tpu.matmul %140, %139, %cst_86 {dimension_numbers = #tpu.dot_dimension_numbers<[1], [0], [0], [1], [0, 0, 1, 1], [], []>} : vector<2x128xbf16>, vector<128x64xbf16>, vector<2x64xf32> -> vector<2x64xf32>
    %142 = arith.addf %137, %141 : vector<2x64xf32>
    %c384 = arith.constant 384 : index
    %c0_87 = arith.constant 0 : index
    %143 = vector.load %arg13[%c384, %c0_87] : memref<1328x64xf32, #tpu.memory_space<vmem>>, vector<128x64xf32>
    %144 = arith.truncf %143 : vector<128x64xf32> to vector<128x64xbf16>
    %145 = arith.truncf %46 : vector<2x128xf32> to vector<2x128xbf16>
    %cst_88 = arith.constant dense<0.000000e+00> : vector<2x64xf32>
    %146 = tpu.matmul %145, %144, %cst_88 {dimension_numbers = #tpu.dot_dimension_numbers<[1], [0], [0], [1], [0, 0, 1, 1], [], []>} : vector<2x128xbf16>, vector<128x64xbf16>, vector<2x64xf32> -> vector<2x64xf32>
    %147 = arith.addf %142, %146 : vector<2x64xf32>
    %c512 = arith.constant 512 : index
    %c0_89 = arith.constant 0 : index
    %148 = vector.load %arg13[%c512, %c0_89] : memref<1328x64xf32, #tpu.memory_space<vmem>>, vector<128x64xf32>
    %149 = arith.truncf %148 : vector<128x64xf32> to vector<128x64xbf16>
    %150 = arith.truncf %53 : vector<2x128xf32> to vector<2x128xbf16>
    %cst_90 = arith.constant dense<0.000000e+00> : vector<2x64xf32>
    %151 = tpu.matmul %150, %149, %cst_90 {dimension_numbers = #tpu.dot_dimension_numbers<[1], [0], [0], [1], [0, 0, 1, 1], [], []>} : vector<2x128xbf16>, vector<128x64xbf16>, vector<2x64xf32> -> vector<2x64xf32>
    %152 = arith.addf %147, %151 : vector<2x64xf32>
    %c640 = arith.constant 640 : index
    %c0_91 = arith.constant 0 : index
    %153 = vector.load %arg13[%c640, %c0_91] : memref<1328x64xf32, #tpu.memory_space<vmem>>, vector<128x64xf32>
    %154 = arith.truncf %153 : vector<128x64xf32> to vector<128x64xbf16>
    %155 = arith.truncf %54 : vector<2x128xf32> to vector<2x128xbf16>
    %cst_92 = arith.constant dense<0.000000e+00> : vector<2x64xf32>
    %156 = tpu.matmul %155, %154, %cst_92 {dimension_numbers = #tpu.dot_dimension_numbers<[1], [0], [0], [1], [0, 0, 1, 1], [], []>} : vector<2x128xbf16>, vector<128x64xbf16>, vector<2x64xf32> -> vector<2x64xf32>
    %157 = arith.addf %152, %156 : vector<2x64xf32>
    %c768 = arith.constant 768 : index
    %c0_93 = arith.constant 0 : index
    %158 = vector.load %arg13[%c768, %c0_93] : memref<1328x64xf32, #tpu.memory_space<vmem>>, vector<128x64xf32>
    %159 = arith.truncf %158 : vector<128x64xf32> to vector<128x64xbf16>
    %160 = arith.truncf %55 : vector<2x128xf32> to vector<2x128xbf16>
    %cst_94 = arith.constant dense<0.000000e+00> : vector<2x64xf32>
    %161 = tpu.matmul %160, %159, %cst_94 {dimension_numbers = #tpu.dot_dimension_numbers<[1], [0], [0], [1], [0, 0, 1, 1], [], []>} : vector<2x128xbf16>, vector<128x64xbf16>, vector<2x64xf32> -> vector<2x64xf32>
    %162 = arith.addf %157, %161 : vector<2x64xf32>
    %c896 = arith.constant 896 : index
    %c0_95 = arith.constant 0 : index
    %163 = vector.load %arg13[%c896, %c0_95] : memref<1328x64xf32, #tpu.memory_space<vmem>>, vector<128x64xf32>
    %164 = arith.truncf %163 : vector<128x64xf32> to vector<128x64xbf16>
    %165 = arith.truncf %56 : vector<2x128xf32> to vector<2x128xbf16>
    %cst_96 = arith.constant dense<0.000000e+00> : vector<2x64xf32>
    %166 = tpu.matmul %165, %164, %cst_96 {dimension_numbers = #tpu.dot_dimension_numbers<[1], [0], [0], [1], [0, 0, 1, 1], [], []>} : vector<2x128xbf16>, vector<128x64xbf16>, vector<2x64xf32> -> vector<2x64xf32>
    %167 = arith.addf %162, %166 : vector<2x64xf32>
    %c1024 = arith.constant 1024 : index
    %c0_97 = arith.constant 0 : index
    %168 = vector.load %arg13[%c1024, %c0_97] : memref<1328x64xf32, #tpu.memory_space<vmem>>, vector<128x64xf32>
    %169 = arith.truncf %168 : vector<128x64xf32> to vector<128x64xbf16>
    %170 = arith.truncf %57 : vector<2x128xf32> to vector<2x128xbf16>
    %cst_98 = arith.constant dense<0.000000e+00> : vector<2x64xf32>
    %171 = tpu.matmul %170, %169, %cst_98 {dimension_numbers = #tpu.dot_dimension_numbers<[1], [0], [0], [1], [0, 0, 1, 1], [], []>} : vector<2x128xbf16>, vector<128x64xbf16>, vector<2x64xf32> -> vector<2x64xf32>
    %172 = arith.addf %167, %171 : vector<2x64xf32>
    %c1152 = arith.constant 1152 : index
    %c0_99 = arith.constant 0 : index
    %173 = vector.load %arg13[%c1152, %c0_99] : memref<1328x64xf32, #tpu.memory_space<vmem>>, vector<128x64xf32>
    %174 = arith.truncf %173 : vector<128x64xf32> to vector<128x64xbf16>
    %175 = arith.truncf %58 : vector<2x128xf32> to vector<2x128xbf16>
    %cst_100 = arith.constant dense<0.000000e+00> : vector<2x64xf32>
    %176 = tpu.matmul %175, %174, %cst_100 {dimension_numbers = #tpu.dot_dimension_numbers<[1], [0], [0], [1], [0, 0, 1, 1], [], []>} : vector<2x128xbf16>, vector<128x64xbf16>, vector<2x64xf32> -> vector<2x64xf32>
    %177 = arith.addf %172, %176 : vector<2x64xf32>
    %c1280 = arith.constant 1280 : index
    %c0_101 = arith.constant 0 : index
    %178 = vector.load %arg13[%c1280, %c0_101] : memref<1328x64xf32, #tpu.memory_space<vmem>>, vector<16x64xf32>
    %179 = arith.truncf %178 : vector<16x64xf32> to vector<16x64xbf16>
    %180 = arith.truncf %80 : vector<2x16xf32> to vector<2x16xbf16>
    %cst_102 = arith.constant dense<0.000000e+00> : vector<2x64xf32>
    %181 = tpu.matmul %180, %179, %cst_102 {dimension_numbers = #tpu.dot_dimension_numbers<[1], [0], [0], [1], [0, 0, 1, 1], [], []>} : vector<2x16xbf16>, vector<16x64xbf16>, vector<2x64xf32> -> vector<2x64xf32>
    %182 = arith.addf %177, %181 : vector<2x64xf32>
    %c1296 = arith.constant 1296 : index
    %c0_103 = arith.constant 0 : index
    %183 = vector.load %arg13[%c1296, %c0_103] : memref<1328x64xf32, #tpu.memory_space<vmem>>, vector<16x64xf32>
    %184 = arith.truncf %183 : vector<16x64xf32> to vector<16x64xbf16>
    %185 = arith.truncf %102 : vector<2x16xf32> to vector<2x16xbf16>
    %cst_104 = arith.constant dense<0.000000e+00> : vector<2x64xf32>
    %186 = tpu.matmul %185, %184, %cst_104 {dimension_numbers = #tpu.dot_dimension_numbers<[1], [0], [0], [1], [0, 0, 1, 1], [], []>} : vector<2x16xbf16>, vector<16x64xbf16>, vector<2x64xf32> -> vector<2x64xf32>
    %187 = arith.addf %182, %186 : vector<2x64xf32>
    %c1312 = arith.constant 1312 : index
    %c0_105 = arith.constant 0 : index
    %188 = vector.load %arg13[%c1312, %c0_105] : memref<1328x64xf32, #tpu.memory_space<vmem>>, vector<16x64xf32>
    %189 = arith.truncf %188 : vector<16x64xf32> to vector<16x64xbf16>
    %190 = arith.truncf %124 : vector<2x16xf32> to vector<2x16xbf16>
    %cst_106 = arith.constant dense<0.000000e+00> : vector<2x64xf32>
    %191 = tpu.matmul %190, %189, %cst_106 {dimension_numbers = #tpu.dot_dimension_numbers<[1], [0], [0], [1], [0, 0, 1, 1], [], []>} : vector<2x16xbf16>, vector<16x64xbf16>, vector<2x64xf32> -> vector<2x64xf32>
    %192 = arith.addf %187, %191 : vector<2x64xf32>
    %cst_107 = arith.constant 0.000000e+00 : f32
    %193 = vector.broadcast %cst_107 : f32 to vector<2x64xf32>
    %194 = arith.maximumf %192, %193 : vector<2x64xf32>
    %c0_108 = arith.constant 0 : index
    %c0_109 = arith.constant 0 : index
    %195 = vector.load %arg15[%c0_108, %c0_109] : memref<64x1xf32, #tpu.memory_space<vmem>>, vector<64x1xf32>
    %cst_110 = arith.constant dense<0.000000e+00> : vector<2x1xf32>
    %196 = tpu.matmul %194, %195, %cst_110 {dimension_numbers = #tpu.dot_dimension_numbers<[1], [0], [0], [1], [0, 0, 1, 1], [], []>} : vector<2x64xf32>, vector<64x1xf32>, vector<2x1xf32> -> vector<2x1xf32>
    %c0_111 = arith.constant 0 : index
    %c0_112 = arith.constant 0 : index
    %197 = vector.load %arg16[%c0_111, %c0_112] : memref<1x1xf32, #tpu.memory_space<vmem>>, vector<1x1xf32>
    %198 = vector.broadcast %197 : vector<1x1xf32> to vector<2x1xf32>
    %199 = arith.addf %196, %198 : vector<2x1xf32>
    %c0_113 = arith.constant 0 : index
    %c0_114 = arith.constant 0 : index
    %200 = vector.load %arg17[%c0_113, %c0_114] : memref<2x1xf32, #tpu.memory_space<vmem>>, vector<2x1xf32>
    tpu.vector_store %arg17[%c0_113, %c0_114], %199 {strides = array<i32>} : memref<2x1xf32, #tpu.memory_space<vmem>>, vector<2x1xf32>,
    return
  }
  func.func @transform_0(%arg0: i32) -> (i32, i32, i32) {
    %c0_i32 = arith.constant 0 : i32
    %c0_i32_0 = arith.constant 0 : i32
    %c0_i32_1 = arith.constant 0 : i32
    return %c0_i32, %arg0, %c0_i32_0 : i32, i32, i32
  }
  func.func @transform_1(%arg0: i32) -> (i32, i32, i32) {
    %c0_i32 = arith.constant 0 : i32
    %c0_i32_0 = arith.constant 0 : i32
    %c0_i32_1 = arith.constant 0 : i32
    return %c0_i32, %arg0, %c0_i32_0 : i32, i32, i32
  }
  func.func @transform_2(%arg0: i32) -> (i32, i32, i32) {
    %c0_i32 = arith.constant 0 : i32
    %c0_i32_0 = arith.constant 0 : i32
    %c0_i32_1 = arith.constant 0 : i32
    return %c0_i32, %arg0, %c0_i32_0 : i32, i32, i32
  }
  func.func @transform_3(%arg0: i32) -> (i32, i32) {
    %c0_i32 = arith.constant 0 : i32
    %c0_i32_0 = arith.constant 0 : i32
    %c0_i32_1 = arith.constant 0 : i32
    return %c0_i32, %c0_i32_0 : i32, i32
  }
  func.func @transform_4(%arg0: i32) -> (i32, i32) {
    %c0_i32 = arith.constant 0 : i32
    %c0_i32_0 = arith.constant 0 : i32
    %c0_i32_1 = arith.constant 0 : i32
    return %c0_i32, %c0_i32_0 : i32, i32
  }
  func.func @transform_5(%arg0: i32) -> (i32, i32) {
    %c0_i32 = arith.constant 0 : i32
    %c0_i32_0 = arith.constant 0 : i32
    %c0_i32_1 = arith.constant 0 : i32
    return %c0_i32, %c0_i32_0 : i32, i32
  }
  func.func @transform_6(%arg0: i32) -> (i32, i32) {
    %c0_i32 = arith.constant 0 : i32
    %c0_i32_0 = arith.constant 0 : i32
    %c0_i32_1 = arith.constant 0 : i32
    return %c0_i32, %c0_i32_0 : i32, i32
  }
  func.func @transform_7(%arg0: i32) -> (i32, i32, i32) {
    %c0_i32 = arith.constant 0 : i32
    %c0_i32_0 = arith.constant 0 : i32
    %c0_i32_1 = arith.constant 0 : i32
    return %c0_i32, %arg0, %c0_i32_0 : i32, i32, i32
  }
  func.func @transform_8(%arg0: i32) -> (i32, i32, i32) {
    %c0_i32 = arith.constant 0 : i32
    %c0_i32_0 = arith.constant 0 : i32
    %c0_i32_1 = arith.constant 0 : i32
    %c0_i32_2 = arith.constant 0 : i32
    return %c0_i32, %c0_i32_0, %c0_i32_1 : i32, i32, i32
  }
  func.func @transform_9(%arg0: i32) -> (i32, i32, i32) {
    %c0_i32 = arith.constant 0 : i32
    %c0_i32_0 = arith.constant 0 : i32
    %c0_i32_1 = arith.constant 0 : i32
    %c0_i32_2 = arith.constant 0 : i32
    return %c0_i32, %c0_i32_0, %c0_i32_1 : i32, i32, i32
  }
  func.func @transform_10(%arg0: i32) -> (i32, i32, i32) {
    %c0_i32 = arith.constant 0 : i32
    %c0_i32_0 = arith.constant 0 : i32
    %c0_i32_1 = arith.constant 0 : i32
    %c0_i32_2 = arith.constant 0 : i32
    return %c0_i32, %c0_i32_0, %c0_i32_1 : i32, i32, i32
  }
  func.func @transform_11(%arg0: i32) -> (i32, i32, i32) {
    %c0_i32 = arith.constant 0 : i32
    %c0_i32_0 = arith.constant 0 : i32
    %c0_i32_1 = arith.constant 0 : i32
    %c0_i32_2 = arith.constant 0 : i32
    return %c0_i32, %c0_i32_0, %c0_i32_1 : i32, i32, i32
  }
  func.func @transform_12(%arg0: i32) -> (i32, i32) {
    %c0_i32 = arith.constant 0 : i32
    %c0_i32_0 = arith.constant 0 : i32
    %c0_i32_1 = arith.constant 0 : i32
    return %c0_i32, %c0_i32_0 : i32, i32
  }
  func.func @transform_13(%arg0: i32) -> (i32, i32) {
    %c0_i32 = arith.constant 0 : i32
    %c0_i32_0 = arith.constant 0 : i32
    %c0_i32_1 = arith.constant 0 : i32
    return %c0_i32, %c0_i32_0 : i32, i32
  }
  func.func @transform_14(%arg0: i32) -> (i32, i32) {
    %c0_i32 = arith.constant 0 : i32
    %c0_i32_0 = arith.constant 0 : i32
    %c0_i32_1 = arith.constant 0 : i32
    return %c0_i32, %c0_i32_0 : i32, i32
  }
  func.func @transform_15(%arg0: i32) -> (i32, i32) {
    %c0_i32 = arith.constant 0 : i32
    %c0_i32_0 = arith.constant 0 : i32
    %c0_i32_1 = arith.constant 0 : i32
    return %c0_i32, %c0_i32_0 : i32, i32
  }
  func.func @transform_16(%arg0: i32) -> (i32, i32) {
    %c0_i32 = arith.constant 0 : i32
    %c0_i32_0 = arith.constant 0 : i32
    return %arg0, %c0_i32 : i32, i32
  }
}

</mosaic_0001>

<llo_original>
// kernel: forward.4
$region0: #{forward.4}
  #allocation0 [shape = 'u32[]', space=smem, size = 0x4, offset = 0x4, fixed_abs, tag = 'smem constant byte address 0x4 - core index']
  #allocation1 [shape = 'u32[144,128]{1,0:T(1,128)}', space=vmem, size = 0x12000, scoped, tag = 'internal scratch']
  %s0 = inlined_call_operand.vmem [shape: f32[8,2,384], index: 0, kind: input, shape index: {}]
  %s1 = inlined_call_operand.vmem [shape: f32[128,384], index: 1, kind: input, shape index: {}]
  %s2 = inlined_call_operand.vmem [shape: f32[1,384], index: 2, kind: input, shape index: {}]
  %s3 = inlined_call_operand.vmem [shape: f32[8,2,128], index: 3, kind: output, shape index: {}]
  %s4 = sld [smem:[#allocation0]]
  $region22: #{forward.4} parent=0
    _
  %s6 = ssub.s32 1, %s4
  %s7 = scalar_select 0, %s6, %s4
  // Predicated region
  $region2: #{forward.4} parent=0 // pred_check
    _
  $region3: #{forward.4} parent=0 // pred_check_branch
    %9 = sbr.rel (0) target = $region5
  $region4: #{forward.4} parent=0 // pred_region
    _
  $region5: #{forward.4} parent=0 // pred_fallthru
    _
  // Predicated region
  $region6: #{forward.4} parent=0 // pred_check
    _
  $region7: #{forward.4} parent=0 // pred_check_branch
    %11 = sbr.rel (0) target = $region9
  $region8: #{forward.4} parent=0 // pred_region
    _
  $region9: #{forward.4} parent=0 // pred_fallthru
    _
  // Predicated region
  $region10: #{forward.4} parent=0 // pred_check
    _
  $region11: #{forward.4} parent=0 // pred_check_branch
    %13 = sbr.rel (0) target = $region13
  $region12: #{forward.4} parent=0 // pred_region
    _
  $region13: #{forward.4} parent=0 // pred_fallthru
    _
  %v15 = vld [vmem:[%s1] sm:$0xff]
  %v16 = vld [vmem:[%s1 + $0x8] sm:$0xff]
  %v17 = vld [vmem:[%s1 + $0x10] sm:$0xff]
  %v18 = vld [vmem:[%s1 + $0x18] sm:$0xff]
  %v19 = vld [vmem:[%s1 + $0x20] sm:$0xff]
  %v20 = vld [vmem:[%s1 + $0x28] sm:$0xff]
  %v21 = vld [vmem:[%s1 + $0x30] sm:$0xff]
  %v22 = vld [vmem:[%s1 + $0x38] sm:$0xff]
  %v23 = vld [vmem:[%s1 + $0x40] sm:$0xff]
  %v24 = vld [vmem:[%s1 + $0x48] sm:$0xff]
  %v25 = vld [vmem:[%s1 + $0x50] sm:$0xff]
  %v26 = vld [vmem:[%s1 + $0x58] sm:$0xff]
  %v27 = vld [vmem:[%s1 + $0x60] sm:$0xff]
  %v28 = vld [vmem:[%s1 + $0x68] sm:$0xff]
  %v29 = vld [vmem:[%s1 + $0x70] sm:$0xff]
  %v30 = vld [vmem:[%s1 + $0x78] sm:$0xff]
  %v31 = vld [vmem:[%s1 + $0x80] sm:$0xff]
  %v32 = vld [vmem:[%s1 + $0x88] sm:$0xff]
  %v33 = vld [vmem:[%s1 + $0x90] sm:$0xff]
  %v34 = vld [vmem:[%s1 + $0x98] sm:$0xff]
  %v35 = vld [vmem:[%s1 + $0xa0] sm:$0xff]
  %v36 = vld [vmem:[%s1 + $0xa8] sm:$0xff]
  %v37 = vld [vmem:[%s1 + $0xb0] sm:$0xff]
  %v38 = vld [vmem:[%s1 + $0xb8] sm:$0xff]
  %v39 = vld [vmem:[%s1 + $0xc0] sm:$0xff]
  %v40 = vld [vmem:[%s1 + $0xc8] sm:$0xff]
  %v41 = vld [vmem:[%s1 + $0xd0] sm:$0xff]
  %v42 = vld [vmem:[%s1 + $0xd8] sm:$0xff]
  %v43 = vld [vmem:[%s1 + $0xe0] sm:$0xff]
  %v44 = vld [vmem:[%s1 + $0xe8] sm:$0xff]
  %v45 = vld [vmem:[%s1 + $0xf0] sm:$0xff]
  %v46 = vld [vmem:[%s1 + $0xf8] sm:$0xff]
  %v47 = vld [vmem:[%s1 + $0x100] sm:$0xff]
  %v48 = vld [vmem:[%s1 + $0x108] sm:$0xff]
  %v49 = vld [vmem:[%s1 + $0x110] sm:$0xff]
  %v50 = vld [vmem:[%s1 + $0x118] sm:$0xff]
  %v51 = vld [vmem:[%s1 + $0x120] sm:$0xff]
  %v52 = vld [vmem:[%s1 + $0x128] sm:$0xff]
  %v53 = vld [vmem:[%s1 + $0x130] sm:$0xff]
  %v54 = vld [vmem:[%s1 + $0x138] sm:$0xff]
  %v55 = vld [vmem:[%s1 + $0x140] sm:$0xff]
  %v56 = vld [vmem:[%s1 + $0x148] sm:$0xff]
  %v57 = vld [vmem:[%s1 + $0x150] sm:$0xff]
  %v58 = vld [vmem:[%s1 + $0x158] sm:$0xff]
  %v59 = vld [vmem:[%s1 + $0x160] sm:$0xff]
  %v60 = vld [vmem:[%s1 + $0x168] sm:$0xff]
  %v61 = vld [vmem:[%s1 + $0x170] sm:$0xff]
  %v62 = vld [vmem:[%s1 + $0x178] sm:$0xff]
  %v63 = vpack.c.bf16 %v18, %v15
  %v64 = vpack.c.bf16 %v19, %v16
  %v65 = vpack.c.bf16 %v20, %v17
  %v66 = vpack.c.bf16 %v24, %v21
  %v67 = vpack.c.bf16 %v25, %v22
  %v68 = vpack.c.bf16 %v26, %v23
  %v69 = vpack.c.bf16 %v30, %v27
  %v70 = vpack.c.bf16 %v31, %v28
  %v71 = vpack.c.bf16 %v32, %v29
  %v72 = vpack.c.bf16 %v36, %v33
  %v73 = vpack.c.bf16 %v37, %v34
  %v74 = vpack.c.bf16 %v38, %v35
  %v75 = vpack.c.bf16 %v42, %v39
  %v76 = vpack.c.bf16 %v43, %v40
  %v77 = vpack.c.bf16 %v44, %v41
  %v78 = vpack.c.bf16 %v48, %v45
  %v79 = vpack.c.bf16 %v49, %v46
  %v80 = vpack.c.bf16 %v50, %v47
  %v81 = vpack.c.bf16 %v54, %v51
  %v82 = vpack.c.bf16 %v55, %v52
  %v83 = vpack.c.bf16 %v56, %v53
  %v84 = vpack.c.bf16 %v60, %v57
  %v85 = vpack.c.bf16 %v61, %v58
  %v86 = vpack.c.bf16 %v62, %v59
  %v87 = vld [vmem:[%s2] sm:$0x7]
  %v89 = vlaneseq
  %v90 = vshrl.u32 %v89, 7
  %v91 = vsub.s32 0, %v90
  %v92 = vrot.slane %v87, %v91
  %v93 = vlaneseq
  %v94 = vshrl.u32 %v93, 7
  %v95 = vsub.s32 1, %v94
  %v96 = vrot.slane %v87, %v95
  %v97 = vlaneseq
  %v98 = vshrl.u32 %v97, 7
  %v99 = vsub.s32 2, %v98
  %v100 = vrot.slane %v87, %v99
  %v104 = vld [vmem:[%s0] sm:$0x3f]
  %105 = vmatprep.subr.bf16.mxu0 %v64
  %106 = vmatpush1.bf16.msra.mxu0 %v63
  %107 = vmatprep.subr.bf16.mxu0 %v67
  %108 = vmatpush1.bf16.msra.mxu0 %v66
  %109 = vmatprep.subr.bf16.mxu0 %v70
  %110 = vmatpush1.bf16.msra.mxu0 %v69
  %111 = vmatprep.subr.bf16.mxu0 %v73
  %112 = vmatpush1.bf16.msra.mxu0 %v72
  %113 = vmatprep.subr.bf16.mxu0 %v76
  %114 = vmatpush1.bf16.msra.mxu0 %v75
  %115 = vmatprep.subr.bf16.mxu0 %v79
  %116 = vmatpush1.bf16.msra.mxu0 %v78
  %117 = vmatprep.subr.bf16.mxu0 %v82
  %118 = vmatpush1.bf16.msra.mxu0 %v81
  %119 = vmatprep.subr.bf16.mxu0 %v85
  %120 = vmatpush1.bf16.msra.mxu0 %v84
  %121 = vmatprep.subr.bf16.mxu0 0
  %122 = vmatpush1.bf16.msra.mxu0 0
  %123 = vmatprep.subr.bf16.mxu0 0
  %124 = vmatpush1.bf16.msra.mxu0 0
  %125 = vmatprep.subr.bf16.mxu0 0
  %126 = vmatpush1.bf16.msra.mxu0 0
  %127 = vmatprep.subr.bf16.mxu0 0
  %128 = vmatpush1.bf16.msra.mxu0 0
  %129 = vmatprep.subr.bf16.mxu0 0
  %130 = vmatpush1.bf16.msra.mxu0 0
  %131 = vmatprep.subr.bf16.mxu0 0
  %132 = vmatpush1.bf16.msra.mxu0 0
  %133 = vmatprep.subr.bf16.mxu0 0
  %134 = vmatpush1.bf16.msra.mxu0 0
  %135 = vmatprep.subr.bf16.mxu0 0
  %136 = vmatpush1.bf16.msra.mxu0 0
  %137 = vmatprep.mubr.bf16.mxu0 0
  %138 = vmatmul.mubr.bf16.gmra.mrb[0].mxu0 0
  %v139 = vpop.f32.mrb[0].mxu0
  %v140 = vadd.f32 %v92, %v139
  %v141 = vpop.f32.mrb[0].mxu0
  %v142 = vadd.f32 %v96, %v141
  %v143 = vpop.f32.mrb[0].mxu0
  %v144 = vpop.f32.mrb[0].mxu0
  %145 = vdwg.mxu0
  %146 = vmatprep.subr.bf16.mxu0 0
  %147 = vmatpush1.bf16.msra.mxu0 %v65
  %148 = vmatprep.subr.bf16.mxu0 0
  %149 = vmatpush1.bf16.msra.mxu0 %v68
  %150 = vmatprep.subr.bf16.mxu0 0
  %151 = vmatpush1.bf16.msra.mxu0 %v71
  %152 = vmatprep.subr.bf16.mxu0 0
  %153 = vmatpush1.bf16.msra.mxu0 %v74
  %154 = vmatprep.subr.bf16.mxu0 0
  %155 = vmatpush1.bf16.msra.mxu0 %v77
  %156 = vmatprep.subr.bf16.mxu0 0
  %157 = vmatpush1.bf16.msra.mxu0 %v80
  %158 = vmatprep.subr.bf16.mxu0 0
  %159 = vmatpush1.bf16.msra.mxu0 %v83
  %160 = vmatprep.subr.bf16.mxu0 0
  %161 = vmatpush1.bf16.msra.mxu0 %v86
  %162 = vmatprep.subr.bf16.mxu0 0
  %163 = vmatpush1.bf16.msra.mxu0 0
  %164 = vmatprep.subr.bf16.mxu0 0
  %165 = vmatpush1.bf16.msra.mxu0 0
  %166 = vmatprep.subr.bf16.mxu0 0
  %167 = vmatpush1.bf16.msra.mxu0 0
  %168 = vmatprep.subr.bf16.mxu0 0
  %169 = vmatpush1.bf16.msra.mxu0 0
  %170 = vmatprep.subr.bf16.mxu0 0
  %171 = vmatpush1.bf16.msra.mxu0 0
  %172 = vmatprep.subr.bf16.mxu0 0
  %173 = vmatpush1.bf16.msra.mxu0 0
  %174 = vmatprep.subr.bf16.mxu0 0
  %175 = vmatpush1.bf16.msra.mxu0 0
  %176 = vmatprep.subr.bf16.mxu0 0
  %177 = vmatpush1.bf16.msra.mxu0 0
  %178 = vmatprep.mubr.bf16.mxu0 0
  %179 = vmatmul.mubr.bf16.gmra.mrb[0].mxu0 0
  %v180 = vpop.f32.mrb[0].mxu0
  %v181 = vadd.f32 %v100, %v180
  %v182 = vpop.f32.mrb[0].mxu0
  %v183 = vpop.f32.mrb[0].mxu0
  %v184 = vpop.f32.mrb[0].mxu0
  %185 = vdwg.mxu0
  %v188 = vcombine.low %v140, %v142
  %v190 = vunpack.c.l.s4 1983009808
  %v191 = vunpack.c.0.s8 %v190
  %v192 = vlaneseq
  %v193 = vshrl.u32 %v192, 7
  %v194 = vsub.s32 %v191, %v193
  %v195 = vrot.slane %v188, %v194
  %v197 = vadd.f32 %v104, %v195
  %v198 = vxor.u32 %v197, 2147483648
  %v199 = vmul.f32 %v198, 1.442695
  %v200 = vpow.pop %v199
  %v201 = vadd.f32 %v200, 1.0
  %v202 = vrcp.pop %v201
  %v203 = vmul.f32 1.0, %v202
  %v204 = vmul.f32 %v203, %v181
  %v206 = vrot.slane %v104, 4
  %v208 = vadd.f32 %v206, %v204
  %v209 = vtanh.pop %v208
  %v211 = vrot.slane %v203, 2
  %v213 = vsub.f32 1.0, %v211
  %v214 = vmul.f32 %v213, %v209
  %v215 = vmul.f32 %v211, 0.0
  %v216 = vadd.f32 %v214, %v215
  %217 = vst [vmem:[%s3] sm:$0x3] %v216
  %s218 = scalar_lea.vmem %s0, 6
  %v219 = vld [vmem:[%s218] sm:$0x3f]
  %v220 = vpack.c.bf16 %v216, %v216
  %221 = vmatprep.subr.bf16.mxu0 %v64
  %222 = vmatpush1.bf16.msra.mxu0 %v63
  %223 = vmatprep.subr.bf16.mxu0 %v67
  %224 = vmatpush1.bf16.msra.mxu0 %v66
  %225 = vmatprep.subr.bf16.mxu0 %v70
  %226 = vmatpush1.bf16.msra.mxu0 %v69
  %227 = vmatprep.subr.bf16.mxu0 %v73
  %228 = vmatpush1.bf16.msra.mxu0 %v72
  %229 = vmatprep.subr.bf16.mxu0 %v76
  %230 = vmatpush1.bf16.msra.mxu0 %v75
  %231 = vmatprep.subr.bf16.mxu0 %v79
  %232 = vmatpush1.bf16.msra.mxu0 %v78
  %233 = vmatprep.subr.bf16.mxu0 %v82
  %234 = vmatpush1.bf16.msra.mxu0 %v81
  %235 = vmatprep.subr.bf16.mxu0 %v85
  %236 = vmatpush1.bf16.msra.mxu0 %v84
  %237 = vmatprep.subr.bf16.mxu0 0
  %238 = vmatpush1.bf16.msra.mxu0 0
  %239 = vmatprep.subr.bf16.mxu0 0
  %240 = vmatpush1.bf16.msra.mxu0 0
  %241 = vmatprep.subr.bf16.mxu0 0
  %242 = vmatpush1.bf16.msra.mxu0 0
  %243 = vmatprep.subr.bf16.mxu0 0
  %244 = vmatpush1.bf16.msra.mxu0 0
  %245 = vmatprep.subr.bf16.mxu0 0
  %246 = vmatpush1.bf16.msra.mxu0 0
  %247 = vmatprep.subr.bf16.mxu0 0
  %248 = vmatpush1.bf16.msra.mxu0 0
  %249 = vmatprep.subr.bf16.mxu0 0
  %250 = vmatpush1.bf16.msra.mxu0 0
  %251 = vmatprep.subr.bf16.mxu0 0
  %252 = vmatpush1.bf16.msra.mxu0 0
  %253 = vmatprep.mubr.bf16.mxu0 0
  %254 = vmatmul.mubr.bf16.gmra.mrb[0].mxu0 %v220
  %v255 = vpop.f32.mrb[0].mxu0
  %v256 = vadd.f32 %v92, %v255
  %v257 = vpop.f32.mrb[0].mxu0
  %v258 = vadd.f32 %v96, %v257
  %v259 = vpop.f32.mrb[0].mxu0
  %v260 = vpop.f32.mrb[0].mxu0
  %261 = vdwg.mxu0
  %262 = vmatprep.subr.bf16.mxu0 0
  %263 = vmatpush1.bf16.msra.mxu0 %v65
  %264 = vmatprep.subr.bf16.mxu0 0
  %265 = vmatpush1.bf16.msra.mxu0 %v68
  %266 = vmatprep.subr.bf16.mxu0 0
  %267 = vmatpush1.bf16.msra.mxu0 %v71
  %268 = vmatprep.subr.bf16.mxu0 0
  %269 = vmatpush1.bf16.msra.mxu0 %v74
  %270 = vmatprep.subr.bf16.mxu0 0
  %271 = vmatpush1.bf16.msra.mxu0 %v77
  %272 = vmatprep.subr.bf16.mxu0 0
  %273 = vmatpush1.bf16.msra.mxu0 %v80
  %274 = vmatprep.subr.bf16.mxu0 0
  %275 = vmatpush1.bf16.msra.mxu0 %v83
  %276 = vmatprep.subr.bf16.mxu0 0
  %277 = vmatpush1.bf16.msra.mxu0 %v86
  %278 = vmatprep.subr.bf16.mxu0 0
  %279 = vmatpush1.bf16.msra.mxu0 0
  %280 = vmatprep.subr.bf16.mxu0 0
  %281 = vmatpush1.bf16.msra.mxu0 0
  %282 = vmatprep.subr.bf16.mxu0 0
  %283 = vmatpush1.bf16.msra.mxu0 0
  %284 = vmatprep.subr.bf16.mxu0 0
  %285 = vmatpush1.bf16.msra.mxu0 0
  %286 = vmatprep.subr.bf16.mxu0 0
  %287 = vmatpush1.bf16.msra.mxu0 0
  %288 = vmatprep.subr.bf16.mxu0 0
  %289 = vmatpush1.bf16.msra.mxu0 0
  %290 = vmatprep.subr.bf16.mxu0 0
  %291 = vmatpush1.bf16.msra.mxu0 0
  %292 = vmatprep.subr.bf16.mxu0 0
  %293 = vmatpush1.bf16.msra.mxu0 0
  %294 = vmatprep.mubr.bf16.mxu0 0
  %295 = vmatmul.mubr.bf16.gmra.mrb[0].mxu0 %v220
  %v296 = vpop.f32.mrb[0].mxu0
  %v297 = vadd.f32 %v100, %v296
  %v298 = vpop.f32.mrb[0].mxu0
  %v299 = vpop.f32.mrb[0].mxu0
  %v300 = vpop.f32.mrb[0].mxu0
  %301 = vdwg.mxu0
  %v304 = vcombine.low %v256, %v258
  %v306 = vunpack.c.l.s4 1983009808
  %v307 = vunpack.c.0.s8 %v306
  %v308 = vlaneseq
  %v309 = vshrl.u32 %v308, 7
  %v310 = vsub.s32 %v307, %v309
  %v311 = vrot.slane %v304, %v310
  %v313 = vadd.f32 %v219, %v311
  %v314 = vxor.u32 %v313, 2147483648
  %v315 = vmul.f32 %v314, 1.442695
  %v316 = vpow.pop %v315
  %v317 = vadd.f32 %v316, 1.0
  %v318 = vrcp.pop %v317
  %v319 = vmul.f32 1.0, %v318
  %v320 = vmul.f32 %v319, %v297
  %v322 = vrot.slane %v219, 4
  %v324 = vadd.f32 %v322, %v320
  %v325 = vtanh.pop %v324
  %v327 = vrot.slane %v319, 2
  %v329 = vsub.f32 1.0, %v327
  %v330 = vmul.f32 %v329, %v325
  %v331 = vmul.f32 %v327, %v216
  %v332 = vadd.f32 %v330, %v331
  %s333 = scalar_lea.vmem %s3, 2
  %334 = vst [vmem:[%s333] sm:$0x3] %v332
  %s335 = scalar_lea.vmem %s0, 12
  %v336 = vld [vmem:[%s335] sm:$0x3f]
  %v337 = vpack.c.bf16 %v332, %v332
  %338 = vmatprep.subr.bf16.mxu0 %v64
  %339 = vmatpush1.bf16.msra.mxu0 %v63
  %340 = vmatprep.subr.bf16.mxu0 %v67
  %341 = vmatpush1.bf16.msra.mxu0 %v66
  %342 = vmatprep.subr.bf16.mxu0 %v70
  %343 = vmatpush1.bf16.msra.mxu0 %v69
  %344 = vmatprep.subr.bf16.mxu0 %v73
  %345 = vmatpush1.bf16.msra.mxu0 %v72
  %346 = vmatprep.subr.bf16.mxu0 %v76
  %347 = vmatpush1.bf16.msra.mxu0 %v75
  %348 = vmatprep.subr.bf16.mxu0 %v79
  %349 = vmatpush1.bf16.msra.mxu0 %v78
  %350 = vmatprep.subr.bf16.mxu0 %v82
  %351 = vmatpush1.bf16.msra.mxu0 %v81
  %352 = vmatprep.subr.bf16.mxu0 %v85
  %353 = vmatpush1.bf16.msra.mxu0 %v84
  %354 = vmatprep.subr.bf16.mxu0 0
  %355 = vmatpush1.bf16.msra.mxu0 0
  %356 = vmatprep.subr.bf16.mxu0 0
  %357 = vmatpush1.bf16.msra.mxu0 0
  %358 = vmatprep.subr.bf16.mxu0 0
  %359 = vmatpush1.bf16.msra.mxu0 0
  %360 = vmatprep.subr.bf16.mxu0 0
  %361 = vmatpush1.bf16.msra.mxu0 0
  %362 = vmatprep.subr.bf16.mxu0 0
  %363 = vmatpush1.bf16.msra.mxu0 0
  %364 = vmatprep.subr.bf16.mxu0 0
  %365 = vmatpush1.bf16.msra.mxu0 0
  %366 = vmatprep.subr.bf16.mxu0 0
  %367 = vmatpush1.bf16.msra.mxu0 0
  %368 = vmatprep.subr.bf16.mxu0 0
  %369 = vmatpush1.bf16.msra.mxu0 0
  %370 = vmatprep.mubr.bf16.mxu0 0
  %371 = vmatmul.mubr.bf16.gmra.mrb[0].mxu0 %v337
  %v372 = vpop.f32.mrb[0].mxu0
  %v373 = vadd.f32 %v92, %v372
  %v374 = vpop.f32.mrb[0].mxu0
  %v375 = vadd.f32 %v96, %v374
  %v376 = vpop.f32.mrb[0].mxu0
  %v377 = vpop.f32.mrb[0].mxu0
  %378 = vdwg.mxu0
  %379 = vmatprep.subr.bf16.mxu0 0
  %380 = vmatpush1.bf16.msra.mxu0 %v65
  %381 = vmatprep.subr.bf16.mxu0 0
  %382 = vmatpush1.bf16.msra.mxu0 %v68
  %383 = vmatprep.subr.bf16.mxu0 0
  %384 = vmatpush1.bf16.msra.mxu0 %v71
  %385 = vmatprep.subr.bf16.mxu0 0
  %386 = vmatpush1.bf16.msra.mxu0 %v74
  %387 = vmatprep.subr.bf16.mxu0 0
  %388 = vmatpush1.bf16.msra.mxu0 %v77
  %389 = vmatprep.subr.bf16.mxu0 0
  %390 = vmatpush1.bf16.msra.mxu0 %v80
  %391 = vmatprep.subr.bf16.mxu0 0
  %392 = vmatpush1.bf16.msra.mxu0 %v83
  %393 = vmatprep.subr.bf16.mxu0 0
  %394 = vmatpush1.bf16.msra.mxu0 %v86
  %395 = vmatprep.subr.bf16.mxu0 0
  %396 = vmatpush1.bf16.msra.mxu0 0
  %397 = vmatprep.subr.bf16.mxu0 0
  %398 = vmatpush1.bf16.msra.mxu0 0
  %399 = vmatprep.subr.bf16.mxu0 0
  %400 = vmatpush1.bf16.msra.mxu0 0
  %401 = vmatprep.subr.bf16.mxu0 0
  %402 = vmatpush1.bf16.msra.mxu0 0
  %403 = vmatprep.subr.bf16.mxu0 0
  %404 = vmatpush1.bf16.msra.mxu0 0
  %405 = vmatprep.subr.bf16.mxu0 0
  %406 = vmatpush1.bf16.msra.mxu0 0
  %407 = vmatprep.subr.bf16.mxu0 0
  %408 = vmatpush1.bf16.msra.mxu0 0
  %409 = vmatprep.subr.bf16.mxu0 0
  %410 = vmatpush1.bf16.msra.mxu0 0
  %411 = vmatprep.mubr.bf16.mxu0 0
  %412 = vmatmul.mubr.bf16.gmra.mrb[0].mxu0 %v337
  %v413 = vpop.f32.mrb[0].mxu0
  %v414 = vadd.f32 %v100, %v413
  %v415 = vpop.f32.mrb[0].mxu0
  %v416 = vpop.f32.mrb[0].mxu0
  %v417 = vpop.f32.mrb[0].mxu0
  %418 = vdwg.mxu0
  %v421 = vcombine.low %v373, %v375
  %v423 = vunpack.c.l.s4 1983009808
  %v424 = vunpack.c.0.s8 %v423
  %v425 = vlaneseq
  %v426 = vshrl.u32 %v425, 7
  %v427 = vsub.s32 %v424, %v426
  %v428 = vrot.slane %v421, %v427
  %v430 = vadd.f32 %v336, %v428
  %v431 = vxor.u32 %v430, 2147483648
  %v432 = vmul.f32 %v431, 1.442695
  %v433 = vpow.pop %v432
  %v434 = vadd.f32 %v433, 1.0
  %v435 = vrcp.pop %v434
  %v436 = vmul.f32 1.0, %v435
  %v437 = vmul.f32 %v436, %v414
  %v439 = vrot.slane %v336, 4
  %v441 = vadd.f32 %v439, %v437
  %v442 = vtanh.pop %v441
  %v444 = vrot.slane %v436, 2
  %v446 = vsub.f32 1.0, %v444
  %v447 = vmul.f32 %v446, %v442
  %v448 = vmul.f32 %v444, %v332
  %v449 = vadd.f32 %v447, %v448
  %s450 = scalar_lea.vmem %s3, 4
  %451 = vst [vmem:[%s450] sm:$0x3] %v449
  %s452 = scalar_lea.vmem %s0, 18
  %v453 = vld [vmem:[%s452] sm:$0x3f]
  %v454 = vpack.c.bf16 %v449, %v449
  %455 = vmatprep.subr.bf16.mxu0 %v64
  %456 = vmatpush1.bf16.msra.mxu0 %v63
  %457 = vmatprep.subr.bf16.mxu0 %v67
  %458 = vmatpush1.bf16.msra.mxu0 %v66
  %459 = vmatprep.subr.bf16.mxu0 %v70
  %460 = vmatpush1.bf16.msra.mxu0 %v69
  %461 = vmatprep.subr.bf16.mxu0 %v73
  %462 = vmatpush1.bf16.msra.mxu0 %v72
  %463 = vmatprep.subr.bf16.mxu0 %v76
  %464 = vmatpush1.bf16.msra.mxu0 %v75
  %465 = vmatprep.subr.bf16.mxu0 %v79
  %466 = vmatpush1.bf16.msra.mxu0 %v78
  %467 = vmatprep.subr.bf16.mxu0 %v82
  %468 = vmatpush1.bf16.msra.mxu0 %v81
  %469 = vmatprep.subr.bf16.mxu0 %v85
  %470 = vmatpush1.bf16.msra.mxu0 %v84
  %471 = vmatprep.subr.bf16.mxu0 0
  %472 = vmatpush1.bf16.msra.mxu0 0
  %473 = vmatprep.subr.bf16.mxu0 0
  %474 = vmatpush1.bf16.msra.mxu0 0
  %475 = vmatprep.subr.bf16.mxu0 0
  %476 = vmatpush1.bf16.msra.mxu0 0
  %477 = vmatprep.subr.bf16.mxu0 0
  %478 = vmatpush1.bf16.msra.mxu0 0
  %479 = vmatprep.subr.bf16.mxu0 0
  %480 = vmatpush1.bf16.msra.mxu0 0
  %481 = vmatprep.subr.bf16.mxu0 0
  %482 = vmatpush1.bf16.msra.mxu0 0
  %483 = vmatprep.subr.bf16.mxu0 0
  %484 = vmatpush1.bf16.msra.mxu0 0
  %485 = vmatprep.subr.bf16.mxu0 0
  %486 = vmatpush1.bf16.msra.mxu0 0
  %487 = vmatprep.mubr.bf16.mxu0 0
  %488 = vmatmul.mubr.bf16.gmra.mrb[0].mxu0 %v454
  %v489 = vpop.f32.mrb[0].mxu0
  %v490 = vadd.f32 %v92, %v489
  %v491 = vpop.f32.mrb[0].mxu0
  %v492 = vadd.f32 %v96, %v491
  %v493 = vpop.f32.mrb[0].mxu0
  %v494 = vpop.f32.mrb[0].mxu0
  %495 = vdwg.mxu0
  %496 = vmatprep.subr.bf16.mxu0 0
  %497 = vmatpush1.bf16.msra.mxu0 %v65
  %498 = vmatprep.subr.bf16.mxu0 0
  %499 = vmatpush1.bf16.msra.mxu0 %v68
  %500 = vmatprep.subr.bf16.mxu0 0
  %501 = vmatpush1.bf16.msra.mxu0 %v71
  %502 = vmatprep.subr.bf16.mxu0 0
  %503 = vmatpush1.bf16.msra.mxu0 %v74
  %504 = vmatprep.subr.bf16.mxu0 0
  %505 = vmatpush1.bf16.msra.mxu0 %v77
  %506 = vmatprep.subr.bf16.mxu0 0
  %507 = vmatpush1.bf16.msra.mxu0 %v80
  %508 = vmatprep.subr.bf16.mxu0 0
  %509 = vmatpush1.bf16.msra.mxu0 %v83
  %510 = vmatprep.subr.bf16.mxu0 0
  %511 = vmatpush1.bf16.msra.mxu0 %v86
  %512 = vmatprep.subr.bf16.mxu0 0
  %513 = vmatpush1.bf16.msra.mxu0 0
  %514 = vmatprep.subr.bf16.mxu0 0
  %515 = vmatpush1.bf16.msra.mxu0 0
  %516 = vmatprep.subr.bf16.mxu0 0
  %517 = vmatpush1.bf16.msra.mxu0 0
  %518 = vmatprep.subr.bf16.mxu0 0
  %519 = vmatpush1.bf16.msra.mxu0 0
  %520 = vmatprep.subr.bf16.mxu0 0
  %521 = vmatpush1.bf16.msra.mxu0 0
  %522 = vmatprep.subr.bf16.mxu0 0
  %523 = vmatpush1.bf16.msra.mxu0 0
  %524 = vmatprep.subr.bf16.mxu0 0
  %525 = vmatpush1.bf16.msra.mxu0 0
  %526 = vmatprep.subr.bf16.mxu0 0
  %527 = vmatpush1.bf16.msra.mxu0 0
  %528 = vmatprep.mubr.bf16.mxu0 0
  %529 = vmatmul.mubr.bf16.gmra.mrb[0].mxu0 %v454
  %v530 = vpop.f32.mrb[0].mxu0
  %v531 = vadd.f32 %v100, %v530
  %v532 = vpop.f32.mrb[0].mxu0
  %v533 = vpop.f32.mrb[0].mxu0
  %v534 = vpop.f32.mrb[0].mxu0
  %535 = vdwg.mxu0
  %v538 = vcombine.low %v490, %v492
  %v540 = vunpack.c.l.s4 1983009808
  %v541 = vunpack.c.0.s8 %v540
  %v542 = vlaneseq
  %v543 = vshrl.u32 %v542, 7
  %v544 = vsub.s32 %v541, %v543
  %v545 = vrot.slane %v538, %v544
  %v547 = vadd.f32 %v453, %v545
  %v548 = vxor.u32 %v547, 2147483648
  %v549 = vmul.f32 %v548, 1.442695
  %v550 = vpow.pop %v549
  %v551 = vadd.f32 %v550, 1.0
  %v552 = vrcp.pop %v551
  %v553 = vmul.f32 1.0, %v552
  %v554 = vmul.f32 %v553, %v531
  %v556 = vrot.slane %v453, 4
  %v558 = vadd.f32 %v556, %v554
  %v559 = vtanh.pop %v558
  %v561 = vrot.slane %v553, 2
  %v563 = vsub.f32 1.0, %v561
  %v564 = vmul.f32 %v563, %v559
  %v565 = vmul.f32 %v561, %v449
  %v566 = vadd.f32 %v564, %v565
  %s567 = scalar_lea.vmem %s3, 6
  %568 = vst [vmem:[%s567] sm:$0x3] %v566
  %s569 = scalar_lea.vmem %s0, 24
  %v570 = vld [vmem:[%s569] sm:$0x3f]
  %v571 = vpack.c.bf16 %v566, %v566
  %572 = vmatprep.subr.bf16.mxu0 %v64
  %573 = vmatpush1.bf16.msra.mxu0 %v63
  %574 = vmatprep.subr.bf16.mxu0 %v67
  %575 = vmatpush1.bf16.msra.mxu0 %v66
  %576 = vmatprep.subr.bf16.mxu0 %v70
  %577 = vmatpush1.bf16.msra.mxu0 %v69
  %578 = vmatprep.subr.bf16.mxu0 %v73
  %579 = vmatpush1.bf16.msra.mxu0 %v72
  %580 = vmatprep.subr.bf16.mxu0 %v76
  %581 = vmatpush1.bf16.msra.mxu0 %v75
  %582 = vmatprep.subr.bf16.mxu0 %v79
  %583 = vmatpush1.bf16.msra.mxu0 %v78
  %584 = vmatprep.subr.bf16.mxu0 %v82
  %585 = vmatpush1.bf16.msra.mxu0 %v81
  %586 = vmatprep.subr.bf16.mxu0 %v85
  %587 = vmatpush1.bf16.msra.mxu0 %v84
  %588 = vmatprep.subr.bf16.mxu0 0
  %589 = vmatpush1.bf16.msra.mxu0 0
  %590 = vmatprep.subr.bf16.mxu0 0
  %591 = vmatpush1.bf16.msra.mxu0 0
  %592 = vmatprep.subr.bf16.mxu0 0
  %593 = vmatpush1.bf16.msra.mxu0 0
  %594 = vmatprep.subr.bf16.mxu0 0
  %595 = vmatpush1.bf16.msra.mxu0 0
  %596 = vmatprep.subr.bf16.mxu0 0
  %597 = vmatpush1.bf16.msra.mxu0 0
  %598 = vmatprep.subr.bf16.mxu0 0
  %599 = vmatpush1.bf16.msra.mxu0 0
  %600 = vmatprep.subr.bf16.mxu0 0
  %601 = vmatpush1.bf16.msra.mxu0 0
  %602 = vmatprep.subr.bf16.mxu0 0
  %603 = vmatpush1.bf16.msra.mxu0 0
  %604 = vmatprep.mubr.bf16.mxu0 0
  %605 = vmatmul.mubr.bf16.gmra.mrb[0].mxu0 %v571
  %v606 = vpop.f32.mrb[0].mxu0
  %v607 = vadd.f32 %v92, %v606
  %v608 = vpop.f32.mrb[0].mxu0
  %v609 = vadd.f32 %v96, %v608
  %v610 = vpop.f32.mrb[0].mxu0
  %v611 = vpop.f32.mrb[0].mxu0
  %612 = vdwg.mxu0
  %613 = vmatprep.subr.bf16.mxu0 0
  %614 = vmatpush1.bf16.msra.mxu0 %v65
  %615 = vmatprep.subr.bf16.mxu0 0
  %616 = vmatpush1.bf16.msra.mxu0 %v68
  %617 = vmatprep.subr.bf16.mxu0 0
  %618 = vmatpush1.bf16.msra.mxu0 %v71
  %619 = vmatprep.subr.bf16.mxu0 0
  %620 = vmatpush1.bf16.msra.mxu0 %v74
  %621 = vmatprep.subr.bf16.mxu0 0
  %622 = vmatpush1.bf16.msra.mxu0 %v77
  %623 = vmatprep.subr.bf16.mxu0 0
  %624 = vmatpush1.bf16.msra.mxu0 %v80
  %625 = vmatprep.subr.bf16.mxu0 0
  %626 = vmatpush1.bf16.msra.mxu0 %v83
  %627 = vmatprep.subr.bf16.mxu0 0
  %628 = vmatpush1.bf16.msra.mxu0 %v86
  %629 = vmatprep.subr.bf16.mxu0 0
  %630 = vmatpush1.bf16.msra.mxu0 0
  %631 = vmatprep.subr.bf16.mxu0 0
  %632 = vmatpush1.bf16.msra.mxu0 0
  %633 = vmatprep.subr.bf16.mxu0 0
  %634 = vmatpush1.bf16.msra.mxu0 0
  %635 = vmatprep.subr.bf16.mxu0 0
  %636 = vmatpush1.bf16.msra.mxu0 0
  %637 = vmatprep.subr.bf16.mxu0 0
  %638 = vmatpush1.bf16.msra.mxu0 0
  %639 = vmatprep.subr.bf16.mxu0 0
  %640 = vmatpush1.bf16.msra.mxu0 0
  %641 = vmatprep.subr.bf16.mxu0 0
  %642 = vmatpush1.bf16.msra.mxu0 0
  %643 = vmatprep.subr.bf16.mxu0 0
  %644 = vmatpush1.bf16.msra.mxu0 0
  %645 = vmatprep.mubr.bf16.mxu0 0
  %646 = vmatmul.mubr.bf16.gmra.mrb[0].mxu0 %v571
  %v647 = vpop.f32.mrb[0].mxu0
  %v648 = vadd.f32 %v100, %v647
  %v649 = vpop.f32.mrb[0].mxu0
  %v650 = vpop.f32.mrb[0].mxu0
  %v651 = vpop.f32.mrb[0].mxu0
  %652 = vdwg.mxu0
  %v655 = vcombine.low %v607, %v609
  %v657 = vunpack.c.l.s4 1983009808
  %v658 = vunpack.c.0.s8 %v657
  %v659 = vlaneseq
  %v660 = vshrl.u32 %v659, 7
  %v661 = vsub.s32 %v658, %v660
  %v662 = vrot.slane %v655, %v661
  %v664 = vadd.f32 %v570, %v662
  %v665 = vxor.u32 %v664, 2147483648
  %v666 = vmul.f32 %v665, 1.442695
  %v667 = vpow.pop %v666
  %v668 = vadd.f32 %v667, 1.0
  %v669 = vrcp.pop %v668
  %v670 = vmul.f32 1.0, %v669
  %v671 = vmul.f32 %v670, %v648
  %v673 = vrot.slane %v570, 4
  %v675 = vadd.f32 %v673, %v671
  %v676 = vtanh.pop %v675
  %v678 = vrot.slane %v670, 2
  %v680 = vsub.f32 1.0, %v678
  %v681 = vmul.f32 %v680, %v676
  %v682 = vmul.f32 %v678, %v566
  %v683 = vadd.f32 %v681, %v682
  %s684 = scalar_lea.vmem %s3, 8
  %685 = vst [vmem:[%s684] sm:$0x3] %v683
  %s686 = scalar_lea.vmem %s0, 30
  %v687 = vld [vmem:[%s686] sm:$0x3f]
  %v688 = vpack.c.bf16 %v683, %v683
  %689 = vmatprep.subr.bf16.mxu0 %v64
  %690 = vmatpush1.bf16.msra.mxu0 %v63
  %691 = vmatprep.subr.bf16.mxu0 %v67
  %692 = vmatpush1.bf16.msra.mxu0 %v66
  %693 = vmatprep.subr.bf16.mxu0 %v70
  %694 = vmatpush1.bf16.msra.mxu0 %v69
  %695 = vmatprep.subr.bf16.mxu0 %v73
  %696 = vmatpush1.bf16.msra.mxu0 %v72
  %697 = vmatprep.subr.bf16.mxu0 %v76
  %698 = vmatpush1.bf16.msra.mxu0 %v75
  %699 = vmatprep.subr.bf16.mxu0 %v79
  %700 = vmatpush1.bf16.msra.mxu0 %v78
  %701 = vmatprep.subr.bf16.mxu0 %v82
  %702 = vmatpush1.bf16.msra.mxu0 %v81
  %703 = vmatprep.subr.bf16.mxu0 %v85
  %704 = vmatpush1.bf16.msra.mxu0 %v84
  %705 = vmatprep.subr.bf16.mxu0 0
  %706 = vmatpush1.bf16.msra.mxu0 0
  %707 = vmatprep.subr.bf16.mxu0 0
  %708 = vmatpush1.bf16.msra.mxu0 0
  %709 = vmatprep.subr.bf16.mxu0 0
  %710 = vmatpush1.bf16.msra.mxu0 0
  %711 = vmatprep.subr.bf16.mxu0 0
  %712 = vmatpush1.bf16.msra.mxu0 0
  %713 = vmatprep.subr.bf16.mxu0 0
  %714 = vmatpush1.bf16.msra.mxu0 0
  %715 = vmatprep.subr.bf16.mxu0 0
  %716 = vmatpush1.bf16.msra.mxu0 0
  %717 = vmatprep.subr.bf16.mxu0 0
  %718 = vmatpush1.bf16.msra.mxu0 0
  %719 = vmatprep.subr.bf16.mxu0 0
  %720 = vmatpush1.bf16.msra.mxu0 0
  %721 = vmatprep.mubr.bf16.mxu0 0
  %722 = vmatmul.mubr.bf16.gmra.mrb[0].mxu0 %v688
  %v723 = vpop.f32.mrb[0].mxu0
  %v724 = vadd.f32 %v92, %v723
  %v725 = vpop.f32.mrb[0].mxu0
  %v726 = vadd.f32 %v96, %v725
  %v727 = vpop.f32.mrb[0].mxu0
  %v728 = vpop.f32.mrb[0].mxu0
  %729 = vdwg.mxu0
  %730 = vmatprep.subr.bf16.mxu0 0
  %731 = vmatpush1.bf16.msra.mxu0 %v65
  %732 = vmatprep.subr.bf16.mxu0 0
  %733 = vmatpush1.bf16.msra.mxu0 %v68
  %734 = vmatprep.subr.bf16.mxu0 0
  %735 = vmatpush1.bf16.msra.mxu0 %v71
  %736 = vmatprep.subr.bf16.mxu0 0
  %737 = vmatpush1.bf16.msra.mxu0 %v74
  %738 = vmatprep.subr.bf16.mxu0 0
  %739 = vmatpush1.bf16.msra.mxu0 %v77
  %740 = vmatprep.subr.bf16.mxu0 0
  %741 = vmatpush1.bf16.msra.mxu0 %v80
  %742 = vmatprep.subr.bf16.mxu0 0
  %743 = vmatpush1.bf16.msra.mxu0 %v83
  %744 = vmatprep.subr.bf16.mxu0 0
  %745 = vmatpush1.bf16.msra.mxu0 %v86
  %746 = vmatprep.subr.bf16.mxu0 0
  %747 = vmatpush1.bf16.msra.mxu0 0
  %748 = vmatprep.subr.bf16.mxu0 0
  %749 = vmatpush1.bf16.msra.mxu0 0
  %750 = vmatprep.subr.bf16.mxu0 0
  %751 = vmatpush1.bf16.msra.mxu0 0
  %752 = vmatprep.subr.bf16.mxu0 0
  %753 = vmatpush1.bf16.msra.mxu0 0
  %754 = vmatprep.subr.bf16.mxu0 0
  %755 = vmatpush1.bf16.msra.mxu0 0
  %756 = vmatprep.subr.bf16.mxu0 0
  %757 = vmatpush1.bf16.msra.mxu0 0
  %758 = vmatprep.subr.bf16.mxu0 0
  %759 = vmatpush1.bf16.msra.mxu0 0
  %760 = vmatprep.subr.bf16.mxu0 0
  %761 = vmatpush1.bf16.msra.mxu0 0
  %762 = vmatprep.mubr.bf16.mxu0 0
  %763 = vmatmul.mubr.bf16.gmra.mrb[0].mxu0 %v688
  %v764 = vpop.f32.mrb[0].mxu0
  %v765 = vadd.f32 %v100, %v764
  %v766 = vpop.f32.mrb[0].mxu0
  %v767 = vpop.f32.mrb[0].mxu0
  %v768 = vpop.f32.mrb[0].mxu0
  %769 = vdwg.mxu0
  %v772 = vcombine.low %v724, %v726
  %v774 = vunpack.c.l.s4 1983009808
  %v775 = vunpack.c.0.s8 %v774
  %v776 = vlaneseq
  %v777 = vshrl.u32 %v776, 7
  %v778 = vsub.s32 %v775, %v777
  %v779 = vrot.slane %v772, %v778
  %v781 = vadd.f32 %v687, %v779
  %v782 = vxor.u32 %v781, 2147483648
  %v783 = vmul.f32 %v782, 1.442695
  %v784 = vpow.pop %v783
  %v785 = vadd.f32 %v784, 1.0
  %v786 = vrcp.pop %v785
  %v787 = vmul.f32 1.0, %v786
  %v788 = vmul.f32 %v787, %v765
  %v790 = vrot.slane %v687, 4
  %v792 = vadd.f32 %v790, %v788
  %v793 = vtanh.pop %v792
  %v795 = vrot.slane %v787, 2
  %v797 = vsub.f32 1.0, %v795
  %v798 = vmul.f32 %v797, %v793
  %v799 = vmul.f32 %v795, %v683
  %v800 = vadd.f32 %v798, %v799
  %s801 = scalar_lea.vmem %s3, 10
  %802 = vst [vmem:[%s801] sm:$0x3] %v800
  %s803 = scalar_lea.vmem %s0, 36
  %v804 = vld [vmem:[%s803] sm:$0x3f]
  %v805 = vpack.c.bf16 %v800, %v800
  %806 = vmatprep.subr.bf16.mxu0 %v64
  %807 = vmatpush1.bf16.msra.mxu0 %v63
  %808 = vmatprep.subr.bf16.mxu0 %v67
  %809 = vmatpush1.bf16.msra.mxu0 %v66
  %810 = vmatprep.subr.bf16.mxu0 %v70
  %811 = vmatpush1.bf16.msra.mxu0 %v69
  %812 = vmatprep.subr.bf16.mxu0 %v73
  %813 = vmatpush1.bf16.msra.mxu0 %v72
  %814 = vmatprep.subr.bf16.mxu0 %v76
  %815 = vmatpush1.bf16.msra.mxu0 %v75
  %816 = vmatprep.subr.bf16.mxu0 %v79
  %817 = vmatpush1.bf16.msra.mxu0 %v78
  %818 = vmatprep.subr.bf16.mxu0 %v82
  %819 = vmatpush1.bf16.msra.mxu0 %v81
  %820 = vmatprep.subr.bf16.mxu0 %v85
  %821 = vmatpush1.bf16.msra.mxu0 %v84
  %822 = vmatprep.subr.bf16.mxu0 0
  %823 = vmatpush1.bf16.msra.mxu0 0
  %824 = vmatprep.subr.bf16.mxu0 0
  %825 = vmatpush1.bf16.msra.mxu0 0
  %826 = vmatprep.subr.bf16.mxu0 0
  %827 = vmatpush1.bf16.msra.mxu0 0
  %828 = vmatprep.subr.bf16.mxu0 0
  %829 = vmatpush1.bf16.msra.mxu0 0
  %830 = vmatprep.subr.bf16.mxu0 0
  %831 = vmatpush1.bf16.msra.mxu0 0
  %832 = vmatprep.subr.bf16.mxu0 0
  %833 = vmatpush1.bf16.msra.mxu0 0
  %834 = vmatprep.subr.bf16.mxu0 0
  %835 = vmatpush1.bf16.msra.mxu0 0
  %836 = vmatprep.subr.bf16.mxu0 0
  %837 = vmatpush1.bf16.msra.mxu0 0
  %838 = vmatprep.mubr.bf16.mxu0 0
  %839 = vmatmul.mubr.bf16.gmra.mrb[0].mxu0 %v805
  %v840 = vpop.f32.mrb[0].mxu0
  %v841 = vadd.f32 %v92, %v840
  %v842 = vpop.f32.mrb[0].mxu0
  %v843 = vadd.f32 %v96, %v842
  %v844 = vpop.f32.mrb[0].mxu0
  %v845 = vpop.f32.mrb[0].mxu0
  %846 = vdwg.mxu0
  %847 = vmatprep.subr.bf16.mxu0 0
  %848 = vmatpush1.bf16.msra.mxu0 %v65
  %849 = vmatprep.subr.bf16.mxu0 0
  %850 = vmatpush1.bf16.msra.mxu0 %v68
  %851 = vmatprep.subr.bf16.mxu0 0
  %852 = vmatpush1.bf16.msra.mxu0 %v71
  %853 = vmatprep.subr.bf16.mxu0 0
  %854 = vmatpush1.bf16.msra.mxu0 %v74
  %855 = vmatprep.subr.bf16.mxu0 0
  %856 = vmatpush1.bf16.msra.mxu0 %v77
  %857 = vmatprep.subr.bf16.mxu0 0
  %858 = vmatpush1.bf16.msra.mxu0 %v80
  %859 = vmatprep.subr.bf16.mxu0 0
  %860 = vmatpush1.bf16.msra.mxu0 %v83
  %861 = vmatprep.subr.bf16.mxu0 0
  %862 = vmatpush1.bf16.msra.mxu0 %v86
  %863 = vmatprep.subr.bf16.mxu0 0
  %864 = vmatpush1.bf16.msra.mxu0 0
  %865 = vmatprep.subr.bf16.mxu0 0
  %866 = vmatpush1.bf16.msra.mxu0 0
  %867 = vmatprep.subr.bf16.mxu0 0
  %868 = vmatpush1.bf16.msra.mxu0 0
  %869 = vmatprep.subr.bf16.mxu0 0
  %870 = vmatpush1.bf16.msra.mxu0 0
  %871 = vmatprep.subr.bf16.mxu0 0
  %872 = vmatpush1.bf16.msra.mxu0 0
  %873 = vmatprep.subr.bf16.mxu0 0
  %874 = vmatpush1.bf16.msra.mxu0 0
  %875 = vmatprep.subr.bf16.mxu0 0
  %876 = vmatpush1.bf16.msra.mxu0 0
  %877 = vmatprep.subr.bf16.mxu0 0
  %878 = vmatpush1.bf16.msra.mxu0 0
  %879 = vmatprep.mubr.bf16.mxu0 0
  %880 = vmatmul.mubr.bf16.gmra.mrb[0].mxu0 %v805
  %v881 = vpop.f32.mrb[0].mxu0
  %v882 = vadd.f32 %v100, %v881
  %v883 = vpop.f32.mrb[0].mxu0
  %v884 = vpop.f32.mrb[0].mxu0
  %v885 = vpop.f32.mrb[0].mxu0
  %886 = vdwg.mxu0
  %v889 = vcombine.low %v841, %v843
  %v891 = vunpack.c.l.s4 1983009808
  %v892 = vunpack.c.0.s8 %v891
  %v893 = vlaneseq
  %v894 = vshrl.u32 %v893, 7
  %v895 = vsub.s32 %v892, %v894
  %v896 = vrot.slane %v889, %v895
  %v898 = vadd.f32 %v804, %v896
  %v899 = vxor.u32 %v898, 2147483648
  %v900 = vmul.f32 %v899, 1.442695
  %v901 = vpow.pop %v900
  %v902 = vadd.f32 %v901, 1.0
  %v903 = vrcp.pop %v902
  %v904 = vmul.f32 1.0, %v903
  %v905 = vmul.f32 %v904, %v882
  %v907 = vrot.slane %v804, 4
  %v909 = vadd.f32 %v907, %v905
  %v910 = vtanh.pop %v909
  %v912 = vrot.slane %v904, 2
  %v914 = vsub.f32 1.0, %v912
  %v915 = vmul.f32 %v914, %v910
  %v916 = vmul.f32 %v912, %v800
  %v917 = vadd.f32 %v915, %v916
  %s918 = scalar_lea.vmem %s3, 12
  %919 = vst [vmem:[%s918] sm:$0x3] %v917
  %s920 = scalar_lea.vmem %s0, 42
  %v921 = vld [vmem:[%s920] sm:$0x3f]
  %v922 = vpack.c.bf16 %v917, %v917
  %923 = vmatprep.subr.bf16.mxu0 %v64
  %924 = vmatpush1.bf16.msra.mxu0 %v63
  %925 = vmatprep.subr.bf16.mxu0 %v67
  %926 = vmatpush1.bf16.msra.mxu0 %v66
  %927 = vmatprep.subr.bf16.mxu0 %v70
  %928 = vmatpush1.bf16.msra.mxu0 %v69
  %929 = vmatprep.subr.bf16.mxu0 %v73
  %930 = vmatpush1.bf16.msra.mxu0 %v72
  %931 = vmatprep.subr.bf16.mxu0 %v76
  %932 = vmatpush1.bf16.msra.mxu0 %v75
  %933 = vmatprep.subr.bf16.mxu0 %v79
  %934 = vmatpush1.bf16.msra.mxu0 %v78
  %935 = vmatprep.subr.bf16.mxu0 %v82
  %936 = vmatpush1.bf16.msra.mxu0 %v81
  %937 = vmatprep.subr.bf16.mxu0 %v85
  %938 = vmatpush1.bf16.msra.mxu0 %v84
  %939 = vmatprep.subr.bf16.mxu0 0
  %940 = vmatpush1.bf16.msra.mxu0 0
  %941 = vmatprep.subr.bf16.mxu0 0
  %942 = vmatpush1.bf16.msra.mxu0 0
  %943 = vmatprep.subr.bf16.mxu0 0
  %944 = vmatpush1.bf16.msra.mxu0 0
  %945 = vmatprep.subr.bf16.mxu0 0
  %946 = vmatpush1.bf16.msra.mxu0 0
  %947 = vmatprep.subr.bf16.mxu0 0
  %948 = vmatpush1.bf16.msra.mxu0 0
  %949 = vmatprep.subr.bf16.mxu0 0
  %950 = vmatpush1.bf16.msra.mxu0 0
  %951 = vmatprep.subr.bf16.mxu0 0
  %952 = vmatpush1.bf16.msra.mxu0 0
  %953 = vmatprep.subr.bf16.mxu0 0
  %954 = vmatpush1.bf16.msra.mxu0 0
  %955 = vmatprep.mubr.bf16.mxu0 0
  %956 = vmatmul.mubr.bf16.gmra.mrb[0].mxu0 %v922
  %v957 = vpop.f32.mrb[0].mxu0
  %v958 = vadd.f32 %v92, %v957
  %v959 = vpop.f32.mrb[0].mxu0
  %v960 = vadd.f32 %v96, %v959
  %v961 = vpop.f32.mrb[0].mxu0
  %v962 = vpop.f32.mrb[0].mxu0
  %963 = vdwg.mxu0
  %964 = vmatprep.subr.bf16.mxu0 0
  %965 = vmatpush1.bf16.msra.mxu0 %v65
  %966 = vmatprep.subr.bf16.mxu0 0
  %967 = vmatpush1.bf16.msra.mxu0 %v68
  %968 = vmatprep.subr.bf16.mxu0 0
  %969 = vmatpush1.bf16.msra.mxu0 %v71
  %970 = vmatprep.subr.bf16.mxu0 0
  %971 = vmatpush1.bf16.msra.mxu0 %v74
  %972 = vmatprep.subr.bf16.mxu0 0
  %973 = vmatpush1.bf16.msra.mxu0 %v77
  %974 = vmatprep.subr.bf16.mxu0 0
  %975 = vmatpush1.bf16.msra.mxu0 %v80
  %976 = vmatprep.subr.bf16.mxu0 0
  %977 = vmatpush1.bf16.msra.mxu0 %v83
  %978 = vmatprep.subr.bf16.mxu0 0
  %979 = vmatpush1.bf16.msra.mxu0 %v86
  %980 = vmatprep.subr.bf16.mxu0 0
  %981 = vmatpush1.bf16.msra.mxu0 0
  %982 = vmatprep.subr.bf16.mxu0 0
  %983 = vmatpush1.bf16.msra.mxu0 0
  %984 = vmatprep.subr.bf16.mxu0 0
  %985 = vmatpush1.bf16.msra.mxu0 0
  %986 = vmatprep.subr.bf16.mxu0 0
  %987 = vmatpush1.bf16.msra.mxu0 0
  %988 = vmatprep.subr.bf16.mxu0 0
  %989 = vmatpush1.bf16.msra.mxu0 0
  %990 = vmatprep.subr.bf16.mxu0 0
  %991 = vmatpush1.bf16.msra.mxu0 0
  %992 = vmatprep.subr.bf16.mxu0 0
  %993 = vmatpush1.bf16.msra.mxu0 0
  %994 = vmatprep.subr.bf16.mxu0 0
  %995 = vmatpush1.bf16.msra.mxu0 0
  %996 = vmatprep.mubr.bf16.mxu0 0
  %997 = vmatmul.mubr.bf16.gmra.mrb[0].mxu0 %v922
  %v998 = vpop.f32.mrb[0].mxu0
  %v999 = vadd.f32 %v100, %v998
  %v1000 = vpop.f32.mrb[0].mxu0
  %v1001 = vpop.f32.mrb[0].mxu0
  %v1002 = vpop.f32.mrb[0].mxu0
  %1003 = vdwg.mxu0
  %v1006 = vcombine.low %v958, %v960
  %v1008 = vunpack.c.l.s4 1983009808
  %v1009 = vunpack.c.0.s8 %v1008
  %v1010 = vlaneseq
  %v1011 = vshrl.u32 %v1010, 7
  %v1012 = vsub.s32 %v1009, %v1011
  %v1013 = vrot.slane %v1006, %v1012
  %v1015 = vadd.f32 %v921, %v1013
  %v1016 = vxor.u32 %v1015, 2147483648
  %v1017 = vmul.f32 %v1016, 1.442695
  %v1018 = vpow.pop %v1017
  %v1019 = vadd.f32 %v1018, 1.0
  %v1020 = vrcp.pop %v1019
  %v1021 = vmul.f32 1.0, %v1020
  %v1022 = vmul.f32 %v1021, %v999
  %v1024 = vrot.slane %v921, 4
  %v1026 = vadd.f32 %v1024, %v1022
  %v1027 = vtanh.pop %v1026
  %v1029 = vrot.slane %v1021, 2
  %v1031 = vsub.f32 1.0, %v1029
  %v1032 = vmul.f32 %v1031, %v1027
  %v1033 = vmul.f32 %v1029, %v917
  %v1034 = vadd.f32 %v1032, %v1033
  %s1035 = scalar_lea.vmem %s3, 14
  %1036 = vst [vmem:[%s1035] sm:$0x3] %v1034
  %v1037 = vlaneseq
  %v1038 = vand.u32 %v1037, 127
  %vm1039 = vcmp.lt.s32.totalorder %v1038, 64
  %v1040 = vld [vmem:[%s3] sm:$0x3]
  %v1041 = vld [vmem:[%s1035] sm:$0x3]
  %v1042 = vsel %vm1039, %v1040, %v1041
  %1043 = vst [vmem:[%s3] sm:$0x3] %v1042
  %v1044 = vsel %vm1039, %v1041, %v1040
  %1045 = vst [vmem:[%s1035] sm:$0x3] %v1044
  %v1046 = vld [vmem:[%s333] sm:$0x3]
  %v1047 = vld [vmem:[%s918] sm:$0x3]
  %v1048 = vsel %vm1039, %v1046, %v1047
  %1049 = vst [vmem:[%s333] sm:$0x3] %v1048
  %v1050 = vsel %vm1039, %v1047, %v1046
  %1051 = vst [vmem:[%s918] sm:$0x3] %v1050
  %v1052 = vld [vmem:[%s450] sm:$0x3]
  %v1053 = vld [vmem:[%s801] sm:$0x3]
  %v1054 = vsel %vm1039, %v1052, %v1053
  %1055 = vst [vmem:[%s450] sm:$0x3] %v1054
  %v1056 = vsel %vm1039, %v1053, %v1052
  %1057 = vst [vmem:[%s801] sm:$0x3] %v1056
  %v1058 = vld [vmem:[%s567] sm:$0x3]
  %v1059 = vld [vmem:[%s684] sm:$0x3]
  %v1060 = vsel %vm1039, %v1058, %v1059
  %1061 = vst [vmem:[%s567] sm:$0x3] %v1060
  %v1062 = vsel %vm1039, %v1059, %v1058
  %1063 = vst [vmem:[%s684] sm:$0x3] %v1062
  // Predicated region
  $region14: #{forward.4} parent=0 // pred_check
    _
  $region15: #{forward.4} parent=0 // pred_check_branch
    %1065 = sbr.rel (0) target = $region17
  $region16: #{forward.4} parent=0 // pred_region
    _
  $region17: #{forward.4} parent=0 // pred_fallthru
    _
  // Predicated region
  $region18: #{forward.4} parent=0 // pred_check
    _
  $region19: #{forward.4} parent=0 // pred_check_branch
    %1067 = sbr.rel (0) target = $region21
  $region20: #{forward.4} parent=0 // pred_region
    _
  $region21: #{forward.4} parent=0 // pred_fallthru
    _

// kernel: forward.3
$region0: #{forward.3}
  #allocation0 [shape = 'u32[]', space=smem, size = 0x4, offset = 0x4, fixed_abs, tag = 'smem constant byte address 0x4 - core index']
  #allocation1 [shape = 'u32[144,128]{1,0:T(1,128)}', space=vmem, size = 0x12000, scoped, tag = 'internal scratch']
  %s0 = inlined_call_operand.vmem [shape: f32[8,2,512], index: 0, kind: input, shape index: {}]
  %s1 = inlined_call_operand.vmem [shape: f32[128,512], index: 1, kind: input, shape index: {}]
  %s2 = inlined_call_operand.vmem [shape: f32[8,2,128], index: 2, kind: output, shape index: {}]
  %s3 = sld [smem:[#allocation0]]
  $region18: #{forward.3} parent=0
    _
  %s5 = ssub.s32 1, %s3
  %s6 = scalar_select 0, %s5, %s3
  // Predicated region
  $region2: #{forward.3} parent=0 // pred_check
    _
  $region3: #{forward.3} parent=0 // pred_check_branch
    %8 = sbr.rel (0) target = $region5
  $region4: #{forward.3} parent=0 // pred_region
    _
  $region5: #{forward.3} parent=0 // pred_fallthru
    _
  // Predicated region
  $region6: #{forward.3} parent=0 // pred_check
    _
  $region7: #{forward.3} parent=0 // pred_check_branch
    %10 = sbr.rel (0) target = $region9
  $region8: #{forward.3} parent=0 // pred_region
    _
  $region9: #{forward.3} parent=0 // pred_fallthru
    _
  %v12 = vld [vmem:[%s1] sm:$0xff]
  %v13 = vld [vmem:[%s1 + $0x8] sm:$0xff]
  %v14 = vld [vmem:[%s1 + $0x10] sm:$0xff]
  %v15 = vld [vmem:[%s1 + $0x18] sm:$0xff]
  %v16 = vld [vmem:[%s1 + $0x20] sm:$0xff]
  %v17 = vld [vmem:[%s1 + $0x28] sm:$0xff]
  %v18 = vld [vmem:[%s1 + $0x30] sm:$0xff]
  %v19 = vld [vmem:[%s1 + $0x38] sm:$0xff]
  %v20 = vld [vmem:[%s1 + $0x40] sm:$0xff]
  %v21 = vld [vmem:[%s1 + $0x48] sm:$0xff]
  %v22 = vld [vmem:[%s1 + $0x50] sm:$0xff]
  %v23 = vld [vmem:[%s1 + $0x58] sm:$0xff]
  %v24 = vld [vmem:[%s1 + $0x60] sm:$0xff]
  %v25 = vld [vmem:[%s1 + $0x68] sm:$0xff]
  %v26 = vld [vmem:[%s1 + $0x70] sm:$0xff]
  %v27 = vld [vmem:[%s1 + $0x78] sm:$0xff]
  %v28 = vld [vmem:[%s1 + $0x80] sm:$0xff]
  %v29 = vld [vmem:[%s1 + $0x88] sm:$0xff]
  %v30 = vld [vmem:[%s1 + $0x90] sm:$0xff]
  %v31 = vld [vmem:[%s1 + $0x98] sm:$0xff]
  %v32 = vld [vmem:[%s1 + $0xa0] sm:$0xff]
  %v33 = vld [vmem:[%s1 + $0xa8] sm:$0xff]
  %v34 = vld [vmem:[%s1 + $0xb0] sm:$0xff]
  %v35 = vld [vmem:[%s1 + $0xb8] sm:$0xff]
  %v36 = vld [vmem:[%s1 + $0xc0] sm:$0xff]
  %v37 = vld [vmem:[%s1 + $0xc8] sm:$0xff]
  %v38 = vld [vmem:[%s1 + $0xd0] sm:$0xff]
  %v39 = vld [vmem:[%s1 + $0xd8] sm:$0xff]
  %v40 = vld [vmem:[%s1 + $0xe0] sm:$0xff]
  %v41 = vld [vmem:[%s1 + $0xe8] sm:$0xff]
  %v42 = vld [vmem:[%s1 + $0xf0] sm:$0xff]
  %v43 = vld [vmem:[%s1 + $0xf8] sm:$0xff]
  %v44 = vld [vmem:[%s1 + $0x100] sm:$0xff]
  %v45 = vld [vmem:[%s1 + $0x108] sm:$0xff]
  %v46 = vld [vmem:[%s1 + $0x110] sm:$0xff]
  %v47 = vld [vmem:[%s1 + $0x118] sm:$0xff]
  %v48 = vld [vmem:[%s1 + $0x120] sm:$0xff]
  %v49 = vld [vmem:[%s1 + $0x128] sm:$0xff]
  %v50 = vld [vmem:[%s1 + $0x130] sm:$0xff]
  %v51 = vld [vmem:[%s1 + $0x138] sm:$0xff]
  %v52 = vld [vmem:[%s1 + $0x140] sm:$0xff]
  %v53 = vld [vmem:[%s1 + $0x148] sm:$0xff]
  %v54 = vld [vmem:[%s1 + $0x150] sm:$0xff]
  %v55 = vld [vmem:[%s1 + $0x158] sm:$0xff]
  %v56 = vld [vmem:[%s1 + $0x160] sm:$0xff]
  %v57 = vld [vmem:[%s1 + $0x168] sm:$0xff]
  %v58 = vld [vmem:[%s1 + $0x170] sm:$0xff]
  %v59 = vld [vmem:[%s1 + $0x178] sm:$0xff]
  %v60 = vld [vmem:[%s1 + $0x180] sm:$0xff]
  %v61 = vld [vmem:[%s1 + $0x188] sm:$0xff]
  %v62 = vld [vmem:[%s1 + $0x190] sm:$0xff]
  %v63 = vld [vmem:[%s1 + $0x198] sm:$0xff]
  %v64 = vld [vmem:[%s1 + $0x1a0] sm:$0xff]
  %v65 = vld [vmem:[%s1 + $0x1a8] sm:$0xff]
  %v66 = vld [vmem:[%s1 + $0x1b0] sm:$0xff]
  %v67 = vld [vmem:[%s1 + $0x1b8] sm:$0xff]
  %v68 = vld [vmem:[%s1 + $0x1c0] sm:$0xff]
  %v69 = vld [vmem:[%s1 + $0x1c8] sm:$0xff]
  %v70 = vld [vmem:[%s1 + $0x1d0] sm:$0xff]
  %v71 = vld [vmem:[%s1 + $0x1d8] sm:$0xff]
  %v72 = vld [vmem:[%s1 + $0x1e0] sm:$0xff]
  %v73 = vld [vmem:[%s1 + $0x1e8] sm:$0xff]
  %v74 = vld [vmem:[%s1 + $0x1f0] sm:$0xff]
  %v75 = vld [vmem:[%s1 + $0x1f8] sm:$0xff]
  %v76 = vpack.c.bf16 %v16, %v12
  %v77 = vpack.c.bf16 %v17, %v13
  %v78 = vpack.c.bf16 %v18, %v14
  %v79 = vpack.c.bf16 %v19, %v15
  %v80 = vpack.c.bf16 %v24, %v20
  %v81 = vpack.c.bf16 %v25, %v21
  %v82 = vpack.c.bf16 %v26, %v22
  %v83 = vpack.c.bf16 %v27, %v23
  %v84 = vpack.c.bf16 %v32, %v28
  %v85 = vpack.c.bf16 %v33, %v29
  %v86 = vpack.c.bf16 %v34, %v30
  %v87 = vpack.c.bf16 %v35, %v31
  %v88 = vpack.c.bf16 %v40, %v36
  %v89 = vpack.c.bf16 %v41, %v37
  %v90 = vpack.c.bf16 %v42, %v38
  %v91 = vpack.c.bf16 %v43, %v39
  %v92 = vpack.c.bf16 %v48, %v44
  %v93 = vpack.c.bf16 %v49, %v45
  %v94 = vpack.c.bf16 %v50, %v46
  %v95 = vpack.c.bf16 %v51, %v47
  %v96 = vpack.c.bf16 %v56, %v52
  %v97 = vpack.c.bf16 %v57, %v53
  %v98 = vpack.c.bf16 %v58, %v54
  %v99 = vpack.c.bf16 %v59, %v55
  %v100 = vpack.c.bf16 %v64, %v60
  %v101 = vpack.c.bf16 %v65, %v61
  %v102 = vpack.c.bf16 %v66, %v62
  %v103 = vpack.c.bf16 %v67, %v63
  %v104 = vpack.c.bf16 %v72, %v68
  %v105 = vpack.c.bf16 %v73, %v69
  %v106 = vpack.c.bf16 %v74, %v70
  %v107 = vpack.c.bf16 %v75, %v71
  %v108 = vld [vmem:[%s0] sm:$0xff]
  %109 = vmatprep.subr.bf16.mxu0 %v77
  %110 = vmatpush1.bf16.msra.mxu0 %v76
  %111 = vmatprep.subr.bf16.mxu0 %v81
  %112 = vmatpush1.bf16.msra.mxu0 %v80
  %113 = vmatprep.subr.bf16.mxu0 %v85
  %114 = vmatpush1.bf16.msra.mxu0 %v84
  %115 = vmatprep.subr.bf16.mxu0 %v89
  %116 = vmatpush1.bf16.msra.mxu0 %v88
  %117 = vmatprep.subr.bf16.mxu0 %v93
  %118 = vmatpush1.bf16.msra.mxu0 %v92
  %119 = vmatprep.subr.bf16.mxu0 %v97
  %120 = vmatpush1.bf16.msra.mxu0 %v96
  %121 = vmatprep.subr.bf16.mxu0 %v101
  %122 = vmatpush1.bf16.msra.mxu0 %v100
  %123 = vmatprep.subr.bf16.mxu0 %v105
  %124 = vmatpush1.bf16.msra.mxu0 %v104
  %125 = vmatprep.subr.bf16.mxu0 0
  %126 = vmatpush1.bf16.msra.mxu0 0
  %127 = vmatprep.subr.bf16.mxu0 0
  %128 = vmatpush1.bf16.msra.mxu0 0
  %129 = vmatprep.subr.bf16.mxu0 0
  %130 = vmatpush1.bf16.msra.mxu0 0
  %131 = vmatprep.subr.bf16.mxu0 0
  %132 = vmatpush1.bf16.msra.mxu0 0
  %133 = vmatprep.subr.bf16.mxu0 0
  %134 = vmatpush1.bf16.msra.mxu0 0
  %135 = vmatprep.subr.bf16.mxu0 0
  %136 = vmatpush1.bf16.msra.mxu0 0
  %137 = vmatprep.subr.bf16.mxu0 0
  %138 = vmatpush1.bf16.msra.mxu0 0
  %139 = vmatprep.subr.bf16.mxu0 0
  %140 = vmatpush1.bf16.msra.mxu0 0
  %141 = vmatprep.mubr.bf16.mxu0 0
  %142 = vmatmul.mubr.bf16.gmra.mrb[0].mxu0 0
  %v143 = vpop.f32.mrb[0].mxu0
  %v144 = vadd.f32 0.0, %v143
  %v145 = vpop.f32.mrb[0].mxu0
  %v146 = vadd.f32 0.0, %v145
  %v147 = vpop.f32.mrb[0].mxu0
  %v148 = vpop.f32.mrb[0].mxu0
  %149 = vdwg.mxu0
  %150 = vmatprep.subr.bf16.mxu0 %v79
  %151 = vmatpush1.bf16.msra.mxu0 %v78
  %152 = vmatprep.subr.bf16.mxu0 %v83
  %153 = vmatpush1.bf16.msra.mxu0 %v82
  %154 = vmatprep.subr.bf16.mxu0 %v87
  %155 = vmatpush1.bf16.msra.mxu0 %v86
  %156 = vmatprep.subr.bf16.mxu0 %v91
  %157 = vmatpush1.bf16.msra.mxu0 %v90
  %158 = vmatprep.subr.bf16.mxu0 %v95
  %159 = vmatpush1.bf16.msra.mxu0 %v94
  %160 = vmatprep.subr.bf16.mxu0 %v99
  %161 = vmatpush1.bf16.msra.mxu0 %v98
  %162 = vmatprep.subr.bf16.mxu0 %v103
  %163 = vmatpush1.bf16.msra.mxu0 %v102
  %164 = vmatprep.subr.bf16.mxu0 %v107
  %165 = vmatpush1.bf16.msra.mxu0 %v106
  %166 = vmatprep.subr.bf16.mxu0 0
  %167 = vmatpush1.bf16.msra.mxu0 0
  %168 = vmatprep.subr.bf16.mxu0 0
  %169 = vmatpush1.bf16.msra.mxu0 0
  %170 = vmatprep.subr.bf16.mxu0 0
  %171 = vmatpush1.bf16.msra.mxu0 0
  %172 = vmatprep.subr.bf16.mxu0 0
  %173 = vmatpush1.bf16.msra.mxu0 0
  %174 = vmatprep.subr.bf16.mxu0 0
  %175 = vmatpush1.bf16.msra.mxu0 0
  %176 = vmatprep.subr.bf16.mxu0 0
  %177 = vmatpush1.bf16.msra.mxu0 0
  %178 = vmatprep.subr.bf16.mxu0 0
  %179 = vmatpush1.bf16.msra.mxu0 0
  %180 = vmatprep.subr.bf16.mxu0 0
  %181 = vmatpush1.bf16.msra.mxu0 0
  %182 = vmatprep.mubr.bf16.mxu0 0
  %183 = vmatmul.mubr.bf16.gmra.mrb[0].mxu0 0
  %v184 = vpop.f32.mrb[0].mxu0
  %v185 = vadd.f32 0.0, %v184
  %v186 = vpop.f32.mrb[0].mxu0
  %v187 = vadd.f32 0.0, %v186
  %v188 = vpop.f32.mrb[0].mxu0
  %v189 = vpop.f32.mrb[0].mxu0
  %190 = vdwg.mxu0
  %v195 = vcombine.low %v144, %v146
  %v196 = vcombine.low %v185, %v187
  %v198 = vunpack.c.l.s4 1983009808
  %v199 = vunpack.c.0.s8 %v198
  %v200 = vlaneseq
  %v201 = vshrl.u32 %v200, 7
  %v202 = vsub.s32 %v199, %v201
  %v203 = vrot.slane %v195, %v202
  %v205 = vunpack.c.l.s4 1983009808
  %v206 = vunpack.c.0.s8 %v205
  %v207 = vlaneseq
  %v208 = vshrl.u32 %v207, 7
  %v209 = vsub.s32 %v206, %v208
  %v210 = vrot.slane %v196, %v209
  %v211 = vcombine.low %v203, %v210
  %v213 = vadd.f32 %v108, %v211
  %v214 = vxor.u32 %v213, 2147483648
  %v215 = vmul.f32 %v214, 1.442695
  %v216 = vpow.pop %v215
  %v217 = vadd.f32 %v216, 1.0
  %v218 = vrcp.pop %v217
  %v219 = vmul.f32 1.0, %v218
  %v221 = vrot.slane %v213, 6
  %v223 = vtanh.pop %v221
  %v225 = vrot.slane %v219, 2
  %v227 = vmul.f32 %v225, 0.0
  %v228 = vmul.f32 %v219, %v223
  %v229 = vadd.f32 %v227, %v228
  %v230 = vtanh.pop %v229
  %v231 = vrot.slane %v219, 4
  %v233 = vmul.f32 %v231, %v230
  %234 = vst [vmem:[%s2] sm:$0x3] %v233
  %s235 = scalar_lea.vmem %s0, 8
  %v236 = vld [vmem:[%s235] sm:$0xff]
  %v237 = vpack.c.bf16 %v233, %v233
  %238 = vmatprep.subr.bf16.mxu0 %v77
  %239 = vmatpush1.bf16.msra.mxu0 %v76
  %240 = vmatprep.subr.bf16.mxu0 %v81
  %241 = vmatpush1.bf16.msra.mxu0 %v80
  %242 = vmatprep.subr.bf16.mxu0 %v85
  %243 = vmatpush1.bf16.msra.mxu0 %v84
  %244 = vmatprep.subr.bf16.mxu0 %v89
  %245 = vmatpush1.bf16.msra.mxu0 %v88
  %246 = vmatprep.subr.bf16.mxu0 %v93
  %247 = vmatpush1.bf16.msra.mxu0 %v92
  %248 = vmatprep.subr.bf16.mxu0 %v97
  %249 = vmatpush1.bf16.msra.mxu0 %v96
  %250 = vmatprep.subr.bf16.mxu0 %v101
  %251 = vmatpush1.bf16.msra.mxu0 %v100
  %252 = vmatprep.subr.bf16.mxu0 %v105
  %253 = vmatpush1.bf16.msra.mxu0 %v104
  %254 = vmatprep.subr.bf16.mxu0 0
  %255 = vmatpush1.bf16.msra.mxu0 0
  %256 = vmatprep.subr.bf16.mxu0 0
  %257 = vmatpush1.bf16.msra.mxu0 0
  %258 = vmatprep.subr.bf16.mxu0 0
  %259 = vmatpush1.bf16.msra.mxu0 0
  %260 = vmatprep.subr.bf16.mxu0 0
  %261 = vmatpush1.bf16.msra.mxu0 0
  %262 = vmatprep.subr.bf16.mxu0 0
  %263 = vmatpush1.bf16.msra.mxu0 0
  %264 = vmatprep.subr.bf16.mxu0 0
  %265 = vmatpush1.bf16.msra.mxu0 0
  %266 = vmatprep.subr.bf16.mxu0 0
  %267 = vmatpush1.bf16.msra.mxu0 0
  %268 = vmatprep.subr.bf16.mxu0 0
  %269 = vmatpush1.bf16.msra.mxu0 0
  %270 = vmatprep.mubr.bf16.mxu0 0
  %271 = vmatmul.mubr.bf16.gmra.mrb[0].mxu0 %v237
  %v272 = vpop.f32.mrb[0].mxu0
  %v273 = vadd.f32 0.0, %v272
  %v274 = vpop.f32.mrb[0].mxu0
  %v275 = vadd.f32 0.0, %v274
  %v276 = vpop.f32.mrb[0].mxu0
  %v277 = vpop.f32.mrb[0].mxu0
  %278 = vdwg.mxu0
  %279 = vmatprep.subr.bf16.mxu0 %v79
  %280 = vmatpush1.bf16.msra.mxu0 %v78
  %281 = vmatprep.subr.bf16.mxu0 %v83
  %282 = vmatpush1.bf16.msra.mxu0 %v82
  %283 = vmatprep.subr.bf16.mxu0 %v87
  %284 = vmatpush1.bf16.msra.mxu0 %v86
  %285 = vmatprep.subr.bf16.mxu0 %v91
  %286 = vmatpush1.bf16.msra.mxu0 %v90
  %287 = vmatprep.subr.bf16.mxu0 %v95
  %288 = vmatpush1.bf16.msra.mxu0 %v94
  %289 = vmatprep.subr.bf16.mxu0 %v99
  %290 = vmatpush1.bf16.msra.mxu0 %v98
  %291 = vmatprep.subr.bf16.mxu0 %v103
  %292 = vmatpush1.bf16.msra.mxu0 %v102
  %293 = vmatprep.subr.bf16.mxu0 %v107
  %294 = vmatpush1.bf16.msra.mxu0 %v106
  %295 = vmatprep.subr.bf16.mxu0 0
  %296 = vmatpush1.bf16.msra.mxu0 0
  %297 = vmatprep.subr.bf16.mxu0 0
  %298 = vmatpush1.bf16.msra.mxu0 0
  %299 = vmatprep.subr.bf16.mxu0 0
  %300 = vmatpush1.bf16.msra.mxu0 0
  %301 = vmatprep.subr.bf16.mxu0 0
  %302 = vmatpush1.bf16.msra.mxu0 0
  %303 = vmatprep.subr.bf16.mxu0 0
  %304 = vmatpush1.bf16.msra.mxu0 0
  %305 = vmatprep.subr.bf16.mxu0 0
  %306 = vmatpush1.bf16.msra.mxu0 0
  %307 = vmatprep.subr.bf16.mxu0 0
  %308 = vmatpush1.bf16.msra.mxu0 0
  %309 = vmatprep.subr.bf16.mxu0 0
  %310 = vmatpush1.bf16.msra.mxu0 0
  %311 = vmatprep.mubr.bf16.mxu0 0
  %312 = vmatmul.mubr.bf16.gmra.mrb[0].mxu0 %v237
  %v313 = vpop.f32.mrb[0].mxu0
  %v314 = vadd.f32 0.0, %v313
  %v315 = vpop.f32.mrb[0].mxu0
  %v316 = vadd.f32 0.0, %v315
  %v317 = vpop.f32.mrb[0].mxu0
  %v318 = vpop.f32.mrb[0].mxu0
  %319 = vdwg.mxu0
  %v324 = vcombine.low %v273, %v275
  %v325 = vcombine.low %v314, %v316
  %v327 = vunpack.c.l.s4 1983009808
  %v328 = vunpack.c.0.s8 %v327
  %v329 = vlaneseq
  %v330 = vshrl.u32 %v329, 7
  %v331 = vsub.s32 %v328, %v330
  %v332 = vrot.slane %v324, %v331
  %v334 = vunpack.c.l.s4 1983009808
  %v335 = vunpack.c.0.s8 %v334
  %v336 = vlaneseq
  %v337 = vshrl.u32 %v336, 7
  %v338 = vsub.s32 %v335, %v337
  %v339 = vrot.slane %v325, %v338
  %v340 = vcombine.low %v332, %v339
  %v342 = vadd.f32 %v236, %v340
  %v343 = vxor.u32 %v342, 2147483648
  %v344 = vmul.f32 %v343, 1.442695
  %v345 = vpow.pop %v344
  %v346 = vadd.f32 %v345, 1.0
  %v347 = vrcp.pop %v346
  %v348 = vmul.f32 1.0, %v347
  %v350 = vrot.slane %v342, 6
  %v352 = vtanh.pop %v350
  %v354 = vrot.slane %v348, 2
  %v356 = vmul.f32 %v354, %v229
  %v357 = vmul.f32 %v348, %v352
  %v358 = vadd.f32 %v356, %v357
  %v359 = vtanh.pop %v358
  %v360 = vrot.slane %v348, 4
  %v362 = vmul.f32 %v360, %v359
  %s363 = scalar_lea.vmem %s2, 2
  %364 = vst [vmem:[%s363] sm:$0x3] %v362
  %s365 = scalar_lea.vmem %s0, 16
  %v366 = vld [vmem:[%s365] sm:$0xff]
  %v367 = vpack.c.bf16 %v362, %v362
  %368 = vmatprep.subr.bf16.mxu0 %v77
  %369 = vmatpush1.bf16.msra.mxu0 %v76
  %370 = vmatprep.subr.bf16.mxu0 %v81
  %371 = vmatpush1.bf16.msra.mxu0 %v80
  %372 = vmatprep.subr.bf16.mxu0 %v85
  %373 = vmatpush1.bf16.msra.mxu0 %v84
  %374 = vmatprep.subr.bf16.mxu0 %v89
  %375 = vmatpush1.bf16.msra.mxu0 %v88
  %376 = vmatprep.subr.bf16.mxu0 %v93
  %377 = vmatpush1.bf16.msra.mxu0 %v92
  %378 = vmatprep.subr.bf16.mxu0 %v97
  %379 = vmatpush1.bf16.msra.mxu0 %v96
  %380 = vmatprep.subr.bf16.mxu0 %v101
  %381 = vmatpush1.bf16.msra.mxu0 %v100
  %382 = vmatprep.subr.bf16.mxu0 %v105
  %383 = vmatpush1.bf16.msra.mxu0 %v104
  %384 = vmatprep.subr.bf16.mxu0 0
  %385 = vmatpush1.bf16.msra.mxu0 0
  %386 = vmatprep.subr.bf16.mxu0 0
  %387 = vmatpush1.bf16.msra.mxu0 0
  %388 = vmatprep.subr.bf16.mxu0 0
  %389 = vmatpush1.bf16.msra.mxu0 0
  %390 = vmatprep.subr.bf16.mxu0 0
  %391 = vmatpush1.bf16.msra.mxu0 0
  %392 = vmatprep.subr.bf16.mxu0 0
  %393 = vmatpush1.bf16.msra.mxu0 0
  %394 = vmatprep.subr.bf16.mxu0 0
  %395 = vmatpush1.bf16.msra.mxu0 0
  %396 = vmatprep.subr.bf16.mxu0 0
  %397 = vmatpush1.bf16.msra.mxu0 0
  %398 = vmatprep.subr.bf16.mxu0 0
  %399 = vmatpush1.bf16.msra.mxu0 0
  %400 = vmatprep.mubr.bf16.mxu0 0
  %401 = vmatmul.mubr.bf16.gmra.mrb[0].mxu0 %v367
  %v402 = vpop.f32.mrb[0].mxu0
  %v403 = vadd.f32 0.0, %v402
  %v404 = vpop.f32.mrb[0].mxu0
  %v405 = vadd.f32 0.0, %v404
  %v406 = vpop.f32.mrb[0].mxu0
  %v407 = vpop.f32.mrb[0].mxu0
  %408 = vdwg.mxu0
  %409 = vmatprep.subr.bf16.mxu0 %v79
  %410 = vmatpush1.bf16.msra.mxu0 %v78
  %411 = vmatprep.subr.bf16.mxu0 %v83
  %412 = vmatpush1.bf16.msra.mxu0 %v82
  %413 = vmatprep.subr.bf16.mxu0 %v87
  %414 = vmatpush1.bf16.msra.mxu0 %v86
  %415 = vmatprep.subr.bf16.mxu0 %v91
  %416 = vmatpush1.bf16.msra.mxu0 %v90
  %417 = vmatprep.subr.bf16.mxu0 %v95
  %418 = vmatpush1.bf16.msra.mxu0 %v94
  %419 = vmatprep.subr.bf16.mxu0 %v99
  %420 = vmatpush1.bf16.msra.mxu0 %v98
  %421 = vmatprep.subr.bf16.mxu0 %v103
  %422 = vmatpush1.bf16.msra.mxu0 %v102
  %423 = vmatprep.subr.bf16.mxu0 %v107
  %424 = vmatpush1.bf16.msra.mxu0 %v106
  %425 = vmatprep.subr.bf16.mxu0 0
  %426 = vmatpush1.bf16.msra.mxu0 0
  %427 = vmatprep.subr.bf16.mxu0 0
  %428 = vmatpush1.bf16.msra.mxu0 0
  %429 = vmatprep.subr.bf16.mxu0 0
  %430 = vmatpush1.bf16.msra.mxu0 0
  %431 = vmatprep.subr.bf16.mxu0 0
  %432 = vmatpush1.bf16.msra.mxu0 0
  %433 = vmatprep.subr.bf16.mxu0 0
  %434 = vmatpush1.bf16.msra.mxu0 0
  %435 = vmatprep.subr.bf16.mxu0 0
  %436 = vmatpush1.bf16.msra.mxu0 0
  %437 = vmatprep.subr.bf16.mxu0 0
  %438 = vmatpush1.bf16.msra.mxu0 0
  %439 = vmatprep.subr.bf16.mxu0 0
  %440 = vmatpush1.bf16.msra.mxu0 0
  %441 = vmatprep.mubr.bf16.mxu0 0
  %442 = vmatmul.mubr.bf16.gmra.mrb[0].mxu0 %v367
  %v443 = vpop.f32.mrb[0].mxu0
  %v444 = vadd.f32 0.0, %v443
  %v445 = vpop.f32.mrb[0].mxu0
  %v446 = vadd.f32 0.0, %v445
  %v447 = vpop.f32.mrb[0].mxu0
  %v448 = vpop.f32.mrb[0].mxu0
  %449 = vdwg.mxu0
  %v454 = vcombine.low %v403, %v405
  %v455 = vcombine.low %v444, %v446
  %v457 = vunpack.c.l.s4 1983009808
  %v458 = vunpack.c.0.s8 %v457
  %v459 = vlaneseq
  %v460 = vshrl.u32 %v459, 7
  %v461 = vsub.s32 %v458, %v460
  %v462 = vrot.slane %v454, %v461
  %v464 = vunpack.c.l.s4 1983009808
  %v465 = vunpack.c.0.s8 %v464
  %v466 = vlaneseq
  %v467 = vshrl.u32 %v466, 7
  %v468 = vsub.s32 %v465, %v467
  %v469 = vrot.slane %v455, %v468
  %v470 = vcombine.low %v462, %v469
  %v472 = vadd.f32 %v366, %v470
  %v473 = vxor.u32 %v472, 2147483648
  %v474 = vmul.f32 %v473, 1.442695
  %v475 = vpow.pop %v474
  %v476 = vadd.f32 %v475, 1.0
  %v477 = vrcp.pop %v476
  %v478 = vmul.f32 1.0, %v477
  %v480 = vrot.slane %v472, 6
  %v482 = vtanh.pop %v480
  %v484 = vrot.slane %v478, 2
  %v486 = vmul.f32 %v484, %v358
  %v487 = vmul.f32 %v478, %v482
  %v488 = vadd.f32 %v486, %v487
  %v489 = vtanh.pop %v488
  %v490 = vrot.slane %v478, 4
  %v492 = vmul.f32 %v490, %v489
  %s493 = scalar_lea.vmem %s2, 4
  %494 = vst [vmem:[%s493] sm:$0x3] %v492
  %s495 = scalar_lea.vmem %s0, 24
  %v496 = vld [vmem:[%s495] sm:$0xff]
  %v497 = vpack.c.bf16 %v492, %v492
  %498 = vmatprep.subr.bf16.mxu0 %v77
  %499 = vmatpush1.bf16.msra.mxu0 %v76
  %500 = vmatprep.subr.bf16.mxu0 %v81
  %501 = vmatpush1.bf16.msra.mxu0 %v80
  %502 = vmatprep.subr.bf16.mxu0 %v85
  %503 = vmatpush1.bf16.msra.mxu0 %v84
  %504 = vmatprep.subr.bf16.mxu0 %v89
  %505 = vmatpush1.bf16.msra.mxu0 %v88
  %506 = vmatprep.subr.bf16.mxu0 %v93
  %507 = vmatpush1.bf16.msra.mxu0 %v92
  %508 = vmatprep.subr.bf16.mxu0 %v97
  %509 = vmatpush1.bf16.msra.mxu0 %v96
  %510 = vmatprep.subr.bf16.mxu0 %v101
  %511 = vmatpush1.bf16.msra.mxu0 %v100
  %512 = vmatprep.subr.bf16.mxu0 %v105
  %513 = vmatpush1.bf16.msra.mxu0 %v104
  %514 = vmatprep.subr.bf16.mxu0 0
  %515 = vmatpush1.bf16.msra.mxu0 0
  %516 = vmatprep.subr.bf16.mxu0 0
  %517 = vmatpush1.bf16.msra.mxu0 0
  %518 = vmatprep.subr.bf16.mxu0 0
  %519 = vmatpush1.bf16.msra.mxu0 0
  %520 = vmatprep.subr.bf16.mxu0 0
  %521 = vmatpush1.bf16.msra.mxu0 0
  %522 = vmatprep.subr.bf16.mxu0 0
  %523 = vmatpush1.bf16.msra.mxu0 0
  %524 = vmatprep.subr.bf16.mxu0 0
  %525 = vmatpush1.bf16.msra.mxu0 0
  %526 = vmatprep.subr.bf16.mxu0 0
  %527 = vmatpush1.bf16.msra.mxu0 0
  %528 = vmatprep.subr.bf16.mxu0 0
  %529 = vmatpush1.bf16.msra.mxu0 0
  %530 = vmatprep.mubr.bf16.mxu0 0
  %531 = vmatmul.mubr.bf16.gmra.mrb[0].mxu0 %v497
  %v532 = vpop.f32.mrb[0].mxu0
  %v533 = vadd.f32 0.0, %v532
  %v534 = vpop.f32.mrb[0].mxu0
  %v535 = vadd.f32 0.0, %v534
  %v536 = vpop.f32.mrb[0].mxu0
  %v537 = vpop.f32.mrb[0].mxu0
  %538 = vdwg.mxu0
  %539 = vmatprep.subr.bf16.mxu0 %v79
  %540 = vmatpush1.bf16.msra.mxu0 %v78
  %541 = vmatprep.subr.bf16.mxu0 %v83
  %542 = vmatpush1.bf16.msra.mxu0 %v82
  %543 = vmatprep.subr.bf16.mxu0 %v87
  %544 = vmatpush1.bf16.msra.mxu0 %v86
  %545 = vmatprep.subr.bf16.mxu0 %v91
  %546 = vmatpush1.bf16.msra.mxu0 %v90
  %547 = vmatprep.subr.bf16.mxu0 %v95
  %548 = vmatpush1.bf16.msra.mxu0 %v94
  %549 = vmatprep.subr.bf16.mxu0 %v99
  %550 = vmatpush1.bf16.msra.mxu0 %v98
  %551 = vmatprep.subr.bf16.mxu0 %v103
  %552 = vmatpush1.bf16.msra.mxu0 %v102
  %553 = vmatprep.subr.bf16.mxu0 %v107
  %554 = vmatpush1.bf16.msra.mxu0 %v106
  %555 = vmatprep.subr.bf16.mxu0 0
  %556 = vmatpush1.bf16.msra.mxu0 0
  %557 = vmatprep.subr.bf16.mxu0 0
  %558 = vmatpush1.bf16.msra.mxu0 0
  %559 = vmatprep.subr.bf16.mxu0 0
  %560 = vmatpush1.bf16.msra.mxu0 0
  %561 = vmatprep.subr.bf16.mxu0 0
  %562 = vmatpush1.bf16.msra.mxu0 0
  %563 = vmatprep.subr.bf16.mxu0 0
  %564 = vmatpush1.bf16.msra.mxu0 0
  %565 = vmatprep.subr.bf16.mxu0 0
  %566 = vmatpush1.bf16.msra.mxu0 0
  %567 = vmatprep.subr.bf16.mxu0 0
  %568 = vmatpush1.bf16.msra.mxu0 0
  %569 = vmatprep.subr.bf16.mxu0 0
  %570 = vmatpush1.bf16.msra.mxu0 0
  %571 = vmatprep.mubr.bf16.mxu0 0
  %572 = vmatmul.mubr.bf16.gmra.mrb[0].mxu0 %v497
  %v573 = vpop.f32.mrb[0].mxu0
  %v574 = vadd.f32 0.0, %v573
  %v575 = vpop.f32.mrb[0].mxu0
  %v576 = vadd.f32 0.0, %v575
  %v577 = vpop.f32.mrb[0].mxu0
  %v578 = vpop.f32.mrb[0].mxu0
  %579 = vdwg.mxu0
  %v584 = vcombine.low %v533, %v535
  %v585 = vcombine.low %v574, %v576
  %v587 = vunpack.c.l.s4 1983009808
  %v588 = vunpack.c.0.s8 %v587
  %v589 = vlaneseq
  %v590 = vshrl.u32 %v589, 7
  %v591 = vsub.s32 %v588, %v590
  %v592 = vrot.slane %v584, %v591
  %v594 = vunpack.c.l.s4 1983009808
  %v595 = vunpack.c.0.s8 %v594
  %v596 = vlaneseq
  %v597 = vshrl.u32 %v596, 7
  %v598 = vsub.s32 %v595, %v597
  %v599 = vrot.slane %v585, %v598
  %v600 = vcombine.low %v592, %v599
  %v602 = vadd.f32 %v496, %v600
  %v603 = vxor.u32 %v602, 2147483648
  %v604 = vmul.f32 %v603, 1.442695
  %v605 = vpow.pop %v604
  %v606 = vadd.f32 %v605, 1.0
  %v607 = vrcp.pop %v606
  %v608 = vmul.f32 1.0, %v607
  %v610 = vrot.slane %v602, 6
  %v612 = vtanh.pop %v610
  %v614 = vrot.slane %v608, 2
  %v616 = vmul.f32 %v614, %v488
  %v617 = vmul.f32 %v608, %v612
  %v618 = vadd.f32 %v616, %v617
  %v619 = vtanh.pop %v618
  %v620 = vrot.slane %v608, 4
  %v622 = vmul.f32 %v620, %v619
  %s623 = scalar_lea.vmem %s2, 6
  %624 = vst [vmem:[%s623] sm:$0x3] %v622
  %s625 = scalar_lea.vmem %s0, 32
  %v626 = vld [vmem:[%s625] sm:$0xff]
  %v627 = vpack.c.bf16 %v622, %v622
  %628 = vmatprep.subr.bf16.mxu0 %v77
  %629 = vmatpush1.bf16.msra.mxu0 %v76
  %630 = vmatprep.subr.bf16.mxu0 %v81
  %631 = vmatpush1.bf16.msra.mxu0 %v80
  %632 = vmatprep.subr.bf16.mxu0 %v85
  %633 = vmatpush1.bf16.msra.mxu0 %v84
  %634 = vmatprep.subr.bf16.mxu0 %v89
  %635 = vmatpush1.bf16.msra.mxu0 %v88
  %636 = vmatprep.subr.bf16.mxu0 %v93
  %637 = vmatpush1.bf16.msra.mxu0 %v92
  %638 = vmatprep.subr.bf16.mxu0 %v97
  %639 = vmatpush1.bf16.msra.mxu0 %v96
  %640 = vmatprep.subr.bf16.mxu0 %v101
  %641 = vmatpush1.bf16.msra.mxu0 %v100
  %642 = vmatprep.subr.bf16.mxu0 %v105
  %643 = vmatpush1.bf16.msra.mxu0 %v104
  %644 = vmatprep.subr.bf16.mxu0 0
  %645 = vmatpush1.bf16.msra.mxu0 0
  %646 = vmatprep.subr.bf16.mxu0 0
  %647 = vmatpush1.bf16.msra.mxu0 0
  %648 = vmatprep.subr.bf16.mxu0 0
  %649 = vmatpush1.bf16.msra.mxu0 0
  %650 = vmatprep.subr.bf16.mxu0 0
  %651 = vmatpush1.bf16.msra.mxu0 0
  %652 = vmatprep.subr.bf16.mxu0 0
  %653 = vmatpush1.bf16.msra.mxu0 0
  %654 = vmatprep.subr.bf16.mxu0 0
  %655 = vmatpush1.bf16.msra.mxu0 0
  %656 = vmatprep.subr.bf16.mxu0 0
  %657 = vmatpush1.bf16.msra.mxu0 0
  %658 = vmatprep.subr.bf16.mxu0 0
  %659 = vmatpush1.bf16.msra.mxu0 0
  %660 = vmatprep.mubr.bf16.mxu0 0
  %661 = vmatmul.mubr.bf16.gmra.mrb[0].mxu0 %v627
  %v662 = vpop.f32.mrb[0].mxu0
  %v663 = vadd.f32 0.0, %v662
  %v664 = vpop.f32.mrb[0].mxu0
  %v665 = vadd.f32 0.0, %v664
  %v666 = vpop.f32.mrb[0].mxu0
  %v667 = vpop.f32.mrb[0].mxu0
  %668 = vdwg.mxu0
  %669 = vmatprep.subr.bf16.mxu0 %v79
  %670 = vmatpush1.bf16.msra.mxu0 %v78
  %671 = vmatprep.subr.bf16.mxu0 %v83
  %672 = vmatpush1.bf16.msra.mxu0 %v82
  %673 = vmatprep.subr.bf16.mxu0 %v87
  %674 = vmatpush1.bf16.msra.mxu0 %v86
  %675 = vmatprep.subr.bf16.mxu0 %v91
  %676 = vmatpush1.bf16.msra.mxu0 %v90
  %677 = vmatprep.subr.bf16.mxu0 %v95
  %678 = vmatpush1.bf16.msra.mxu0 %v94
  %679 = vmatprep.subr.bf16.mxu0 %v99
  %680 = vmatpush1.bf16.msra.mxu0 %v98
  %681 = vmatprep.subr.bf16.mxu0 %v103
  %682 = vmatpush1.bf16.msra.mxu0 %v102
  %683 = vmatprep.subr.bf16.mxu0 %v107
  %684 = vmatpush1.bf16.msra.mxu0 %v106
  %685 = vmatprep.subr.bf16.mxu0 0
  %686 = vmatpush1.bf16.msra.mxu0 0
  %687 = vmatprep.subr.bf16.mxu0 0
  %688 = vmatpush1.bf16.msra.mxu0 0
  %689 = vmatprep.subr.bf16.mxu0 0
  %690 = vmatpush1.bf16.msra.mxu0 0
  %691 = vmatprep.subr.bf16.mxu0 0
  %692 = vmatpush1.bf16.msra.mxu0 0
  %693 = vmatprep.subr.bf16.mxu0 0
  %694 = vmatpush1.bf16.msra.mxu0 0
  %695 = vmatprep.subr.bf16.mxu0 0
  %696 = vmatpush1.bf16.msra.mxu0 0
  %697 = vmatprep.subr.bf16.mxu0 0
  %698 = vmatpush1.bf16.msra.mxu0 0
  %699 = vmatprep.subr.bf16.mxu0 0
  %700 = vmatpush1.bf16.msra.mxu0 0
  %701 = vmatprep.mubr.bf16.mxu0 0
  %702 = vmatmul.mubr.bf16.gmra.mrb[0].mxu0 %v627
  %v703 = vpop.f32.mrb[0].mxu0
  %v704 = vadd.f32 0.0, %v703
  %v705 = vpop.f32.mrb[0].mxu0
  %v706 = vadd.f32 0.0, %v705
  %v707 = vpop.f32.mrb[0].mxu0
  %v708 = vpop.f32.mrb[0].mxu0
  %709 = vdwg.mxu0
  %v714 = vcombine.low %v663, %v665
  %v715 = vcombine.low %v704, %v706
  %v717 = vunpack.c.l.s4 1983009808
  %v718 = vunpack.c.0.s8 %v717
  %v719 = vlaneseq
  %v720 = vshrl.u32 %v719, 7
  %v721 = vsub.s32 %v718, %v720
  %v722 = vrot.slane %v714, %v721
  %v724 = vunpack.c.l.s4 1983009808
  %v725 = vunpack.c.0.s8 %v724
  %v726 = vlaneseq
  %v727 = vshrl.u32 %v726, 7
  %v728 = vsub.s32 %v725, %v727
  %v729 = vrot.slane %v715, %v728
  %v730 = vcombine.low %v722, %v729
  %v732 = vadd.f32 %v626, %v730
  %v733 = vxor.u32 %v732, 2147483648
  %v734 = vmul.f32 %v733, 1.442695
  %v735 = vpow.pop %v734
  %v736 = vadd.f32 %v735, 1.0
  %v737 = vrcp.pop %v736
  %v738 = vmul.f32 1.0, %v737
  %v740 = vrot.slane %v732, 6
  %v742 = vtanh.pop %v740
  %v744 = vrot.slane %v738, 2
  %v746 = vmul.f32 %v744, %v618
  %v747 = vmul.f32 %v738, %v742
  %v748 = vadd.f32 %v746, %v747
  %v749 = vtanh.pop %v748
  %v750 = vrot.slane %v738, 4
  %v752 = vmul.f32 %v750, %v749
  %s753 = scalar_lea.vmem %s2, 8
  %754 = vst [vmem:[%s753] sm:$0x3] %v752
  %s755 = scalar_lea.vmem %s0, 40
  %v756 = vld [vmem:[%s755] sm:$0xff]
  %v757 = vpack.c.bf16 %v752, %v752
  %758 = vmatprep.subr.bf16.mxu0 %v77
  %759 = vmatpush1.bf16.msra.mxu0 %v76
  %760 = vmatprep.subr.bf16.mxu0 %v81
  %761 = vmatpush1.bf16.msra.mxu0 %v80
  %762 = vmatprep.subr.bf16.mxu0 %v85
  %763 = vmatpush1.bf16.msra.mxu0 %v84
  %764 = vmatprep.subr.bf16.mxu0 %v89
  %765 = vmatpush1.bf16.msra.mxu0 %v88
  %766 = vmatprep.subr.bf16.mxu0 %v93
  %767 = vmatpush1.bf16.msra.mxu0 %v92
  %768 = vmatprep.subr.bf16.mxu0 %v97
  %769 = vmatpush1.bf16.msra.mxu0 %v96
  %770 = vmatprep.subr.bf16.mxu0 %v101
  %771 = vmatpush1.bf16.msra.mxu0 %v100
  %772 = vmatprep.subr.bf16.mxu0 %v105
  %773 = vmatpush1.bf16.msra.mxu0 %v104
  %774 = vmatprep.subr.bf16.mxu0 0
  %775 = vmatpush1.bf16.msra.mxu0 0
  %776 = vmatprep.subr.bf16.mxu0 0
  %777 = vmatpush1.bf16.msra.mxu0 0
  %778 = vmatprep.subr.bf16.mxu0 0
  %779 = vmatpush1.bf16.msra.mxu0 0
  %780 = vmatprep.subr.bf16.mxu0 0
  %781 = vmatpush1.bf16.msra.mxu0 0
  %782 = vmatprep.subr.bf16.mxu0 0
  %783 = vmatpush1.bf16.msra.mxu0 0
  %784 = vmatprep.subr.bf16.mxu0 0
  %785 = vmatpush1.bf16.msra.mxu0 0
  %786 = vmatprep.subr.bf16.mxu0 0
  %787 = vmatpush1.bf16.msra.mxu0 0
  %788 = vmatprep.subr.bf16.mxu0 0
  %789 = vmatpush1.bf16.msra.mxu0 0
  %790 = vmatprep.mubr.bf16.mxu0 0
  %791 = vmatmul.mubr.bf16.gmra.mrb[0].mxu0 %v757
  %v792 = vpop.f32.mrb[0].mxu0
  %v793 = vadd.f32 0.0, %v792
  %v794 = vpop.f32.mrb[0].mxu0
  %v795 = vadd.f32 0.0, %v794
  %v796 = vpop.f32.mrb[0].mxu0
  %v797 = vpop.f32.mrb[0].mxu0
  %798 = vdwg.mxu0
  %799 = vmatprep.subr.bf16.mxu0 %v79
  %800 = vmatpush1.bf16.msra.mxu0 %v78
  %801 = vmatprep.subr.bf16.mxu0 %v83
  %802 = vmatpush1.bf16.msra.mxu0 %v82
  %803 = vmatprep.subr.bf16.mxu0 %v87
  %804 = vmatpush1.bf16.msra.mxu0 %v86
  %805 = vmatprep.subr.bf16.mxu0 %v91
  %806 = vmatpush1.bf16.msra.mxu0 %v90
  %807 = vmatprep.subr.bf16.mxu0 %v95
  %808 = vmatpush1.bf16.msra.mxu0 %v94
  %809 = vmatprep.subr.bf16.mxu0 %v99
  %810 = vmatpush1.bf16.msra.mxu0 %v98
  %811 = vmatprep.subr.bf16.mxu0 %v103
  %812 = vmatpush1.bf16.msra.mxu0 %v102
  %813 = vmatprep.subr.bf16.mxu0 %v107
  %814 = vmatpush1.bf16.msra.mxu0 %v106
  %815 = vmatprep.subr.bf16.mxu0 0
  %816 = vmatpush1.bf16.msra.mxu0 0
  %817 = vmatprep.subr.bf16.mxu0 0
  %818 = vmatpush1.bf16.msra.mxu0 0
  %819 = vmatprep.subr.bf16.mxu0 0
  %820 = vmatpush1.bf16.msra.mxu0 0
  %821 = vmatprep.subr.bf16.mxu0 0
  %822 = vmatpush1.bf16.msra.mxu0 0
  %823 = vmatprep.subr.bf16.mxu0 0
  %824 = vmatpush1.bf16.msra.mxu0 0
  %825 = vmatprep.subr.bf16.mxu0 0
  %826 = vmatpush1.bf16.msra.mxu0 0
  %827 = vmatprep.subr.bf16.mxu0 0
  %828 = vmatpush1.bf16.msra.mxu0 0
  %829 = vmatprep.subr.bf16.mxu0 0
  %830 = vmatpush1.bf16.msra.mxu0 0
  %831 = vmatprep.mubr.bf16.mxu0 0
  %832 = vmatmul.mubr.bf16.gmra.mrb[0].mxu0 %v757
  %v833 = vpop.f32.mrb[0].mxu0
  %v834 = vadd.f32 0.0, %v833
  %v835 = vpop.f32.mrb[0].mxu0
  %v836 = vadd.f32 0.0, %v835
  %v837 = vpop.f32.mrb[0].mxu0
  %v838 = vpop.f32.mrb[0].mxu0
  %839 = vdwg.mxu0
  %v844 = vcombine.low %v793, %v795
  %v845 = vcombine.low %v834, %v836
  %v847 = vunpack.c.l.s4 1983009808
  %v848 = vunpack.c.0.s8 %v847
  %v849 = vlaneseq
  %v850 = vshrl.u32 %v849, 7
  %v851 = vsub.s32 %v848, %v850
  %v852 = vrot.slane %v844, %v851
  %v854 = vunpack.c.l.s4 1983009808
  %v855 = vunpack.c.0.s8 %v854
  %v856 = vlaneseq
  %v857 = vshrl.u32 %v856, 7
  %v858 = vsub.s32 %v855, %v857
  %v859 = vrot.slane %v845, %v858
  %v860 = vcombine.low %v852, %v859
  %v862 = vadd.f32 %v756, %v860
  %v863 = vxor.u32 %v862, 2147483648
  %v864 = vmul.f32 %v863, 1.442695
  %v865 = vpow.pop %v864
  %v866 = vadd.f32 %v865, 1.0
  %v867 = vrcp.pop %v866
  %v868 = vmul.f32 1.0, %v867
  %v870 = vrot.slane %v862, 6
  %v872 = vtanh.pop %v870
  %v874 = vrot.slane %v868, 2
  %v876 = vmul.f32 %v874, %v748
  %v877 = vmul.f32 %v868, %v872
  %v878 = vadd.f32 %v876, %v877
  %v879 = vtanh.pop %v878
  %v880 = vrot.slane %v868, 4
  %v882 = vmul.f32 %v880, %v879
  %s883 = scalar_lea.vmem %s2, 10
  %884 = vst [vmem:[%s883] sm:$0x3] %v882
  %s885 = scalar_lea.vmem %s0, 48
  %v886 = vld [vmem:[%s885] sm:$0xff]
  %v887 = vpack.c.bf16 %v882, %v882
  %888 = vmatprep.subr.bf16.mxu0 %v77
  %889 = vmatpush1.bf16.msra.mxu0 %v76
  %890 = vmatprep.subr.bf16.mxu0 %v81
  %891 = vmatpush1.bf16.msra.mxu0 %v80
  %892 = vmatprep.subr.bf16.mxu0 %v85
  %893 = vmatpush1.bf16.msra.mxu0 %v84
  %894 = vmatprep.subr.bf16.mxu0 %v89
  %895 = vmatpush1.bf16.msra.mxu0 %v88
  %896 = vmatprep.subr.bf16.mxu0 %v93
  %897 = vmatpush1.bf16.msra.mxu0 %v92
  %898 = vmatprep.subr.bf16.mxu0 %v97
  %899 = vmatpush1.bf16.msra.mxu0 %v96
  %900 = vmatprep.subr.bf16.mxu0 %v101
  %901 = vmatpush1.bf16.msra.mxu0 %v100
  %902 = vmatprep.subr.bf16.mxu0 %v105
  %903 = vmatpush1.bf16.msra.mxu0 %v104
  %904 = vmatprep.subr.bf16.mxu0 0
  %905 = vmatpush1.bf16.msra.mxu0 0
  %906 = vmatprep.subr.bf16.mxu0 0
  %907 = vmatpush1.bf16.msra.mxu0 0
  %908 = vmatprep.subr.bf16.mxu0 0
  %909 = vmatpush1.bf16.msra.mxu0 0
  %910 = vmatprep.subr.bf16.mxu0 0
  %911 = vmatpush1.bf16.msra.mxu0 0
  %912 = vmatprep.subr.bf16.mxu0 0
  %913 = vmatpush1.bf16.msra.mxu0 0
  %914 = vmatprep.subr.bf16.mxu0 0
  %915 = vmatpush1.bf16.msra.mxu0 0
  %916 = vmatprep.subr.bf16.mxu0 0
  %917 = vmatpush1.bf16.msra.mxu0 0
  %918 = vmatprep.subr.bf16.mxu0 0
  %919 = vmatpush1.bf16.msra.mxu0 0
  %920 = vmatprep.mubr.bf16.mxu0 0
  %921 = vmatmul.mubr.bf16.gmra.mrb[0].mxu0 %v887
  %v922 = vpop.f32.mrb[0].mxu0
  %v923 = vadd.f32 0.0, %v922
  %v924 = vpop.f32.mrb[0].mxu0
  %v925 = vadd.f32 0.0, %v924
  %v926 = vpop.f32.mrb[0].mxu0
  %v927 = vpop.f32.mrb[0].mxu0
  %928 = vdwg.mxu0
  %929 = vmatprep.subr.bf16.mxu0 %v79
  %930 = vmatpush1.bf16.msra.mxu0 %v78
  %931 = vmatprep.subr.bf16.mxu0 %v83
  %932 = vmatpush1.bf16.msra.mxu0 %v82
  %933 = vmatprep.subr.bf16.mxu0 %v87
  %934 = vmatpush1.bf16.msra.mxu0 %v86
  %935 = vmatprep.subr.bf16.mxu0 %v91
  %936 = vmatpush1.bf16.msra.mxu0 %v90
  %937 = vmatprep.subr.bf16.mxu0 %v95
  %938 = vmatpush1.bf16.msra.mxu0 %v94
  %939 = vmatprep.subr.bf16.mxu0 %v99
  %940 = vmatpush1.bf16.msra.mxu0 %v98
  %941 = vmatprep.subr.bf16.mxu0 %v103
  %942 = vmatpush1.bf16.msra.mxu0 %v102
  %943 = vmatprep.subr.bf16.mxu0 %v107
  %944 = vmatpush1.bf16.msra.mxu0 %v106
  %945 = vmatprep.subr.bf16.mxu0 0
  %946 = vmatpush1.bf16.msra.mxu0 0
  %947 = vmatprep.subr.bf16.mxu0 0
  %948 = vmatpush1.bf16.msra.mxu0 0
  %949 = vmatprep.subr.bf16.mxu0 0
  %950 = vmatpush1.bf16.msra.mxu0 0
  %951 = vmatprep.subr.bf16.mxu0 0
  %952 = vmatpush1.bf16.msra.mxu0 0
  %953 = vmatprep.subr.bf16.mxu0 0
  %954 = vmatpush1.bf16.msra.mxu0 0
  %955 = vmatprep.subr.bf16.mxu0 0
  %956 = vmatpush1.bf16.msra.mxu0 0
  %957 = vmatprep.subr.bf16.mxu0 0
  %958 = vmatpush1.bf16.msra.mxu0 0
  %959 = vmatprep.subr.bf16.mxu0 0
  %960 = vmatpush1.bf16.msra.mxu0 0
  %961 = vmatprep.mubr.bf16.mxu0 0
  %962 = vmatmul.mubr.bf16.gmra.mrb[0].mxu0 %v887
  %v963 = vpop.f32.mrb[0].mxu0
  %v964 = vadd.f32 0.0, %v963
  %v965 = vpop.f32.mrb[0].mxu0
  %v966 = vadd.f32 0.0, %v965
  %v967 = vpop.f32.mrb[0].mxu0
  %v968 = vpop.f32.mrb[0].mxu0
  %969 = vdwg.mxu0
  %v974 = vcombine.low %v923, %v925
  %v975 = vcombine.low %v964, %v966
  %v977 = vunpack.c.l.s4 1983009808
  %v978 = vunpack.c.0.s8 %v977
  %v979 = vlaneseq
  %v980 = vshrl.u32 %v979, 7
  %v981 = vsub.s32 %v978, %v980
  %v982 = vrot.slane %v974, %v981
  %v984 = vunpack.c.l.s4 1983009808
  %v985 = vunpack.c.0.s8 %v984
  %v986 = vlaneseq
  %v987 = vshrl.u32 %v986, 7
  %v988 = vsub.s32 %v985, %v987
  %v989 = vrot.slane %v975, %v988
  %v990 = vcombine.low %v982, %v989
  %v992 = vadd.f32 %v886, %v990
  %v993 = vxor.u32 %v992, 2147483648
  %v994 = vmul.f32 %v993, 1.442695
  %v995 = vpow.pop %v994
  %v996 = vadd.f32 %v995, 1.0
  %v997 = vrcp.pop %v996
  %v998 = vmul.f32 1.0, %v997
  %v1000 = vrot.slane %v992, 6
  %v1002 = vtanh.pop %v1000
  %v1004 = vrot.slane %v998, 2
  %v1006 = vmul.f32 %v1004, %v878
  %v1007 = vmul.f32 %v998, %v1002
  %v1008 = vadd.f32 %v1006, %v1007
  %v1009 = vtanh.pop %v1008
  %v1010 = vrot.slane %v998, 4
  %v1012 = vmul.f32 %v1010, %v1009
  %s1013 = scalar_lea.vmem %s2, 12
  %1014 = vst [vmem:[%s1013] sm:$0x3] %v1012
  %s1015 = scalar_lea.vmem %s0, 56
  %v1016 = vld [vmem:[%s1015] sm:$0xff]
  %v1017 = vpack.c.bf16 %v1012, %v1012
  %1018 = vmatprep.subr.bf16.mxu0 %v77
  %1019 = vmatpush1.bf16.msra.mxu0 %v76
  %1020 = vmatprep.subr.bf16.mxu0 %v81
  %1021 = vmatpush1.bf16.msra.mxu0 %v80
  %1022 = vmatprep.subr.bf16.mxu0 %v85
  %1023 = vmatpush1.bf16.msra.mxu0 %v84
  %1024 = vmatprep.subr.bf16.mxu0 %v89
  %1025 = vmatpush1.bf16.msra.mxu0 %v88
  %1026 = vmatprep.subr.bf16.mxu0 %v93
  %1027 = vmatpush1.bf16.msra.mxu0 %v92
  %1028 = vmatprep.subr.bf16.mxu0 %v97
  %1029 = vmatpush1.bf16.msra.mxu0 %v96
  %1030 = vmatprep.subr.bf16.mxu0 %v101
  %1031 = vmatpush1.bf16.msra.mxu0 %v100
  %1032 = vmatprep.subr.bf16.mxu0 %v105
  %1033 = vmatpush1.bf16.msra.mxu0 %v104
  %1034 = vmatprep.subr.bf16.mxu0 0
  %1035 = vmatpush1.bf16.msra.mxu0 0
  %1036 = vmatprep.subr.bf16.mxu0 0
  %1037 = vmatpush1.bf16.msra.mxu0 0
  %1038 = vmatprep.subr.bf16.mxu0 0
  %1039 = vmatpush1.bf16.msra.mxu0 0
  %1040 = vmatprep.subr.bf16.mxu0 0
  %1041 = vmatpush1.bf16.msra.mxu0 0
  %1042 = vmatprep.subr.bf16.mxu0 0
  %1043 = vmatpush1.bf16.msra.mxu0 0
  %1044 = vmatprep.subr.bf16.mxu0 0
  %1045 = vmatpush1.bf16.msra.mxu0 0
  %1046 = vmatprep.subr.bf16.mxu0 0
  %1047 = vmatpush1.bf16.msra.mxu0 0
  %1048 = vmatprep.subr.bf16.mxu0 0
  %1049 = vmatpush1.bf16.msra.mxu0 0
  %1050 = vmatprep.mubr.bf16.mxu0 0
  %1051 = vmatmul.mubr.bf16.gmra.mrb[0].mxu0 %v1017
  %v1052 = vpop.f32.mrb[0].mxu0
  %v1053 = vadd.f32 0.0, %v1052
  %v1054 = vpop.f32.mrb[0].mxu0
  %v1055 = vadd.f32 0.0, %v1054
  %v1056 = vpop.f32.mrb[0].mxu0
  %v1057 = vpop.f32.mrb[0].mxu0
  %1058 = vdwg.mxu0
  %1059 = vmatprep.subr.bf16.mxu0 %v79
  %1060 = vmatpush1.bf16.msra.mxu0 %v78
  %1061 = vmatprep.subr.bf16.mxu0 %v83
  %1062 = vmatpush1.bf16.msra.mxu0 %v82
  %1063 = vmatprep.subr.bf16.mxu0 %v87
  %1064 = vmatpush1.bf16.msra.mxu0 %v86
  %1065 = vmatprep.subr.bf16.mxu0 %v91
  %1066 = vmatpush1.bf16.msra.mxu0 %v90
  %1067 = vmatprep.subr.bf16.mxu0 %v95
  %1068 = vmatpush1.bf16.msra.mxu0 %v94
  %1069 = vmatprep.subr.bf16.mxu0 %v99
  %1070 = vmatpush1.bf16.msra.mxu0 %v98
  %1071 = vmatprep.subr.bf16.mxu0 %v103
  %1072 = vmatpush1.bf16.msra.mxu0 %v102
  %1073 = vmatprep.subr.bf16.mxu0 %v107
  %1074 = vmatpush1.bf16.msra.mxu0 %v106
  %1075 = vmatprep.subr.bf16.mxu0 0
  %1076 = vmatpush1.bf16.msra.mxu0 0
  %1077 = vmatprep.subr.bf16.mxu0 0
  %1078 = vmatpush1.bf16.msra.mxu0 0
  %1079 = vmatprep.subr.bf16.mxu0 0
  %1080 = vmatpush1.bf16.msra.mxu0 0
  %1081 = vmatprep.subr.bf16.mxu0 0
  %1082 = vmatpush1.bf16.msra.mxu0 0
  %1083 = vmatprep.subr.bf16.mxu0 0
  %1084 = vmatpush1.bf16.msra.mxu0 0
  %1085 = vmatprep.subr.bf16.mxu0 0
  %1086 = vmatpush1.bf16.msra.mxu0 0
  %1087 = vmatprep.subr.bf16.mxu0 0
  %1088 = vmatpush1.bf16.msra.mxu0 0
  %1089 = vmatprep.subr.bf16.mxu0 0
  %1090 = vmatpush1.bf16.msra.mxu0 0
  %1091 = vmatprep.mubr.bf16.mxu0 0
  %1092 = vmatmul.mubr.bf16.gmra.mrb[0].mxu0 %v1017
  %v1093 = vpop.f32.mrb[0].mxu0
  %v1094 = vadd.f32 0.0, %v1093
  %v1095 = vpop.f32.mrb[0].mxu0
  %v1096 = vadd.f32 0.0, %v1095
  %v1097 = vpop.f32.mrb[0].mxu0
  %v1098 = vpop.f32.mrb[0].mxu0
  %1099 = vdwg.mxu0
  %v1104 = vcombine.low %v1053, %v1055
  %v1105 = vcombine.low %v1094, %v1096
  %v1107 = vunpack.c.l.s4 1983009808
  %v1108 = vunpack.c.0.s8 %v1107
  %v1109 = vlaneseq
  %v1110 = vshrl.u32 %v1109, 7
  %v1111 = vsub.s32 %v1108, %v1110
  %v1112 = vrot.slane %v1104, %v1111
  %v1114 = vunpack.c.l.s4 1983009808
  %v1115 = vunpack.c.0.s8 %v1114
  %v1116 = vlaneseq
  %v1117 = vshrl.u32 %v1116, 7
  %v1118 = vsub.s32 %v1115, %v1117
  %v1119 = vrot.slane %v1105, %v1118
  %v1120 = vcombine.low %v1112, %v1119
  %v1122 = vadd.f32 %v1016, %v1120
  %v1123 = vxor.u32 %v1122, 2147483648
  %v1124 = vmul.f32 %v1123, 1.442695
  %v1125 = vpow.pop %v1124
  %v1126 = vadd.f32 %v1125, 1.0
  %v1127 = vrcp.pop %v1126
  %v1128 = vmul.f32 1.0, %v1127
  %v1130 = vrot.slane %v1122, 6
  %v1132 = vtanh.pop %v1130
  %v1134 = vrot.slane %v1128, 2
  %v1136 = vmul.f32 %v1134, %v1008
  %v1137 = vmul.f32 %v1128, %v1132
  %v1138 = vadd.f32 %v1136, %v1137
  %v1139 = vtanh.pop %v1138
  %v1140 = vrot.slane %v1128, 4
  %v1142 = vmul.f32 %v1140, %v1139
  %s1143 = scalar_lea.vmem %s2, 14
  %1144 = vst [vmem:[%s1143] sm:$0x3] %v1142
  %v1145 = vlaneseq
  %v1146 = vand.u32 %v1145, 127
  %vm1147 = vcmp.lt.s32.totalorder %v1146, 64
  %v1148 = vld [vmem:[%s2] sm:$0x3]
  %v1149 = vld [vmem:[%s1143] sm:$0x3]
  %v1150 = vsel %vm1147, %v1148, %v1149
  %1151 = vst [vmem:[%s2] sm:$0x3] %v1150
  %v1152 = vsel %vm1147, %v1149, %v1148
  %1153 = vst [vmem:[%s1143] sm:$0x3] %v1152
  %v1154 = vld [vmem:[%s363] sm:$0x3]
  %v1155 = vld [vmem:[%s1013] sm:$0x3]
  %v1156 = vsel %vm1147, %v1154, %v1155
  %1157 = vst [vmem:[%s363] sm:$0x3] %v1156
  %v1158 = vsel %vm1147, %v1155, %v1154
  %1159 = vst [vmem:[%s1013] sm:$0x3] %v1158
  %v1160 = vld [vmem:[%s493] sm:$0x3]
  %v1161 = vld [vmem:[%s883] sm:$0x3]
  %v1162 = vsel %vm1147, %v1160, %v1161
  %1163 = vst [vmem:[%s493] sm:$0x3] %v1162
  %v1164 = vsel %vm1147, %v1161, %v1160
  %1165 = vst [vmem:[%s883] sm:$0x3] %v1164
  %v1166 = vld [vmem:[%s623] sm:$0x3]
  %v1167 = vld [vmem:[%s753] sm:$0x3]
  %v1168 = vsel %vm1147, %v1166, %v1167
  %1169 = vst [vmem:[%s623] sm:$0x3] %v1168
  %v1170 = vsel %vm1147, %v1167, %v1166
  %1171 = vst [vmem:[%s753] sm:$0x3] %v1170
  // Predicated region
  $region10: #{forward.3} parent=0 // pred_check
    _
  $region11: #{forward.3} parent=0 // pred_check_branch
    %1173 = sbr.rel (0) target = $region13
  $region12: #{forward.3} parent=0 // pred_region
    _
  $region13: #{forward.3} parent=0 // pred_fallthru
    _
  // Predicated region
  $region14: #{forward.3} parent=0 // pred_check
    _
  $region15: #{forward.3} parent=0 // pred_check_branch
    %1175 = sbr.rel (0) target = $region17
  $region16: #{forward.3} parent=0 // pred_region
    _
  $region17: #{forward.3} parent=0 // pred_fallthru
    _

// kernel: forward.5
$region0: #{forward.5}
  #allocation0 [shape = 'u32[]', space=smem, size = 0x4, offset = 0x4, fixed_abs, tag = 'smem constant byte address 0x4 - core index']
  #allocation1 [shape = 'u32[144,128]{1,0:T(1,128)}', space=vmem, size = 0x12000, scoped, tag = 'internal scratch']
  #allocation2 [shape = 'f32[1,1]{1,0:T(1,128)S(1)}', space=vmem, size = 0x200, scoped, tag = 'scoped memory for forward.5']
  %s0 = inlined_call_operand.vmem [shape: f32[8,2,128], index: 0, kind: input, shape index: {}]
  %s1 = inlined_call_operand.vmem [shape: f32[8,2,128], index: 1, kind: input, shape index: {}]
  %s2 = inlined_call_operand.vmem [shape: f32[8,2,1], index: 2, kind: input, shape index: {}]
  %s3 = inlined_call_operand.vmem [shape: f32[1,128], index: 3, kind: input, shape index: {}]
  %s4 = inlined_call_operand.vmem [shape: f32[8,1], index: 4, kind: input, shape index: {}]
  %s5 = inlined_call_operand.vmem [shape: f32[1,128], index: 5, kind: input, shape index: {}]
  %s6 = inlined_call_operand.vmem [shape: f32[8,1], index: 6, kind: input, shape index: {}]
  %s7 = inlined_call_operand.vmem [shape: f32[3,2,1], index: 7, kind: input, shape index: {}]
  %s8 = inlined_call_operand.vmem [shape: f32[3,1,16], index: 8, kind: input, shape index: {}]
  %s9 = inlined_call_operand.vmem [shape: f32[3,1,16], index: 9, kind: input, shape index: {}]
  %s10 = inlined_call_operand.vmem [shape: f32[3,16,16], index: 10, kind: input, shape index: {}]
  %s11 = inlined_call_operand.vmem [shape: f32[3,1,16], index: 11, kind: input, shape index: {}]
  %s12 = inlined_call_operand.vmem [shape: f32[1328,64], index: 12, kind: input, shape index: {}]
  %s13 = inlined_call_operand.vmem [shape: f32[1,64], index: 13, kind: input, shape index: {}]
  %s14 = inlined_call_operand.vmem [shape: f32[64,1], index: 14, kind: input, shape index: {}]
  %s15 = inlined_call_operand.<no memory space> [shape: f32[1,1], index: 15, kind: input, shape index: {}]
  %s16 = inlined_call_operand.vmem [shape: f32[2,1], index: 16, kind: output, shape index: {}]
  %s17 = sld [smem:[#allocation0]]
  $region74: #{forward.5} parent=0
    _
  %s19 = ssub.s32 1, %s17
  %s20 = scalar_select 0, %s19, %s17
  %v21 = vstv %s15
  %22 = vst [vmem:[#allocation2] sm:$0x1] %v21
  // Predicated region
  $region2: #{forward.5} parent=0 // pred_check
    _
  $region3: #{forward.5} parent=0 // pred_check_branch
    %24 = sbr.rel (0) target = $region5
  $region4: #{forward.5} parent=0 // pred_region
    _
  $region5: #{forward.5} parent=0 // pred_fallthru
    _
  // Predicated region
  $region6: #{forward.5} parent=0 // pred_check
    _
  $region7: #{forward.5} parent=0 // pred_check_branch
    %26 = sbr.rel (0) target = $region9
  $region8: #{forward.5} parent=0 // pred_region
    _
  $region9: #{forward.5} parent=0 // pred_fallthru
    _
  // Predicated region
  $region10: #{forward.5} parent=0 // pred_check
    _
  $region11: #{forward.5} parent=0 // pred_check_branch
    %28 = sbr.rel (0) target = $region13
  $region12: #{forward.5} parent=0 // pred_region
    _
  $region13: #{forward.5} parent=0 // pred_fallthru
    _
  // Predicated region
  $region14: #{forward.5} parent=0 // pred_check
    _
  $region15: #{forward.5} parent=0 // pred_check_branch
    %30 = sbr.rel (0) target = $region17
  $region16: #{forward.5} parent=0 // pred_region
    _
  $region17: #{forward.5} parent=0 // pred_fallthru
    _
  // Predicated region
  $region18: #{forward.5} parent=0 // pred_check
    _
  $region19: #{forward.5} parent=0 // pred_check_branch
    %32 = sbr.rel (0) target = $region21
  $region20: #{forward.5} parent=0 // pred_region
    _
  $region21: #{forward.5} parent=0 // pred_fallthru
    _
  // Predicated region
  $region22: #{forward.5} parent=0 // pred_check
    _
  $region23: #{forward.5} parent=0 // pred_check_branch
    %34 = sbr.rel (0) target = $region25
  $region24: #{forward.5} parent=0 // pred_region
    _
  $region25: #{forward.5} parent=0 // pred_fallthru
    _
  // Predicated region
  $region26: #{forward.5} parent=0 // pred_check
    _
  $region27: #{forward.5} parent=0 // pred_check_branch
    %36 = sbr.rel (0) target = $region29
  $region28: #{forward.5} parent=0 // pred_region
    _
  $region29: #{forward.5} parent=0 // pred_fallthru
    _
  // Predicated region
  $region30: #{forward.5} parent=0 // pred_check
    _
  $region31: #{forward.5} parent=0 // pred_check_branch
    %38 = sbr.rel (0) target = $region33
  $region32: #{forward.5} parent=0 // pred_region
    _
  $region33: #{forward.5} parent=0 // pred_fallthru
    _
  // Predicated region
  $region34: #{forward.5} parent=0 // pred_check
    _
  $region35: #{forward.5} parent=0 // pred_check_branch
    %40 = sbr.rel (0) target = $region37
  $region36: #{forward.5} parent=0 // pred_region
    _
  $region37: #{forward.5} parent=0 // pred_fallthru
    _
  // Predicated region
  $region38: #{forward.5} parent=0 // pred_check
    _
  $region39: #{forward.5} parent=0 // pred_check_branch
    %42 = sbr.rel (0) target = $region41
  $region40: #{forward.5} parent=0 // pred_region
    _
  $region41: #{forward.5} parent=0 // pred_fallthru
    _
  // Predicated region
  $region42: #{forward.5} parent=0 // pred_check
    _
  $region43: #{forward.5} parent=0 // pred_check_branch
    %44 = sbr.rel (0) target = $region45
  $region44: #{forward.5} parent=0 // pred_region
    _
  $region45: #{forward.5} parent=0 // pred_fallthru
    _
  // Predicated region
  $region46: #{forward.5} parent=0 // pred_check
    _
  $region47: #{forward.5} parent=0 // pred_check_branch
    %46 = sbr.rel (0) target = $region49
  $region48: #{forward.5} parent=0 // pred_region
    _
  $region49: #{forward.5} parent=0 // pred_fallthru
    _
  // Predicated region
  $region50: #{forward.5} parent=0 // pred_check
    _
  $region51: #{forward.5} parent=0 // pred_check_branch
    %48 = sbr.rel (0) target = $region53
  $region52: #{forward.5} parent=0 // pred_region
    _
  $region53: #{forward.5} parent=0 // pred_fallthru
    _
  // Predicated region
  $region54: #{forward.5} parent=0 // pred_check
    _
  $region55: #{forward.5} parent=0 // pred_check_branch
    %50 = sbr.rel (0) target = $region57
  $region56: #{forward.5} parent=0 // pred_region
    _
  $region57: #{forward.5} parent=0 // pred_fallthru
    _
  // Predicated region
  $region58: #{forward.5} parent=0 // pred_check
    _
  $region59: #{forward.5} parent=0 // pred_check_branch
    %52 = sbr.rel (0) target = $region61
  $region60: #{forward.5} parent=0 // pred_region
    _
  $region61: #{forward.5} parent=0 // pred_fallthru
    _
  // Predicated region
  $region62: #{forward.5} parent=0 // pred_check
    _
  $region63: #{forward.5} parent=0 // pred_check_branch
    %54 = sbr.rel (0) target = $region65
  $region64: #{forward.5} parent=0 // pred_region
    _
  $region65: #{forward.5} parent=0 // pred_fallthru
    _
  %v56 = vld [vmem:[%s2] sm:$0x3]
  %v57 = vld [vmem:[%s2 + $0x2] sm:$0x3]
  %v58 = vld [vmem:[%s2 + $0x4] sm:$0x3]
  %v59 = vld [vmem:[%s2 + $0x6] sm:$0x3]
  %v60 = vld [vmem:[%s2 + $0x8] sm:$0x3]
  %v61 = vld [vmem:[%s2 + $0xa] sm:$0x3]
  %v62 = vld [vmem:[%s2 + $0xc] sm:$0x3]
  %v63 = vld [vmem:[%s2 + $0xe] sm:$0x3]
  %v64 = vld [vmem:[%s0] sm:$0x3]
  %v65 = vld [vmem:[%s0 + $0x2] sm:$0x3]
  %v66 = vld [vmem:[%s0 + $0x4] sm:$0x3]
  %v67 = vld [vmem:[%s0 + $0x6] sm:$0x3]
  %v68 = vld [vmem:[%s0 + $0x8] sm:$0x3]
  %v69 = vld [vmem:[%s0 + $0xa] sm:$0x3]
  %v70 = vld [vmem:[%s0 + $0xc] sm:$0x3]
  %v71 = vld [vmem:[%s0 + $0xe] sm:$0x3]
  %v72 = vld [vmem:[%s1] sm:$0x3]
  %v73 = vld [vmem:[%s1 + $0x2] sm:$0x3]
  %v74 = vld [vmem:[%s1 + $0x4] sm:$0x3]
  %v75 = vld [vmem:[%s1 + $0x6] sm:$0x3]
  %v76 = vld [vmem:[%s1 + $0x8] sm:$0x3]
  %v77 = vld [vmem:[%s1 + $0xa] sm:$0x3]
  %v78 = vld [vmem:[%s1 + $0xc] sm:$0x3]
  %v79 = vld [vmem:[%s1 + $0xe] sm:$0x3]
  %v80 = vld [vmem:[%s3] sm:$0x1]
  %v81 = vld [vmem:[%s4] sm:$0xff]
  %v83 = vlaneseq
  %v84 = vshrl.u32 %v83, 7
  %v85 = vsub.s32 0, %v84
  %v86 = vrot.slane %v80, %v85
  %v88 = vmul.f32 %v64, %v86
  %v89 = vmul.f32 %v65, %v86
  %v90 = vmul.f32 %v66, %v86
  %v91 = vmul.f32 %v67, %v86
  %v92 = vmul.f32 %v68, %v86
  %v93 = vmul.f32 %v69, %v86
  %v94 = vmul.f32 %v70, %v86
  %v95 = vmul.f32 %v71, %v86
  %vm96 = vcmask 1041408
  %v97 = vsel %vm96, %v88, 0.0
  %98 = vadd.xlane.f32.xlu0 %v97
  %v99 = vpop.xlane.xlu0 %98
  %v100 = vsel %vm96, %v89, 0.0
  %101 = vadd.xlane.f32.xlu0 %v100
  %v102 = vpop.xlane.xlu0 %101
  %v103 = vsel %vm96, %v90, 0.0
  %104 = vadd.xlane.f32.xlu0 %v103
  %v105 = vpop.xlane.xlu0 %104
  %v106 = vsel %vm96, %v91, 0.0
  %107 = vadd.xlane.f32.xlu0 %v106
  %v108 = vpop.xlane.xlu0 %107
  %v109 = vsel %vm96, %v92, 0.0
  %110 = vadd.xlane.f32.xlu0 %v109
  %v111 = vpop.xlane.xlu0 %110
  %v112 = vsel %vm96, %v93, 0.0
  %113 = vadd.xlane.f32.xlu0 %v112
  %v114 = vpop.xlane.xlu0 %113
  %v115 = vsel %vm96, %v94, 0.0
  %116 = vadd.xlane.f32.xlu0 %v115
  %v117 = vpop.xlane.xlu0 %116
  %v118 = vsel %vm96, %v95, 0.0
  %119 = vadd.xlane.f32.xlu0 %v118
  %v120 = vpop.xlane.xlu0 %119
  %v122 = vcombine.high %v81, %v81
  %v124 = vunpack.c.l.s4 1966171168
  %v125 = vunpack.c.0.s8 %v124
  %v126 = vlaneseq
  %v127 = vshrl.u32 %v126, 7
  %v128 = vsub.s32 %v125, %v127
  %v129 = vrot.slane %v81, %v128
  %v131 = vunpack.c.l.s4 1966171168
  %v132 = vunpack.c.0.s8 %v131
  %v133 = vlaneseq
  %v134 = vshrl.u32 %v133, 7
  %v135 = vsub.s32 %v132, %v134
  %v136 = vrot.slane %v122, %v135
  %v137 = vcombine.high %v129, %v129
  %v138 = vcombine.high %v136, %v136
  %v140 = vunpack.c.l.s4 1966171168
  %v141 = vunpack.c.0.s8 %v140
  %v142 = vlaneseq
  %v143 = vshrl.u32 %v142, 7
  %v144 = vsub.s32 %v141, %v143
  %v145 = vrot.slane %v129, %v144
  %v147 = vunpack.c.l.s4 1966171168
  %v148 = vunpack.c.0.s8 %v147
  %v149 = vlaneseq
  %v150 = vshrl.u32 %v149, 7
  %v151 = vsub.s32 %v148, %v150
  %v152 = vrot.slane %v136, %v151
  %v154 = vunpack.c.l.s4 1966171168
  %v155 = vunpack.c.0.s8 %v154
  %v156 = vlaneseq
  %v157 = vshrl.u32 %v156, 7
  %v158 = vsub.s32 %v155, %v157
  %v159 = vrot.slane %v137, %v158
  %v161 = vunpack.c.l.s4 1966171168
  %v162 = vunpack.c.0.s8 %v161
  %v163 = vlaneseq
  %v164 = vshrl.u32 %v163, 7
  %v165 = vsub.s32 %v162, %v164
  %v166 = vrot.slane %v138, %v165
  %v167 = vcombine.high %v145, %v145
  %v168 = vcombine.high %v152, %v152
  %v169 = vcombine.high %v159, %v159
  %v170 = vcombine.high %v166, %v166
  %v171 = vlaneseq
  %v172 = vshrl.u32 %v171, 7
  %v173 = vsub.s32 0, %v172
  %v174 = vrot.slane %v145, %v173
  %v175 = vlaneseq
  %v176 = vshrl.u32 %v175, 7
  %v177 = vsub.s32 0, %v176
  %v178 = vrot.slane %v159, %v177
  %v179 = vlaneseq
  %v180 = vshrl.u32 %v179, 7
  %v181 = vsub.s32 0, %v180
  %v182 = vrot.slane %v167, %v181
  %v183 = vlaneseq
  %v184 = vshrl.u32 %v183, 7
  %v185 = vsub.s32 0, %v184
  %v186 = vrot.slane %v169, %v185
  %v187 = vlaneseq
  %v188 = vshrl.u32 %v187, 7
  %v189 = vsub.s32 0, %v188
  %v190 = vrot.slane %v152, %v189
  %v191 = vlaneseq
  %v192 = vshrl.u32 %v191, 7
  %v193 = vsub.s32 0, %v192
  %v194 = vrot.slane %v166, %v193
  %v195 = vlaneseq
  %v196 = vshrl.u32 %v195, 7
  %v197 = vsub.s32 0, %v196
  %v198 = vrot.slane %v168, %v197
  %v199 = vlaneseq
  %v200 = vshrl.u32 %v199, 7
  %v201 = vsub.s32 0, %v200
  %v202 = vrot.slane %v170, %v201
  %v211 = vadd.f32 %v99, %v174
  %v212 = vadd.f32 %v102, %v178
  %v213 = vadd.f32 %v105, %v182
  %v214 = vadd.f32 %v108, %v186
  %v215 = vadd.f32 %v111, %v190
  %v216 = vadd.f32 %v114, %v194
  %v217 = vadd.f32 %v117, %v198
  %v218 = vadd.f32 %v120, %v202
  %v219 = vtanh.pop %v211
  %v220 = vtanh.pop %v212
  %v221 = vtanh.pop %v213
  %v222 = vtanh.pop %v214
  %v223 = vtanh.pop %v215
  %v224 = vtanh.pop %v216
  %v225 = vtanh.pop %v217
  %v226 = vtanh.pop %v218
  %v227 = vmul.f32 %v219, 1.442695
  %v228 = vpow.pop %v227
  %v229 = vmul.f32 %v220, 1.442695
  %v230 = vpow.pop %v229
  %v231 = vmul.f32 %v221, 1.442695
  %v232 = vpow.pop %v231
  %v233 = vmul.f32 %v222, 1.442695
  %v234 = vpow.pop %v233
  %v235 = vmul.f32 %v223, 1.442695
  %v236 = vpow.pop %v235
  %v237 = vmul.f32 %v224, 1.442695
  %v238 = vpow.pop %v237
  %v239 = vmul.f32 %v225, 1.442695
  %v240 = vpow.pop %v239
  %v241 = vmul.f32 %v226, 1.442695
  %v242 = vpow.pop %v241
  %v243 = vmul.f32 %v228, %v56
  %v244 = vmul.f32 %v230, %v57
  %v245 = vmul.f32 %v232, %v58
  %v246 = vmul.f32 %v234, %v59
  %v247 = vmul.f32 %v236, %v60
  %v248 = vmul.f32 %v238, %v61
  %v249 = vmul.f32 %v240, %v62
  %v250 = vmul.f32 %v242, %v63
  %vm251 = vcmask 1024
  %v252 = vsel %vm251, %v243, 0.0
  %v253 = vsel %vm251, %v244, 0.0
  %v254 = vadd.f32 %v252, %v253
  %v255 = vsel %vm251, %v245, 0.0
  %v256 = vadd.f32 %v254, %v255
  %v257 = vsel %vm251, %v246, 0.0
  %v258 = vadd.f32 %v256, %v257
  %v259 = vsel %vm251, %v247, 0.0
  %v260 = vadd.f32 %v258, %v259
  %v261 = vsel %vm251, %v248, 0.0
  %v262 = vadd.f32 %v260, %v261
  %v263 = vsel %vm251, %v249, 0.0
  %v264 = vadd.f32 %v262, %v263
  %v265 = vsel %vm251, %v250, 0.0
  %v266 = vadd.f32 %v264, %v265
  %v267 = vadd.f32 %v266, 1e-10
  %v268 = vrcp.pop %v267
  %v269 = vmul.f32 %v243, %v268
  %v270 = vmul.f32 %v244, %v268
  %v271 = vmul.f32 %v245, %v268
  %v272 = vmul.f32 %v246, %v268
  %v273 = vmul.f32 %v247, %v268
  %v274 = vmul.f32 %v248, %v268
  %v275 = vmul.f32 %v249, %v268
  %v276 = vmul.f32 %v250, %v268
  %278 = vset.pattern.permute.xlu0 0
  %279 = vperm.xlu0 %278, %v269
  %v280 = vpop.permute.xlu0 %279
  %283 = vset.pattern.permute.xlu0 0
  %284 = vperm.xlu0 %283, %v270
  %v285 = vpop.permute.xlu0 %284
  %288 = vset.pattern.permute.xlu0 0
  %289 = vperm.xlu0 %288, %v271
  %v290 = vpop.permute.xlu0 %289
  %293 = vset.pattern.permute.xlu0 0
  %294 = vperm.xlu0 %293, %v272
  %v295 = vpop.permute.xlu0 %294
  %298 = vset.pattern.permute.xlu0 0
  %299 = vperm.xlu0 %298, %v273
  %v300 = vpop.permute.xlu0 %299
  %303 = vset.pattern.permute.xlu0 0
  %304 = vperm.xlu0 %303, %v274
  %v305 = vpop.permute.xlu0 %304
  %308 = vset.pattern.permute.xlu0 0
  %309 = vperm.xlu0 %308, %v275
  %v310 = vpop.permute.xlu0 %309
  %313 = vset.pattern.permute.xlu0 0
  %314 = vperm.xlu0 %313, %v276
  %v315 = vpop.permute.xlu0 %314
  %v317 = vmul.f32 %v64, %v280
  %v318 = vmul.f32 %v65, %v285
  %v319 = vmul.f32 %v66, %v290
  %v320 = vmul.f32 %v67, %v295
  %v321 = vmul.f32 %v68, %v300
  %v322 = vmul.f32 %v69, %v305
  %v323 = vmul.f32 %v70, %v310
  %v324 = vmul.f32 %v71, %v315
  %v325 = vsel %vm96, %v317, 0.0
  %v326 = vsel %vm96, %v318, 0.0
  %v327 = vadd.f32 %v325, %v326
  %v328 = vsel %vm96, %v319, 0.0
  %v329 = vadd.f32 %v327, %v328
  %v330 = vsel %vm96, %v320, 0.0
  %v331 = vadd.f32 %v329, %v330
  %v332 = vsel %vm96, %v321, 0.0
  %v333 = vadd.f32 %v331, %v332
  %v334 = vsel %vm96, %v322, 0.0
  %v335 = vadd.f32 %v333, %v334
  %v336 = vsel %vm96, %v323, 0.0
  %v337 = vadd.f32 %v335, %v336
  %v338 = vsel %vm96, %v324, 0.0
  %v339 = vadd.f32 %v337, %v338
  %v340 = vld [vmem:[%s5] sm:$0x1]
  %v341 = vld [vmem:[%s6] sm:$0xff]
  %v343 = vlaneseq
  %v344 = vshrl.u32 %v343, 7
  %v345 = vsub.s32 0, %v344
  %v346 = vrot.slane %v340, %v345
  %v348 = vmul.f32 %v72, %v346
  %v349 = vmul.f32 %v73, %v346
  %v350 = vmul.f32 %v74, %v346
  %v351 = vmul.f32 %v75, %v346
  %v352 = vmul.f32 %v76, %v346
  %v353 = vmul.f32 %v77, %v346
  %v354 = vmul.f32 %v78, %v346
  %v355 = vmul.f32 %v79, %v346
  %v356 = vsel %vm96, %v348, 0.0
  %357 = vadd.xlane.f32.xlu0 %v356
  %v358 = vpop.xlane.xlu0 %357
  %v359 = vsel %vm96, %v349, 0.0
  %360 = vadd.xlane.f32.xlu0 %v359
  %v361 = vpop.xlane.xlu0 %360
  %v362 = vsel %vm96, %v350, 0.0
  %363 = vadd.xlane.f32.xlu0 %v362
  %v364 = vpop.xlane.xlu0 %363
  %v365 = vsel %vm96, %v351, 0.0
  %366 = vadd.xlane.f32.xlu0 %v365
  %v367 = vpop.xlane.xlu0 %366
  %v368 = vsel %vm96, %v352, 0.0
  %369 = vadd.xlane.f32.xlu0 %v368
  %v370 = vpop.xlane.xlu0 %369
  %v371 = vsel %vm96, %v353, 0.0
  %372 = vadd.xlane.f32.xlu0 %v371
  %v373 = vpop.xlane.xlu0 %372
  %v374 = vsel %vm96, %v354, 0.0
  %375 = vadd.xlane.f32.xlu0 %v374
  %v376 = vpop.xlane.xlu0 %375
  %v377 = vsel %vm96, %v355, 0.0
  %378 = vadd.xlane.f32.xlu0 %v377
  %v379 = vpop.xlane.xlu0 %378
  %v381 = vcombine.high %v341, %v341
  %v383 = vunpack.c.l.s4 1966171168
  %v384 = vunpack.c.0.s8 %v383
  %v385 = vlaneseq
  %v386 = vshrl.u32 %v385, 7
  %v387 = vsub.s32 %v384, %v386
  %v388 = vrot.slane %v341, %v387
  %v390 = vunpack.c.l.s4 1966171168
  %v391 = vunpack.c.0.s8 %v390
  %v392 = vlaneseq
  %v393 = vshrl.u32 %v392, 7
  %v394 = vsub.s32 %v391, %v393
  %v395 = vrot.slane %v381, %v394
  %v396 = vcombine.high %v388, %v388
  %v397 = vcombine.high %v395, %v395
  %v399 = vunpack.c.l.s4 1966171168
  %v400 = vunpack.c.0.s8 %v399
  %v401 = vlaneseq
  %v402 = vshrl.u32 %v401, 7
  %v403 = vsub.s32 %v400, %v402
  %v404 = vrot.slane %v388, %v403
  %v406 = vunpack.c.l.s4 1966171168
  %v407 = vunpack.c.0.s8 %v406
  %v408 = vlaneseq
  %v409 = vshrl.u32 %v408, 7
  %v410 = vsub.s32 %v407, %v409
  %v411 = vrot.slane %v395, %v410
  %v413 = vunpack.c.l.s4 1966171168
  %v414 = vunpack.c.0.s8 %v413
  %v415 = vlaneseq
  %v416 = vshrl.u32 %v415, 7
  %v417 = vsub.s32 %v414, %v416
  %v418 = vrot.slane %v396, %v417
  %v420 = vunpack.c.l.s4 1966171168
  %v421 = vunpack.c.0.s8 %v420
  %v422 = vlaneseq
  %v423 = vshrl.u32 %v422, 7
  %v424 = vsub.s32 %v421, %v423
  %v425 = vrot.slane %v397, %v424
  %v426 = vcombine.high %v404, %v404
  %v427 = vcombine.high %v411, %v411
  %v428 = vcombine.high %v418, %v418
  %v429 = vcombine.high %v425, %v425
  %v430 = vlaneseq
  %v431 = vshrl.u32 %v430, 7
  %v432 = vsub.s32 0, %v431
  %v433 = vrot.slane %v404, %v432
  %v434 = vlaneseq
  %v435 = vshrl.u32 %v434, 7
  %v436 = vsub.s32 0, %v435
  %v437 = vrot.slane %v418, %v436
  %v438 = vlaneseq
  %v439 = vshrl.u32 %v438, 7
  %v440 = vsub.s32 0, %v439
  %v441 = vrot.slane %v426, %v440
  %v442 = vlaneseq
  %v443 = vshrl.u32 %v442, 7
  %v444 = vsub.s32 0, %v443
  %v445 = vrot.slane %v428, %v444
  %v446 = vlaneseq
  %v447 = vshrl.u32 %v446, 7
  %v448 = vsub.s32 0, %v447
  %v449 = vrot.slane %v411, %v448
  %v450 = vlaneseq
  %v451 = vshrl.u32 %v450, 7
  %v452 = vsub.s32 0, %v451
  %v453 = vrot.slane %v425, %v452
  %v454 = vlaneseq
  %v455 = vshrl.u32 %v454, 7
  %v456 = vsub.s32 0, %v455
  %v457 = vrot.slane %v427, %v456
  %v458 = vlaneseq
  %v459 = vshrl.u32 %v458, 7
  %v460 = vsub.s32 0, %v459
  %v461 = vrot.slane %v429, %v460
  %v470 = vadd.f32 %v358, %v433
  %v471 = vadd.f32 %v361, %v437
  %v472 = vadd.f32 %v364, %v441
  %v473 = vadd.f32 %v367, %v445
  %v474 = vadd.f32 %v370, %v449
  %v475 = vadd.f32 %v373, %v453
  %v476 = vadd.f32 %v376, %v457
  %v477 = vadd.f32 %v379, %v461
  %v478 = vtanh.pop %v470
  %v479 = vtanh.pop %v471
  %v480 = vtanh.pop %v472
  %v481 = vtanh.pop %v473
  %v482 = vtanh.pop %v474
  %v483 = vtanh.pop %v475
  %v484 = vtanh.pop %v476
  %v485 = vtanh.pop %v477
  %v486 = vmul.f32 %v478, 1.442695
  %v487 = vpow.pop %v486
  %v488 = vmul.f32 %v479, 1.442695
  %v489 = vpow.pop %v488
  %v490 = vmul.f32 %v480, 1.442695
  %v491 = vpow.pop %v490
  %v492 = vmul.f32 %v481, 1.442695
  %v493 = vpow.pop %v492
  %v494 = vmul.f32 %v482, 1.442695
  %v495 = vpow.pop %v494
  %v496 = vmul.f32 %v483, 1.442695
  %v497 = vpow.pop %v496
  %v498 = vmul.f32 %v484, 1.442695
  %v499 = vpow.pop %v498
  %v500 = vmul.f32 %v485, 1.442695
  %v501 = vpow.pop %v500
  %v502 = vmul.f32 %v487, %v56
  %v503 = vmul.f32 %v489, %v57
  %v504 = vmul.f32 %v491, %v58
  %v505 = vmul.f32 %v493, %v59
  %v506 = vmul.f32 %v495, %v60
  %v507 = vmul.f32 %v497, %v61
  %v508 = vmul.f32 %v499, %v62
  %v509 = vmul.f32 %v501, %v63
  %v510 = vsel %vm251, %v502, 0.0
  %v511 = vsel %vm251, %v503, 0.0
  %v512 = vadd.f32 %v510, %v511
  %v513 = vsel %vm251, %v504, 0.0
  %v514 = vadd.f32 %v512, %v513
  %v515 = vsel %vm251, %v505, 0.0
  %v516 = vadd.f32 %v514, %v515
  %v517 = vsel %vm251, %v506, 0.0
  %v518 = vadd.f32 %v516, %v517
  %v519 = vsel %vm251, %v507, 0.0
  %v520 = vadd.f32 %v518, %v519
  %v521 = vsel %vm251, %v508, 0.0
  %v522 = vadd.f32 %v520, %v521
  %v523 = vsel %vm251, %v509, 0.0
  %v524 = vadd.f32 %v522, %v523
  %v525 = vadd.f32 %v524, 1e-10
  %v526 = vrcp.pop %v525
  %v527 = vmul.f32 %v502, %v526
  %v528 = vmul.f32 %v503, %v526
  %v529 = vmul.f32 %v504, %v526
  %v530 = vmul.f32 %v505, %v526
  %v531 = vmul.f32 %v506, %v526
  %v532 = vmul.f32 %v507, %v526
  %v533 = vmul.f32 %v508, %v526
  %v534 = vmul.f32 %v509, %v526
  %536 = vset.pattern.permute.xlu0 0
  %537 = vperm.xlu0 %536, %v527
  %v538 = vpop.permute.xlu0 %537
  %541 = vset.pattern.permute.xlu0 0
  %542 = vperm.xlu0 %541, %v528
  %v543 = vpop.permute.xlu0 %542
  %546 = vset.pattern.permute.xlu0 0
  %547 = vperm.xlu0 %546, %v529
  %v548 = vpop.permute.xlu0 %547
  %551 = vset.pattern.permute.xlu0 0
  %552 = vperm.xlu0 %551, %v530
  %v553 = vpop.permute.xlu0 %552
  %556 = vset.pattern.permute.xlu0 0
  %557 = vperm.xlu0 %556, %v531
  %v558 = vpop.permute.xlu0 %557
  %561 = vset.pattern.permute.xlu0 0
  %562 = vperm.xlu0 %561, %v532
  %v563 = vpop.permute.xlu0 %562
  %566 = vset.pattern.permute.xlu0 0
  %567 = vperm.xlu0 %566, %v533
  %v568 = vpop.permute.xlu0 %567
  %571 = vset.pattern.permute.xlu0 0
  %572 = vperm.xlu0 %571, %v534
  %v573 = vpop.permute.xlu0 %572
  %v575 = vmul.f32 %v72, %v538
  %v576 = vmul.f32 %v73, %v543
  %v577 = vmul.f32 %v74, %v548
  %v578 = vmul.f32 %v75, %v553
  %v579 = vmul.f32 %v76, %v558
  %v580 = vmul.f32 %v77, %v563
  %v581 = vmul.f32 %v78, %v568
  %v582 = vmul.f32 %v79, %v573
  %v583 = vsel %vm96, %v575, 0.0
  %v584 = vsel %vm96, %v576, 0.0
  %v585 = vadd.f32 %v583, %v584
  %v586 = vsel %vm96, %v577, 0.0
  %v587 = vadd.f32 %v585, %v586
  %v588 = vsel %vm96, %v578, 0.0
  %v589 = vadd.f32 %v587, %v588
  %v590 = vsel %vm96, %v579, 0.0
  %v591 = vadd.f32 %v589, %v590
  %v592 = vsel %vm96, %v580, 0.0
  %v593 = vadd.f32 %v591, %v592
  %v594 = vsel %vm96, %v581, 0.0
  %v595 = vadd.f32 %v593, %v594
  %v596 = vsel %vm96, %v582, 0.0
  %v597 = vadd.f32 %v595, %v596
  %599 = vset.pattern.permute.xlu0 0
  %600 = vperm.xlu0 %599, %v56
  %v601 = vpop.permute.xlu0 %600
  %604 = vset.pattern.permute.xlu0 0
  %605 = vperm.xlu0 %604, %v57
  %v606 = vpop.permute.xlu0 %605
  %609 = vset.pattern.permute.xlu0 0
  %610 = vperm.xlu0 %609, %v58
  %v611 = vpop.permute.xlu0 %610
  %614 = vset.pattern.permute.xlu0 0
  %615 = vperm.xlu0 %614, %v59
  %v616 = vpop.permute.xlu0 %615
  %619 = vset.pattern.permute.xlu0 0
  %620 = vperm.xlu0 %619, %v60
  %v621 = vpop.permute.xlu0 %620
  %624 = vset.pattern.permute.xlu0 0
  %625 = vperm.xlu0 %624, %v61
  %v626 = vpop.permute.xlu0 %625
  %629 = vset.pattern.permute.xlu0 0
  %630 = vperm.xlu0 %629, %v62
  %v631 = vpop.permute.xlu0 %630
  %634 = vset.pattern.permute.xlu0 0
  %635 = vperm.xlu0 %634, %v63
  %v636 = vpop.permute.xlu0 %635
  %v638 = vmul.f32 %v72, %v601
  %v639 = vmul.f32 %v73, %v606
  %v640 = vmul.f32 %v74, %v611
  %v641 = vmul.f32 %v75, %v616
  %v642 = vmul.f32 %v76, %v621
  %v643 = vmul.f32 %v77, %v626
  %v644 = vmul.f32 %v78, %v631
  %v645 = vmul.f32 %v79, %v636
  %v646 = vsel %vm96, %v638, 0.0
  %v647 = vsel %vm96, %v639, 0.0
  %v648 = vadd.f32 %v646, %v647
  %v649 = vsel %vm96, %v640, 0.0
  %v650 = vadd.f32 %v648, %v649
  %v651 = vsel %vm96, %v641, 0.0
  %v652 = vadd.f32 %v650, %v651
  %v653 = vsel %vm96, %v642, 0.0
  %v654 = vadd.f32 %v652, %v653
  %v655 = vsel %vm96, %v643, 0.0
  %v656 = vadd.f32 %v654, %v655
  %v657 = vsel %vm96, %v644, 0.0
  %v658 = vadd.f32 %v656, %v657
  %v659 = vsel %vm96, %v645, 0.0
  %v660 = vadd.f32 %v658, %v659
  %v661 = vrcp.pop 8.0
  %v662 = vmul.f32 %v660, %v661
  %v663 = vsel %vm96, %v638, -inf
  %v664 = vsel %vm96, %v639, -inf
  %v665 = vsel %vm96, %v640, -inf
  %v666 = vsel %vm96, %v641, -inf
  %v667 = vsel %vm96, %v642, -inf
  %v668 = vmax.f32 %v663, %v667
  %v669 = vsel %vm96, %v643, -inf
  %v670 = vmax.f32 %v664, %v669
  %v671 = vsel %vm96, %v644, -inf
  %v672 = vmax.f32 %v665, %v671
  %v673 = vsel %vm96, %v645, -inf
  %v674 = vmax.f32 %v666, %v673
  %v675 = vmax.f32 %v668, %v670
  %v676 = vmax.f32 %v672, %v674
  %v677 = vmax.f32 %v675, %v676
  %v678 = vmul.f32 %v662, %v677
  %v679 = vmul.f32 %v662, %v339
  %v680 = vmul.f32 %v662, %v597
  %v681 = vmul.f32 %v677, %v339
  %v682 = vmul.f32 %v677, %v597
  %v683 = vmul.f32 %v339, %v597
  %v684 = vld [vmem:[%s7] sm:$0x3]
  %v685 = vld [vmem:[%s8] sm:$0x1]
  %687 = vset.pattern.permute.xlu0 0
  %688 = vperm.xlu0 %687, %v684
  %v689 = vpop.permute.xlu0 %688
  %v692 = vlaneseq
  %v693 = vshrl.u32 %v692, 7
  %v694 = vsub.s32 0, %v693
  %v695 = vrot.slane %v685, %v694
  %v697 = vmul.f32 %v689, %v695
  %v698 = vld [vmem:[%s9] sm:$0x1]
  %v700 = vlaneseq
  %v701 = vshrl.u32 %v700, 7
  %v702 = vsub.s32 0, %v701
  %v703 = vrot.slane %v698, %v702
  %v705 = vadd.f32 %v697, %v703
  %v706 = vmax.f32 %v705, 0.0
  %v707 = vld [vmem:[%s10] sm:$0xff]
  %v708 = vld [vmem:[%s10 + $0x8] sm:$0xff]
  %v709 = vld [vmem:[%s11] sm:$0x1]
  %v711 = vlaneseq
  %v712 = vshrl.u32 %v711, 7
  %v713 = vsub.s32 0, %v712
  %v714 = vrot.slane %v709, %v713
  %vm716 = vcmask 130048
  %v718 = vsel %vm716, %v706, 0
  %720 = vmatprep.subr.mxu0 0.0
  %721 = vmatpush1.msra.mxu0 %v707
  %722 = vmatprep.subr.mxu0 0.0
  %723 = vmatpush1.msra.mxu0 %v708
  %724 = vmatprep.subr.mxu0 0.0
  %725 = vmatpush1.msra.mxu0 0.0
  %726 = vmatprep.subr.mxu0 0.0
  %727 = vmatpush1.msra.mxu0 0.0
  %728 = vmatprep.subr.mxu0 0.0
  %729 = vmatpush1.msra.mxu0 0.0
  %730 = vmatprep.subr.mxu0 0.0
  %731 = vmatpush1.msra.mxu0 0.0
  %732 = vmatprep.subr.mxu0 0.0
  %733 = vmatpush1.msra.mxu0 0.0
  %734 = vmatprep.subr.mxu0 0.0
  %735 = vmatpush1.msra.mxu0 0.0
  %736 = vmatprep.subr.mxu0 0.0
  %737 = vmatpush1.msra.mxu0 0.0
  %738 = vmatprep.subr.mxu0 0.0
  %739 = vmatpush1.msra.mxu0 0.0
  %740 = vmatprep.subr.mxu0 0.0
  %741 = vmatpush1.msra.mxu0 0.0
  %742 = vmatprep.subr.mxu0 0.0
  %743 = vmatpush1.msra.mxu0 0.0
  %744 = vmatprep.subr.mxu0 0.0
  %745 = vmatpush1.msra.mxu0 0.0
  %746 = vmatprep.subr.mxu0 0.0
  %747 = vmatpush1.msra.mxu0 0.0
  %748 = vmatprep.subr.mxu0 0.0
  %749 = vmatpush1.msra.mxu0 0.0
  %750 = vmatprep.subr.mxu0 0.0
  %751 = vmatpush1.msra.mxu0 0.0
  %752 = vmatprep.subr.mxu0 0.0
  %753 = vmatpush1.msra.mxu0 0.0
  %754 = vmatprep.subr.mxu0 0.0
  %755 = vmatpush1.msra.mxu0 0.0
  %756 = vmatprep.subr.mxu0 0.0
  %757 = vmatpush1.msra.mxu0 0.0
  %758 = vmatprep.subr.mxu0 0.0
  %759 = vmatpush1.msra.mxu0 0.0
  %760 = vmatprep.subr.mxu0 0.0
  %761 = vmatpush1.msra.mxu0 0.0
  %762 = vmatprep.subr.mxu0 0.0
  %763 = vmatpush1.msra.mxu0 0.0
  %764 = vmatprep.subr.mxu0 0.0
  %765 = vmatpush1.msra.mxu0 0.0
  %766 = vmatprep.subr.mxu0 0.0
  %767 = vmatpush1.msra.mxu0 0.0
  %768 = vmatprep.subr.mxu0 0.0
  %769 = vmatpush1.msra.mxu0 0.0
  %770 = vmatprep.subr.mxu0 0.0
  %771 = vmatpush1.msra.mxu0 0.0
  %772 = vmatprep.subr.mxu0 0.0
  %773 = vmatpush1.msra.mxu0 0.0
  %774 = vmatprep.subr.mxu0 0.0
  %775 = vmatpush1.msra.mxu0 0.0
  %776 = vmatprep.subr.mxu0 0.0
  %777 = vmatpush1.msra.mxu0 0.0
  %778 = vmatprep.subr.mxu0 0.0
  %779 = vmatpush1.msra.mxu0 0.0
  %780 = vmatprep.subr.mxu0 0.0
  %781 = vmatpush1.msra.mxu0 0.0
  %782 = vmatprep.subr.mxu0 0.0
  %783 = vmatpush1.msra.mxu0 0.0
  %784 = vmatprep.mubr.f32.mxu0 0.0
  %785 = vmatmul.mubr.f32.gmra.mrb[0].mxu0 %v718
  %v786 = vpop.f32.mrb[0].mxu0
  %v787 = vadd.f32 %v714, %v786
  %v788 = vpop.f32.mrb[0].mxu0
  %789 = vdwg.mxu0
  %v790 = vmax.f32 %v787, 0.0
  %s791 = scalar_lea.vmem %s7, 2
  %v792 = vld [vmem:[%s791] sm:$0x3]
  %s793 = scalar_lea.vmem %s8, 1
  %v794 = vld [vmem:[%s793] sm:$0x1]
  %796 = vset.pattern.permute.xlu0 0
  %797 = vperm.xlu0 %796, %v792
  %v798 = vpop.permute.xlu0 %797
  %v801 = vlaneseq
  %v802 = vshrl.u32 %v801, 7
  %v803 = vsub.s32 0, %v802
  %v804 = vrot.slane %v794, %v803
  %v806 = vmul.f32 %v798, %v804
  %s807 = scalar_lea.vmem %s9, 1
  %v808 = vld [vmem:[%s807] sm:$0x1]
  %v810 = vlaneseq
  %v811 = vshrl.u32 %v810, 7
  %v812 = vsub.s32 0, %v811
  %v813 = vrot.slane %v808, %v812
  %v815 = vadd.f32 %v806, %v813
  %v816 = vmax.f32 %v815, 0.0
  %s817 = scalar_lea.vmem %s10, 16
  %v818 = vld [vmem:[%s817] sm:$0xff]
  %v819 = vld [vmem:[%s817 + $0x8] sm:$0xff]
  %s820 = scalar_lea.vmem %s11, 1
  %v821 = vld [vmem:[%s820] sm:$0x1]
  %v823 = vlaneseq
  %v824 = vshrl.u32 %v823, 7
  %v825 = vsub.s32 0, %v824
  %v826 = vrot.slane %v821, %v825
  %v829 = vsel %vm716, %v816, 0
  %831 = vmatprep.subr.mxu0 0.0
  %832 = vmatpush1.msra.mxu0 %v818
  %833 = vmatprep.subr.mxu0 0.0
  %834 = vmatpush1.msra.mxu0 %v819
  %835 = vmatprep.subr.mxu0 0.0
  %836 = vmatpush1.msra.mxu0 0.0
  %837 = vmatprep.subr.mxu0 0.0
  %838 = vmatpush1.msra.mxu0 0.0
  %839 = vmatprep.subr.mxu0 0.0
  %840 = vmatpush1.msra.mxu0 0.0
  %841 = vmatprep.subr.mxu0 0.0
  %842 = vmatpush1.msra.mxu0 0.0
  %843 = vmatprep.subr.mxu0 0.0
  %844 = vmatpush1.msra.mxu0 0.0
  %845 = vmatprep.subr.mxu0 0.0
  %846 = vmatpush1.msra.mxu0 0.0
  %847 = vmatprep.subr.mxu0 0.0
  %848 = vmatpush1.msra.mxu0 0.0
  %849 = vmatprep.subr.mxu0 0.0
  %850 = vmatpush1.msra.mxu0 0.0
  %851 = vmatprep.subr.mxu0 0.0
  %852 = vmatpush1.msra.mxu0 0.0
  %853 = vmatprep.subr.mxu0 0.0
  %854 = vmatpush1.msra.mxu0 0.0
  %855 = vmatprep.subr.mxu0 0.0
  %856 = vmatpush1.msra.mxu0 0.0
  %857 = vmatprep.subr.mxu0 0.0
  %858 = vmatpush1.msra.mxu0 0.0
  %859 = vmatprep.subr.mxu0 0.0
  %860 = vmatpush1.msra.mxu0 0.0
  %861 = vmatprep.subr.mxu0 0.0
  %862 = vmatpush1.msra.mxu0 0.0
  %863 = vmatprep.subr.mxu0 0.0
  %864 = vmatpush1.msra.mxu0 0.0
  %865 = vmatprep.subr.mxu0 0.0
  %866 = vmatpush1.msra.mxu0 0.0
  %867 = vmatprep.subr.mxu0 0.0
  %868 = vmatpush1.msra.mxu0 0.0
  %869 = vmatprep.subr.mxu0 0.0
  %870 = vmatpush1.msra.mxu0 0.0
  %871 = vmatprep.subr.mxu0 0.0
  %872 = vmatpush1.msra.mxu0 0.0
  %873 = vmatprep.subr.mxu0 0.0
  %874 = vmatpush1.msra.mxu0 0.0
  %875 = vmatprep.subr.mxu0 0.0
  %876 = vmatpush1.msra.mxu0 0.0
  %877 = vmatprep.subr.mxu0 0.0
  %878 = vmatpush1.msra.mxu0 0.0
  %879 = vmatprep.subr.mxu0 0.0
  %880 = vmatpush1.msra.mxu0 0.0
  %881 = vmatprep.subr.mxu0 0.0
  %882 = vmatpush1.msra.mxu0 0.0
  %883 = vmatprep.subr.mxu0 0.0
  %884 = vmatpush1.msra.mxu0 0.0
  %885 = vmatprep.subr.mxu0 0.0
  %886 = vmatpush1.msra.mxu0 0.0
  %887 = vmatprep.subr.mxu0 0.0
  %888 = vmatpush1.msra.mxu0 0.0
  %889 = vmatprep.subr.mxu0 0.0
  %890 = vmatpush1.msra.mxu0 0.0
  %891 = vmatprep.subr.mxu0 0.0
  %892 = vmatpush1.msra.mxu0 0.0
  %893 = vmatprep.subr.mxu0 0.0
  %894 = vmatpush1.msra.mxu0 0.0
  %895 = vmatprep.mubr.f32.mxu0 0.0
  %896 = vmatmul.mubr.f32.gmra.mrb[0].mxu0 %v829
  %v897 = vpop.f32.mrb[0].mxu0
  %v898 = vadd.f32 %v826, %v897
  %v899 = vpop.f32.mrb[0].mxu0
  %900 = vdwg.mxu0
  %v901 = vmax.f32 %v898, 0.0
  %s902 = scalar_lea.vmem %s7, 4
  %v903 = vld [vmem:[%s902] sm:$0x3]
  %s904 = scalar_lea.vmem %s8, 2
  %v905 = vld [vmem:[%s904] sm:$0x1]
  %907 = vset.pattern.permute.xlu0 0
  %908 = vperm.xlu0 %907, %v903
  %v909 = vpop.permute.xlu0 %908
  %v912 = vlaneseq
  %v913 = vshrl.u32 %v912, 7
  %v914 = vsub.s32 0, %v913
  %v915 = vrot.slane %v905, %v914
  %v917 = vmul.f32 %v909, %v915
  %s918 = scalar_lea.vmem %s9, 2
  %v919 = vld [vmem:[%s918] sm:$0x1]
  %v921 = vlaneseq
  %v922 = vshrl.u32 %v921, 7
  %v923 = vsub.s32 0, %v922
  %v924 = vrot.slane %v919, %v923
  %v926 = vadd.f32 %v917, %v924
  %v927 = vmax.f32 %v926, 0.0
  %s928 = scalar_lea.vmem %s10, 32
  %v929 = vld [vmem:[%s928] sm:$0xff]
  %v930 = vld [vmem:[%s928 + $0x8] sm:$0xff]
  %s931 = scalar_lea.vmem %s11, 2
  %v932 = vld [vmem:[%s931] sm:$0x1]
  %v934 = vlaneseq
  %v935 = vshrl.u32 %v934, 7
  %v936 = vsub.s32 0, %v935
  %v937 = vrot.slane %v932, %v936
  %v940 = vsel %vm716, %v927, 0
  %942 = vmatprep.subr.mxu0 0.0
  %943 = vmatpush1.msra.mxu0 %v929
  %944 = vmatprep.subr.mxu0 0.0
  %945 = vmatpush1.msra.mxu0 %v930
  %946 = vmatprep.subr.mxu0 0.0
  %947 = vmatpush1.msra.mxu0 0.0
  %948 = vmatprep.subr.mxu0 0.0
  %949 = vmatpush1.msra.mxu0 0.0
  %950 = vmatprep.subr.mxu0 0.0
  %951 = vmatpush1.msra.mxu0 0.0
  %952 = vmatprep.subr.mxu0 0.0
  %953 = vmatpush1.msra.mxu0 0.0
  %954 = vmatprep.subr.mxu0 0.0
  %955 = vmatpush1.msra.mxu0 0.0
  %956 = vmatprep.subr.mxu0 0.0
  %957 = vmatpush1.msra.mxu0 0.0
  %958 = vmatprep.subr.mxu0 0.0
  %959 = vmatpush1.msra.mxu0 0.0
  %960 = vmatprep.subr.mxu0 0.0
  %961 = vmatpush1.msra.mxu0 0.0
  %962 = vmatprep.subr.mxu0 0.0
  %963 = vmatpush1.msra.mxu0 0.0
  %964 = vmatprep.subr.mxu0 0.0
  %965 = vmatpush1.msra.mxu0 0.0
  %966 = vmatprep.subr.mxu0 0.0
  %967 = vmatpush1.msra.mxu0 0.0
  %968 = vmatprep.subr.mxu0 0.0
  %969 = vmatpush1.msra.mxu0 0.0
  %970 = vmatprep.subr.mxu0 0.0
  %971 = vmatpush1.msra.mxu0 0.0
  %972 = vmatprep.subr.mxu0 0.0
  %973 = vmatpush1.msra.mxu0 0.0
  %974 = vmatprep.subr.mxu0 0.0
  %975 = vmatpush1.msra.mxu0 0.0
  %976 = vmatprep.subr.mxu0 0.0
  %977 = vmatpush1.msra.mxu0 0.0
  %978 = vmatprep.subr.mxu0 0.0
  %979 = vmatpush1.msra.mxu0 0.0
  %980 = vmatprep.subr.mxu0 0.0
  %981 = vmatpush1.msra.mxu0 0.0
  %982 = vmatprep.subr.mxu0 0.0
  %983 = vmatpush1.msra.mxu0 0.0
  %984 = vmatprep.subr.mxu0 0.0
  %985 = vmatpush1.msra.mxu0 0.0
  %986 = vmatprep.subr.mxu0 0.0
  %987 = vmatpush1.msra.mxu0 0.0
  %988 = vmatprep.subr.mxu0 0.0
  %989 = vmatpush1.msra.mxu0 0.0
  %990 = vmatprep.subr.mxu0 0.0
  %991 = vmatpush1.msra.mxu0 0.0
  %992 = vmatprep.subr.mxu0 0.0
  %993 = vmatpush1.msra.mxu0 0.0
  %994 = vmatprep.subr.mxu0 0.0
  %995 = vmatpush1.msra.mxu0 0.0
  %996 = vmatprep.subr.mxu0 0.0
  %997 = vmatpush1.msra.mxu0 0.0
  %998 = vmatprep.subr.mxu0 0.0
  %999 = vmatpush1.msra.mxu0 0.0
  %1000 = vmatprep.subr.mxu0 0.0
  %1001 = vmatpush1.msra.mxu0 0.0
  %1002 = vmatprep.subr.mxu0 0.0
  %1003 = vmatpush1.msra.mxu0 0.0
  %1004 = vmatprep.subr.mxu0 0.0
  %1005 = vmatpush1.msra.mxu0 0.0
  %1006 = vmatprep.mubr.f32.mxu0 0.0
  %1007 = vmatmul.mubr.f32.gmra.mrb[0].mxu0 %v940
  %v1008 = vpop.f32.mrb[0].mxu0
  %v1009 = vadd.f32 %v937, %v1008
  %v1010 = vpop.f32.mrb[0].mxu0
  %1011 = vdwg.mxu0
  %v1012 = vmax.f32 %v1009, 0.0
  %v1013 = vld [vmem:[%s13] sm:$0x1]
  %v1015 = vlaneseq
  %v1016 = vshrl.u32 %v1015, 7
  %v1017 = vsub.s32 0, %v1016
  %v1018 = vrot.slane %v1013, %v1017
  %v1020 = vld [vmem:[%s12] sm:$0xff]
  %v1021 = vld [vmem:[%s12 + $0x8] sm:$0xff]
  %v1022 = vld [vmem:[%s12 + $0x10] sm:$0xff]
  %v1023 = vld [vmem:[%s12 + $0x18] sm:$0xff]
  %v1024 = vld [vmem:[%s12 + $0x20] sm:$0xff]
  %v1025 = vld [vmem:[%s12 + $0x28] sm:$0xff]
  %v1026 = vld [vmem:[%s12 + $0x30] sm:$0xff]
  %v1027 = vld [vmem:[%s12 + $0x38] sm:$0xff]
  %v1028 = vld [vmem:[%s12 + $0x40] sm:$0xff]
  %v1029 = vld [vmem:[%s12 + $0x48] sm:$0xff]
  %v1030 = vld [vmem:[%s12 + $0x50] sm:$0xff]
  %v1031 = vld [vmem:[%s12 + $0x58] sm:$0xff]
  %v1032 = vld [vmem:[%s12 + $0x60] sm:$0xff]
  %v1033 = vld [vmem:[%s12 + $0x68] sm:$0xff]
  %v1034 = vld [vmem:[%s12 + $0x70] sm:$0xff]
  %v1035 = vld [vmem:[%s12 + $0x78] sm:$0xff]
  %v1036 = vpack.c.bf16 %v1021, %v1020
  %v1037 = vpack.c.bf16 %v1023, %v1022
  %v1038 = vpack.c.bf16 %v1025, %v1024
  %v1039 = vpack.c.bf16 %v1027, %v1026
  %v1040 = vpack.c.bf16 %v1029, %v1028
  %v1041 = vpack.c.bf16 %v1031, %v1030
  %v1042 = vpack.c.bf16 %v1033, %v1032
  %v1043 = vpack.c.bf16 %v1035, %v1034
  %v1044 = vpack.c.bf16 %v662, %v662
  %1045 = vmatprep.subr.bf16.mxu0 0
  %1046 = vmatpush1.bf16.msra.mxu0 %v1036
  %1047 = vmatprep.subr.bf16.mxu0 0
  %1048 = vmatpush1.bf16.msra.mxu0 %v1037
  %1049 = vmatprep.subr.bf16.mxu0 0
  %1050 = vmatpush1.bf16.msra.mxu0 %v1038
  %1051 = vmatprep.subr.bf16.mxu0 0
  %1052 = vmatpush1.bf16.msra.mxu0 %v1039
  %1053 = vmatprep.subr.bf16.mxu0 0
  %1054 = vmatpush1.bf16.msra.mxu0 %v1040
  %1055 = vmatprep.subr.bf16.mxu0 0
  %1056 = vmatpush1.bf16.msra.mxu0 %v1041
  %1057 = vmatprep.subr.bf16.mxu0 0
  %1058 = vmatpush1.bf16.msra.mxu0 %v1042
  %1059 = vmatprep.subr.bf16.mxu0 0
  %1060 = vmatpush1.bf16.msra.mxu0 %v1043
  %1061 = vmatprep.subr.bf16.mxu0 0
  %1062 = vmatpush1.bf16.msra.mxu0 0
  %1063 = vmatprep.subr.bf16.mxu0 0
  %1064 = vmatpush1.bf16.msra.mxu0 0
  %1065 = vmatprep.subr.bf16.mxu0 0
  %1066 = vmatpush1.bf16.msra.mxu0 0
  %1067 = vmatprep.subr.bf16.mxu0 0
  %1068 = vmatpush1.bf16.msra.mxu0 0
  %1069 = vmatprep.subr.bf16.mxu0 0
  %1070 = vmatpush1.bf16.msra.mxu0 0
  %1071 = vmatprep.subr.bf16.mxu0 0
  %1072 = vmatpush1.bf16.msra.mxu0 0
  %1073 = vmatprep.subr.bf16.mxu0 0
  %1074 = vmatpush1.bf16.msra.mxu0 0
  %1075 = vmatprep.subr.bf16.mxu0 0
  %1076 = vmatpush1.bf16.msra.mxu0 0
  %1077 = vmatprep.mubr.bf16.mxu0 0
  %1078 = vmatmul.mubr.bf16.gmra.mrb[0].mxu0 %v1044
  %v1079 = vpop.f32.mrb[0].mxu0
  %v1080 = vadd.f32 0.0, %v1079
  %v1081 = vpop.f32.mrb[0].mxu0
  %v1082 = vpop.f32.mrb[0].mxu0
  %v1083 = vpop.f32.mrb[0].mxu0
  %1084 = vdwg.mxu0
  %v1085 = vadd.f32 %v1018, %v1080
  %v1086 = vld [vmem:[%s12 + $0x80] sm:$0xff]
  %v1087 = vld [vmem:[%s12 + $0x88] sm:$0xff]
  %v1088 = vld [vmem:[%s12 + $0x90] sm:$0xff]
  %v1089 = vld [vmem:[%s12 + $0x98] sm:$0xff]
  %v1090 = vld [vmem:[%s12 + $0xa0] sm:$0xff]
  %v1091 = vld [vmem:[%s12 + $0xa8] sm:$0xff]
  %v1092 = vld [vmem:[%s12 + $0xb0] sm:$0xff]
  %v1093 = vld [vmem:[%s12 + $0xb8] sm:$0xff]
  %v1094 = vld [vmem:[%s12 + $0xc0] sm:$0xff]
  %v1095 = vld [vmem:[%s12 + $0xc8] sm:$0xff]
  %v1096 = vld [vmem:[%s12 + $0xd0] sm:$0xff]
  %v1097 = vld [vmem:[%s12 + $0xd8] sm:$0xff]
  %v1098 = vld [vmem:[%s12 + $0xe0] sm:$0xff]
  %v1099 = vld [vmem:[%s12 + $0xe8] sm:$0xff]
  %v1100 = vld [vmem:[%s12 + $0xf0] sm:$0xff]
  %v1101 = vld [vmem:[%s12 + $0xf8] sm:$0xff]
  %v1102 = vpack.c.bf16 %v1087, %v1086
  %v1103 = vpack.c.bf16 %v1089, %v1088
  %v1104 = vpack.c.bf16 %v1091, %v1090
  %v1105 = vpack.c.bf16 %v1093, %v1092
  %v1106 = vpack.c.bf16 %v1095, %v1094
  %v1107 = vpack.c.bf16 %v1097, %v1096
  %v1108 = vpack.c.bf16 %v1099, %v1098
  %v1109 = vpack.c.bf16 %v1101, %v1100
  %v1110 = vpack.c.bf16 %v677, %v677
  %1111 = vmatprep.subr.bf16.mxu0 0
  %1112 = vmatpush1.bf16.msra.mxu0 %v1102
  %1113 = vmatprep.subr.bf16.mxu0 0
  %1114 = vmatpush1.bf16.msra.mxu0 %v1103
  %1115 = vmatprep.subr.bf16.mxu0 0
  %1116 = vmatpush1.bf16.msra.mxu0 %v1104
  %1117 = vmatprep.subr.bf16.mxu0 0
  %1118 = vmatpush1.bf16.msra.mxu0 %v1105
  %1119 = vmatprep.subr.bf16.mxu0 0
  %1120 = vmatpush1.bf16.msra.mxu0 %v1106
  %1121 = vmatprep.subr.bf16.mxu0 0
  %1122 = vmatpush1.bf16.msra.mxu0 %v1107
  %1123 = vmatprep.subr.bf16.mxu0 0
  %1124 = vmatpush1.bf16.msra.mxu0 %v1108
  %1125 = vmatprep.subr.bf16.mxu0 0
  %1126 = vmatpush1.bf16.msra.mxu0 %v1109
  %1127 = vmatprep.subr.bf16.mxu0 0
  %1128 = vmatpush1.bf16.msra.mxu0 0
  %1129 = vmatprep.subr.bf16.mxu0 0
  %1130 = vmatpush1.bf16.msra.mxu0 0
  %1131 = vmatprep.subr.bf16.mxu0 0
  %1132 = vmatpush1.bf16.msra.mxu0 0
  %1133 = vmatprep.subr.bf16.mxu0 0
  %1134 = vmatpush1.bf16.msra.mxu0 0
  %1135 = vmatprep.subr.bf16.mxu0 0
  %1136 = vmatpush1.bf16.msra.mxu0 0
  %1137 = vmatprep.subr.bf16.mxu0 0
  %1138 = vmatpush1.bf16.msra.mxu0 0
  %1139 = vmatprep.subr.bf16.mxu0 0
  %1140 = vmatpush1.bf16.msra.mxu0 0
  %1141 = vmatprep.subr.bf16.mxu0 0
  %1142 = vmatpush1.bf16.msra.mxu0 0
  %1143 = vmatprep.mubr.bf16.mxu0 0
  %1144 = vmatmul.mubr.bf16.gmra.mrb[0].mxu0 %v1110
  %v1145 = vpop.f32.mrb[0].mxu0
  %v1146 = vadd.f32 0.0, %v1145
  %v1147 = vpop.f32.mrb[0].mxu0
  %v1148 = vpop.f32.mrb[0].mxu0
  %v1149 = vpop.f32.mrb[0].mxu0
  %1150 = vdwg.mxu0
  %v1151 = vadd.f32 %v1085, %v1146
  %v1152 = vld [vmem:[%s12 + $0x100] sm:$0xff]
  %v1153 = vld [vmem:[%s12 + $0x108] sm:$0xff]
  %v1154 = vld [vmem:[%s12 + $0x110] sm:$0xff]
  %v1155 = vld [vmem:[%s12 + $0x118] sm:$0xff]
  %v1156 = vld [vmem:[%s12 + $0x120] sm:$0xff]
  %v1157 = vld [vmem:[%s12 + $0x128] sm:$0xff]
  %v1158 = vld [vmem:[%s12 + $0x130] sm:$0xff]
  %v1159 = vld [vmem:[%s12 + $0x138] sm:$0xff]
  %v1160 = vld [vmem:[%s12 + $0x140] sm:$0xff]
  %v1161 = vld [vmem:[%s12 + $0x148] sm:$0xff]
  %v1162 = vld [vmem:[%s12 + $0x150] sm:$0xff]
  %v1163 = vld [vmem:[%s12 + $0x158] sm:$0xff]
  %v1164 = vld [vmem:[%s12 + $0x160] sm:$0xff]
  %v1165 = vld [vmem:[%s12 + $0x168] sm:$0xff]
  %v1166 = vld [vmem:[%s12 + $0x170] sm:$0xff]
  %v1167 = vld [vmem:[%s12 + $0x178] sm:$0xff]
  %v1168 = vpack.c.bf16 %v1153, %v1152
  %v1169 = vpack.c.bf16 %v1155, %v1154
  %v1170 = vpack.c.bf16 %v1157, %v1156
  %v1171 = vpack.c.bf16 %v1159, %v1158
  %v1172 = vpack.c.bf16 %v1161, %v1160
  %v1173 = vpack.c.bf16 %v1163, %v1162
  %v1174 = vpack.c.bf16 %v1165, %v1164
  %v1175 = vpack.c.bf16 %v1167, %v1166
  %v1176 = vpack.c.bf16 %v339, %v339
  %1177 = vmatprep.subr.bf16.mxu0 0
  %1178 = vmatpush1.bf16.msra.mxu0 %v1168
  %1179 = vmatprep.subr.bf16.mxu0 0
  %1180 = vmatpush1.bf16.msra.mxu0 %v1169
  %1181 = vmatprep.subr.bf16.mxu0 0
  %1182 = vmatpush1.bf16.msra.mxu0 %v1170
  %1183 = vmatprep.subr.bf16.mxu0 0
  %1184 = vmatpush1.bf16.msra.mxu0 %v1171
  %1185 = vmatprep.subr.bf16.mxu0 0
  %1186 = vmatpush1.bf16.msra.mxu0 %v1172
  %1187 = vmatprep.subr.bf16.mxu0 0
  %1188 = vmatpush1.bf16.msra.mxu0 %v1173
  %1189 = vmatprep.subr.bf16.mxu0 0
  %1190 = vmatpush1.bf16.msra.mxu0 %v1174
  %1191 = vmatprep.subr.bf16.mxu0 0
  %1192 = vmatpush1.bf16.msra.mxu0 %v1175
  %1193 = vmatprep.subr.bf16.mxu0 0
  %1194 = vmatpush1.bf16.msra.mxu0 0
  %1195 = vmatprep.subr.bf16.mxu0 0
  %1196 = vmatpush1.bf16.msra.mxu0 0
  %1197 = vmatprep.subr.bf16.mxu0 0
  %1198 = vmatpush1.bf16.msra.mxu0 0
  %1199 = vmatprep.subr.bf16.mxu0 0
  %1200 = vmatpush1.bf16.msra.mxu0 0
  %1201 = vmatprep.subr.bf16.mxu0 0
  %1202 = vmatpush1.bf16.msra.mxu0 0
  %1203 = vmatprep.subr.bf16.mxu0 0
  %1204 = vmatpush1.bf16.msra.mxu0 0
  %1205 = vmatprep.subr.bf16.mxu0 0
  %1206 = vmatpush1.bf16.msra.mxu0 0
  %1207 = vmatprep.subr.bf16.mxu0 0
  %1208 = vmatpush1.bf16.msra.mxu0 0
  %1209 = vmatprep.mubr.bf16.mxu0 0
  %1210 = vmatmul.mubr.bf16.gmra.mrb[0].mxu0 %v1176
  %v1211 = vpop.f32.mrb[0].mxu0
  %v1212 = vadd.f32 0.0, %v1211
  %v1213 = vpop.f32.mrb[0].mxu0
  %v1214 = vpop.f32.mrb[0].mxu0
  %v1215 = vpop.f32.mrb[0].mxu0
  %1216 = vdwg.mxu0
  %v1217 = vadd.f32 %v1151, %v1212
  %v1218 = vld [vmem:[%s12 + $0x180] sm:$0xff]
  %v1219 = vld [vmem:[%s12 + $0x188] sm:$0xff]
  %v1220 = vld [vmem:[%s12 + $0x190] sm:$0xff]
  %v1221 = vld [vmem:[%s12 + $0x198] sm:$0xff]
  %v1222 = vld [vmem:[%s12 + $0x1a0] sm:$0xff]
  %v1223 = vld [vmem:[%s12 + $0x1a8] sm:$0xff]
  %v1224 = vld [vmem:[%s12 + $0x1b0] sm:$0xff]
  %v1225 = vld [vmem:[%s12 + $0x1b8] sm:$0xff]
  %v1226 = vld [vmem:[%s12 + $0x1c0] sm:$0xff]
  %v1227 = vld [vmem:[%s12 + $0x1c8] sm:$0xff]
  %v1228 = vld [vmem:[%s12 + $0x1d0] sm:$0xff]
  %v1229 = vld [vmem:[%s12 + $0x1d8] sm:$0xff]
  %v1230 = vld [vmem:[%s12 + $0x1e0] sm:$0xff]
  %v1231 = vld [vmem:[%s12 + $0x1e8] sm:$0xff]
  %v1232 = vld [vmem:[%s12 + $0x1f0] sm:$0xff]
  %v1233 = vld [vmem:[%s12 + $0x1f8] sm:$0xff]
  %v1234 = vpack.c.bf16 %v1219, %v1218
  %v1235 = vpack.c.bf16 %v1221, %v1220
  %v1236 = vpack.c.bf16 %v1223, %v1222
  %v1237 = vpack.c.bf16 %v1225, %v1224
  %v1238 = vpack.c.bf16 %v1227, %v1226
  %v1239 = vpack.c.bf16 %v1229, %v1228
  %v1240 = vpack.c.bf16 %v1231, %v1230
  %v1241 = vpack.c.bf16 %v1233, %v1232
  %v1242 = vpack.c.bf16 %v597, %v597
  %1243 = vmatprep.subr.bf16.mxu0 0
  %1244 = vmatpush1.bf16.msra.mxu0 %v1234
  %1245 = vmatprep.subr.bf16.mxu0 0
  %1246 = vmatpush1.bf16.msra.mxu0 %v1235
  %1247 = vmatprep.subr.bf16.mxu0 0
  %1248 = vmatpush1.bf16.msra.mxu0 %v1236
  %1249 = vmatprep.subr.bf16.mxu0 0
  %1250 = vmatpush1.bf16.msra.mxu0 %v1237
  %1251 = vmatprep.subr.bf16.mxu0 0
  %1252 = vmatpush1.bf16.msra.mxu0 %v1238
  %1253 = vmatprep.subr.bf16.mxu0 0
  %1254 = vmatpush1.bf16.msra.mxu0 %v1239
  %1255 = vmatprep.subr.bf16.mxu0 0
  %1256 = vmatpush1.bf16.msra.mxu0 %v1240
  %1257 = vmatprep.subr.bf16.mxu0 0
  %1258 = vmatpush1.bf16.msra.mxu0 %v1241
  %1259 = vmatprep.subr.bf16.mxu0 0
  %1260 = vmatpush1.bf16.msra.mxu0 0
  %1261 = vmatprep.subr.bf16.mxu0 0
  %1262 = vmatpush1.bf16.msra.mxu0 0
  %1263 = vmatprep.subr.bf16.mxu0 0
  %1264 = vmatpush1.bf16.msra.mxu0 0
  %1265 = vmatprep.subr.bf16.mxu0 0
  %1266 = vmatpush1.bf16.msra.mxu0 0
  %1267 = vmatprep.subr.bf16.mxu0 0
  %1268 = vmatpush1.bf16.msra.mxu0 0
  %1269 = vmatprep.subr.bf16.mxu0 0
  %1270 = vmatpush1.bf16.msra.mxu0 0
  %1271 = vmatprep.subr.bf16.mxu0 0
  %1272 = vmatpush1.bf16.msra.mxu0 0
  %1273 = vmatprep.subr.bf16.mxu0 0
  %1274 = vmatpush1.bf16.msra.mxu0 0
  %1275 = vmatprep.mubr.bf16.mxu0 0
  %1276 = vmatmul.mubr.bf16.gmra.mrb[0].mxu0 %v1242
  %v1277 = vpop.f32.mrb[0].mxu0
  %v1278 = vadd.f32 0.0, %v1277
  %v1279 = vpop.f32.mrb[0].mxu0
  %v1280 = vpop.f32.mrb[0].mxu0
  %v1281 = vpop.f32.mrb[0].mxu0
  %1282 = vdwg.mxu0
  %v1283 = vadd.f32 %v1217, %v1278
  %v1284 = vld [vmem:[%s12 + $0x200] sm:$0xff]
  %v1285 = vld [vmem:[%s12 + $0x208] sm:$0xff]
  %v1286 = vld [vmem:[%s12 + $0x210] sm:$0xff]
  %v1287 = vld [vmem:[%s12 + $0x218] sm:$0xff]
  %v1288 = vld [vmem:[%s12 + $0x220] sm:$0xff]
  %v1289 = vld [vmem:[%s12 + $0x228] sm:$0xff]
  %v1290 = vld [vmem:[%s12 + $0x230] sm:$0xff]
  %v1291 = vld [vmem:[%s12 + $0x238] sm:$0xff]
  %v1292 = vld [vmem:[%s12 + $0x240] sm:$0xff]
  %v1293 = vld [vmem:[%s12 + $0x248] sm:$0xff]
  %v1294 = vld [vmem:[%s12 + $0x250] sm:$0xff]
  %v1295 = vld [vmem:[%s12 + $0x258] sm:$0xff]
  %v1296 = vld [vmem:[%s12 + $0x260] sm:$0xff]
  %v1297 = vld [vmem:[%s12 + $0x268] sm:$0xff]
  %v1298 = vld [vmem:[%s12 + $0x270] sm:$0xff]
  %v1299 = vld [vmem:[%s12 + $0x278] sm:$0xff]
  %v1300 = vpack.c.bf16 %v1285, %v1284
  %v1301 = vpack.c.bf16 %v1287, %v1286
  %v1302 = vpack.c.bf16 %v1289, %v1288
  %v1303 = vpack.c.bf16 %v1291, %v1290
  %v1304 = vpack.c.bf16 %v1293, %v1292
  %v1305 = vpack.c.bf16 %v1295, %v1294
  %v1306 = vpack.c.bf16 %v1297, %v1296
  %v1307 = vpack.c.bf16 %v1299, %v1298
  %v1308 = vpack.c.bf16 %v678, %v678
  %1309 = vmatprep.subr.bf16.mxu0 0
  %1310 = vmatpush1.bf16.msra.mxu0 %v1300
  %1311 = vmatprep.subr.bf16.mxu0 0
  %1312 = vmatpush1.bf16.msra.mxu0 %v1301
  %1313 = vmatprep.subr.bf16.mxu0 0
  %1314 = vmatpush1.bf16.msra.mxu0 %v1302
  %1315 = vmatprep.subr.bf16.mxu0 0
  %1316 = vmatpush1.bf16.msra.mxu0 %v1303
  %1317 = vmatprep.subr.bf16.mxu0 0
  %1318 = vmatpush1.bf16.msra.mxu0 %v1304
  %1319 = vmatprep.subr.bf16.mxu0 0
  %1320 = vmatpush1.bf16.msra.mxu0 %v1305
  %1321 = vmatprep.subr.bf16.mxu0 0
  %1322 = vmatpush1.bf16.msra.mxu0 %v1306
  %1323 = vmatprep.subr.bf16.mxu0 0
  %1324 = vmatpush1.bf16.msra.mxu0 %v1307
  %1325 = vmatprep.subr.bf16.mxu0 0
  %1326 = vmatpush1.bf16.msra.mxu0 0
  %1327 = vmatprep.subr.bf16.mxu0 0
  %1328 = vmatpush1.bf16.msra.mxu0 0
  %1329 = vmatprep.subr.bf16.mxu0 0
  %1330 = vmatpush1.bf16.msra.mxu0 0
  %1331 = vmatprep.subr.bf16.mxu0 0
  %1332 = vmatpush1.bf16.msra.mxu0 0
  %1333 = vmatprep.subr.bf16.mxu0 0
  %1334 = vmatpush1.bf16.msra.mxu0 0
  %1335 = vmatprep.subr.bf16.mxu0 0
  %1336 = vmatpush1.bf16.msra.mxu0 0
  %1337 = vmatprep.subr.bf16.mxu0 0
  %1338 = vmatpush1.bf16.msra.mxu0 0
  %1339 = vmatprep.subr.bf16.mxu0 0
  %1340 = vmatpush1.bf16.msra.mxu0 0
  %1341 = vmatprep.mubr.bf16.mxu0 0
  %1342 = vmatmul.mubr.bf16.gmra.mrb[0].mxu0 %v1308
  %v1343 = vpop.f32.mrb[0].mxu0
  %v1344 = vadd.f32 0.0, %v1343
  %v1345 = vpop.f32.mrb[0].mxu0
  %v1346 = vpop.f32.mrb[0].mxu0
  %v1347 = vpop.f32.mrb[0].mxu0
  %1348 = vdwg.mxu0
  %v1349 = vadd.f32 %v1283, %v1344
  %v1350 = vld [vmem:[%s12 + $0x280] sm:$0xff]
  %v1351 = vld [vmem:[%s12 + $0x288] sm:$0xff]
  %v1352 = vld [vmem:[%s12 + $0x290] sm:$0xff]
  %v1353 = vld [vmem:[%s12 + $0x298] sm:$0xff]
  %v1354 = vld [vmem:[%s12 + $0x2a0] sm:$0xff]
  %v1355 = vld [vmem:[%s12 + $0x2a8] sm:$0xff]
  %v1356 = vld [vmem:[%s12 + $0x2b0] sm:$0xff]
  %v1357 = vld [vmem:[%s12 + $0x2b8] sm:$0xff]
  %v1358 = vld [vmem:[%s12 + $0x2c0] sm:$0xff]
  %v1359 = vld [vmem:[%s12 + $0x2c8] sm:$0xff]
  %v1360 = vld [vmem:[%s12 + $0x2d0] sm:$0xff]
  %v1361 = vld [vmem:[%s12 + $0x2d8] sm:$0xff]
  %v1362 = vld [vmem:[%s12 + $0x2e0] sm:$0xff]
  %v1363 = vld [vmem:[%s12 + $0x2e8] sm:$0xff]
  %v1364 = vld [vmem:[%s12 + $0x2f0] sm:$0xff]
  %v1365 = vld [vmem:[%s12 + $0x2f8] sm:$0xff]
  %v1366 = vpack.c.bf16 %v1351, %v1350
  %v1367 = vpack.c.bf16 %v1353, %v1352
  %v1368 = vpack.c.bf16 %v1355, %v1354
  %v1369 = vpack.c.bf16 %v1357, %v1356
  %v1370 = vpack.c.bf16 %v1359, %v1358
  %v1371 = vpack.c.bf16 %v1361, %v1360
  %v1372 = vpack.c.bf16 %v1363, %v1362
  %v1373 = vpack.c.bf16 %v1365, %v1364
  %v1374 = vpack.c.bf16 %v679, %v679
  %1375 = vmatprep.subr.bf16.mxu0 0
  %1376 = vmatpush1.bf16.msra.mxu0 %v1366
  %1377 = vmatprep.subr.bf16.mxu0 0
  %1378 = vmatpush1.bf16.msra.mxu0 %v1367
  %1379 = vmatprep.subr.bf16.mxu0 0
  %1380 = vmatpush1.bf16.msra.mxu0 %v1368
  %1381 = vmatprep.subr.bf16.mxu0 0
  %1382 = vmatpush1.bf16.msra.mxu0 %v1369
  %1383 = vmatprep.subr.bf16.mxu0 0
  %1384 = vmatpush1.bf16.msra.mxu0 %v1370
  %1385 = vmatprep.subr.bf16.mxu0 0
  %1386 = vmatpush1.bf16.msra.mxu0 %v1371
  %1387 = vmatprep.subr.bf16.mxu0 0
  %1388 = vmatpush1.bf16.msra.mxu0 %v1372
  %1389 = vmatprep.subr.bf16.mxu0 0
  %1390 = vmatpush1.bf16.msra.mxu0 %v1373
  %1391 = vmatprep.subr.bf16.mxu0 0
  %1392 = vmatpush1.bf16.msra.mxu0 0
  %1393 = vmatprep.subr.bf16.mxu0 0
  %1394 = vmatpush1.bf16.msra.mxu0 0
  %1395 = vmatprep.subr.bf16.mxu0 0
  %1396 = vmatpush1.bf16.msra.mxu0 0
  %1397 = vmatprep.subr.bf16.mxu0 0
  %1398 = vmatpush1.bf16.msra.mxu0 0
  %1399 = vmatprep.subr.bf16.mxu0 0
  %1400 = vmatpush1.bf16.msra.mxu0 0
  %1401 = vmatprep.subr.bf16.mxu0 0
  %1402 = vmatpush1.bf16.msra.mxu0 0
  %1403 = vmatprep.subr.bf16.mxu0 0
  %1404 = vmatpush1.bf16.msra.mxu0 0
  %1405 = vmatprep.subr.bf16.mxu0 0
  %1406 = vmatpush1.bf16.msra.mxu0 0
  %1407 = vmatprep.mubr.bf16.mxu0 0
  %1408 = vmatmul.mubr.bf16.gmra.mrb[0].mxu0 %v1374
  %v1409 = vpop.f32.mrb[0].mxu0
  %v1410 = vadd.f32 0.0, %v1409
  %v1411 = vpop.f32.mrb[0].mxu0
  %v1412 = vpop.f32.mrb[0].mxu0
  %v1413 = vpop.f32.mrb[0].mxu0
  %1414 = vdwg.mxu0
  %v1415 = vadd.f32 %v1349, %v1410
  %v1416 = vld [vmem:[%s12 + $0x300] sm:$0xff]
  %v1417 = vld [vmem:[%s12 + $0x308] sm:$0xff]
  %v1418 = vld [vmem:[%s12 + $0x310] sm:$0xff]
  %v1419 = vld [vmem:[%s12 + $0x318] sm:$0xff]
  %v1420 = vld [vmem:[%s12 + $0x320] sm:$0xff]
  %v1421 = vld [vmem:[%s12 + $0x328] sm:$0xff]
  %v1422 = vld [vmem:[%s12 + $0x330] sm:$0xff]
  %v1423 = vld [vmem:[%s12 + $0x338] sm:$0xff]
  %v1424 = vld [vmem:[%s12 + $0x340] sm:$0xff]
  %v1425 = vld [vmem:[%s12 + $0x348] sm:$0xff]
  %v1426 = vld [vmem:[%s12 + $0x350] sm:$0xff]
  %v1427 = vld [vmem:[%s12 + $0x358] sm:$0xff]
  %v1428 = vld [vmem:[%s12 + $0x360] sm:$0xff]
  %v1429 = vld [vmem:[%s12 + $0x368] sm:$0xff]
  %v1430 = vld [vmem:[%s12 + $0x370] sm:$0xff]
  %v1431 = vld [vmem:[%s12 + $0x378] sm:$0xff]
  %v1432 = vpack.c.bf16 %v1417, %v1416
  %v1433 = vpack.c.bf16 %v1419, %v1418
  %v1434 = vpack.c.bf16 %v1421, %v1420
  %v1435 = vpack.c.bf16 %v1423, %v1422
  %v1436 = vpack.c.bf16 %v1425, %v1424
  %v1437 = vpack.c.bf16 %v1427, %v1426
  %v1438 = vpack.c.bf16 %v1429, %v1428
  %v1439 = vpack.c.bf16 %v1431, %v1430
  %v1440 = vpack.c.bf16 %v680, %v680
  %1441 = vmatprep.subr.bf16.mxu0 0
  %1442 = vmatpush1.bf16.msra.mxu0 %v1432
  %1443 = vmatprep.subr.bf16.mxu0 0
  %1444 = vmatpush1.bf16.msra.mxu0 %v1433
  %1445 = vmatprep.subr.bf16.mxu0 0
  %1446 = vmatpush1.bf16.msra.mxu0 %v1434
  %1447 = vmatprep.subr.bf16.mxu0 0
  %1448 = vmatpush1.bf16.msra.mxu0 %v1435
  %1449 = vmatprep.subr.bf16.mxu0 0
  %1450 = vmatpush1.bf16.msra.mxu0 %v1436
  %1451 = vmatprep.subr.bf16.mxu0 0
  %1452 = vmatpush1.bf16.msra.mxu0 %v1437
  %1453 = vmatprep.subr.bf16.mxu0 0
  %1454 = vmatpush1.bf16.msra.mxu0 %v1438
  %1455 = vmatprep.subr.bf16.mxu0 0
  %1456 = vmatpush1.bf16.msra.mxu0 %v1439
  %1457 = vmatprep.subr.bf16.mxu0 0
  %1458 = vmatpush1.bf16.msra.mxu0 0
  %1459 = vmatprep.subr.bf16.mxu0 0
  %1460 = vmatpush1.bf16.msra.mxu0 0
  %1461 = vmatprep.subr.bf16.mxu0 0
  %1462 = vmatpush1.bf16.msra.mxu0 0
  %1463 = vmatprep.subr.bf16.mxu0 0
  %1464 = vmatpush1.bf16.msra.mxu0 0
  %1465 = vmatprep.subr.bf16.mxu0 0
  %1466 = vmatpush1.bf16.msra.mxu0 0
  %1467 = vmatprep.subr.bf16.mxu0 0
  %1468 = vmatpush1.bf16.msra.mxu0 0
  %1469 = vmatprep.subr.bf16.mxu0 0
  %1470 = vmatpush1.bf16.msra.mxu0 0
  %1471 = vmatprep.subr.bf16.mxu0 0
  %1472 = vmatpush1.bf16.msra.mxu0 0
  %1473 = vmatprep.mubr.bf16.mxu0 0
  %1474 = vmatmul.mubr.bf16.gmra.mrb[0].mxu0 %v1440
  %v1475 = vpop.f32.mrb[0].mxu0
  %v1476 = vadd.f32 0.0, %v1475
  %v1477 = vpop.f32.mrb[0].mxu0
  %v1478 = vpop.f32.mrb[0].mxu0
  %v1479 = vpop.f32.mrb[0].mxu0
  %1480 = vdwg.mxu0
  %v1481 = vadd.f32 %v1415, %v1476
  %v1482 = vld [vmem:[%s12 + $0x380] sm:$0xff]
  %v1483 = vld [vmem:[%s12 + $0x388] sm:$0xff]
  %v1484 = vld [vmem:[%s12 + $0x390] sm:$0xff]
  %v1485 = vld [vmem:[%s12 + $0x398] sm:$0xff]
  %v1486 = vld [vmem:[%s12 + $0x3a0] sm:$0xff]
  %v1487 = vld [vmem:[%s12 + $0x3a8] sm:$0xff]
  %v1488 = vld [vmem:[%s12 + $0x3b0] sm:$0xff]
  %v1489 = vld [vmem:[%s12 + $0x3b8] sm:$0xff]
  %v1490 = vld [vmem:[%s12 + $0x3c0] sm:$0xff]
  %v1491 = vld [vmem:[%s12 + $0x3c8] sm:$0xff]
  %v1492 = vld [vmem:[%s12 + $0x3d0] sm:$0xff]
  %v1493 = vld [vmem:[%s12 + $0x3d8] sm:$0xff]
  %v1494 = vld [vmem:[%s12 + $0x3e0] sm:$0xff]
  %v1495 = vld [vmem:[%s12 + $0x3e8] sm:$0xff]
  %v1496 = vld [vmem:[%s12 + $0x3f0] sm:$0xff]
  %v1497 = vld [vmem:[%s12 + $0x3f8] sm:$0xff]
  %v1498 = vpack.c.bf16 %v1483, %v1482
  %v1499 = vpack.c.bf16 %v1485, %v1484
  %v1500 = vpack.c.bf16 %v1487, %v1486
  %v1501 = vpack.c.bf16 %v1489, %v1488
  %v1502 = vpack.c.bf16 %v1491, %v1490
  %v1503 = vpack.c.bf16 %v1493, %v1492
  %v1504 = vpack.c.bf16 %v1495, %v1494
  %v1505 = vpack.c.bf16 %v1497, %v1496
  %v1506 = vpack.c.bf16 %v681, %v681
  %1507 = vmatprep.subr.bf16.mxu0 0
  %1508 = vmatpush1.bf16.msra.mxu0 %v1498
  %1509 = vmatprep.subr.bf16.mxu0 0
  %1510 = vmatpush1.bf16.msra.mxu0 %v1499
  %1511 = vmatprep.subr.bf16.mxu0 0
  %1512 = vmatpush1.bf16.msra.mxu0 %v1500
  %1513 = vmatprep.subr.bf16.mxu0 0
  %1514 = vmatpush1.bf16.msra.mxu0 %v1501
  %1515 = vmatprep.subr.bf16.mxu0 0
  %1516 = vmatpush1.bf16.msra.mxu0 %v1502
  %1517 = vmatprep.subr.bf16.mxu0 0
  %1518 = vmatpush1.bf16.msra.mxu0 %v1503
  %1519 = vmatprep.subr.bf16.mxu0 0
  %1520 = vmatpush1.bf16.msra.mxu0 %v1504
  %1521 = vmatprep.subr.bf16.mxu0 0
  %1522 = vmatpush1.bf16.msra.mxu0 %v1505
  %1523 = vmatprep.subr.bf16.mxu0 0
  %1524 = vmatpush1.bf16.msra.mxu0 0
  %1525 = vmatprep.subr.bf16.mxu0 0
  %1526 = vmatpush1.bf16.msra.mxu0 0
  %1527 = vmatprep.subr.bf16.mxu0 0
  %1528 = vmatpush1.bf16.msra.mxu0 0
  %1529 = vmatprep.subr.bf16.mxu0 0
  %1530 = vmatpush1.bf16.msra.mxu0 0
  %1531 = vmatprep.subr.bf16.mxu0 0
  %1532 = vmatpush1.bf16.msra.mxu0 0
  %1533 = vmatprep.subr.bf16.mxu0 0
  %1534 = vmatpush1.bf16.msra.mxu0 0
  %1535 = vmatprep.subr.bf16.mxu0 0
  %1536 = vmatpush1.bf16.msra.mxu0 0
  %1537 = vmatprep.subr.bf16.mxu0 0
  %1538 = vmatpush1.bf16.msra.mxu0 0
  %1539 = vmatprep.mubr.bf16.mxu0 0
  %1540 = vmatmul.mubr.bf16.gmra.mrb[0].mxu0 %v1506
  %v1541 = vpop.f32.mrb[0].mxu0
  %v1542 = vadd.f32 0.0, %v1541
  %v1543 = vpop.f32.mrb[0].mxu0
  %v1544 = vpop.f32.mrb[0].mxu0
  %v1545 = vpop.f32.mrb[0].mxu0
  %1546 = vdwg.mxu0
  %v1547 = vadd.f32 %v1481, %v1542
  %v1548 = vld [vmem:[%s12 + $0x400] sm:$0xff]
  %v1549 = vld [vmem:[%s12 + $0x408] sm:$0xff]
  %v1550 = vld [vmem:[%s12 + $0x410] sm:$0xff]
  %v1551 = vld [vmem:[%s12 + $0x418] sm:$0xff]
  %v1552 = vld [vmem:[%s12 + $0x420] sm:$0xff]
  %v1553 = vld [vmem:[%s12 + $0x428] sm:$0xff]
  %v1554 = vld [vmem:[%s12 + $0x430] sm:$0xff]
  %v1555 = vld [vmem:[%s12 + $0x438] sm:$0xff]
  %v1556 = vld [vmem:[%s12 + $0x440] sm:$0xff]
  %v1557 = vld [vmem:[%s12 + $0x448] sm:$0xff]
  %v1558 = vld [vmem:[%s12 + $0x450] sm:$0xff]
  %v1559 = vld [vmem:[%s12 + $0x458] sm:$0xff]
  %v1560 = vld [vmem:[%s12 + $0x460] sm:$0xff]
  %v1561 = vld [vmem:[%s12 + $0x468] sm:$0xff]
  %v1562 = vld [vmem:[%s12 + $0x470] sm:$0xff]
  %v1563 = vld [vmem:[%s12 + $0x478] sm:$0xff]
  %v1564 = vpack.c.bf16 %v1549, %v1548
  %v1565 = vpack.c.bf16 %v1551, %v1550
  %v1566 = vpack.c.bf16 %v1553, %v1552
  %v1567 = vpack.c.bf16 %v1555, %v1554
  %v1568 = vpack.c.bf16 %v1557, %v1556
  %v1569 = vpack.c.bf16 %v1559, %v1558
  %v1570 = vpack.c.bf16 %v1561, %v1560
  %v1571 = vpack.c.bf16 %v1563, %v1562
  %v1572 = vpack.c.bf16 %v682, %v682
  %1573 = vmatprep.subr.bf16.mxu0 0
  %1574 = vmatpush1.bf16.msra.mxu0 %v1564
  %1575 = vmatprep.subr.bf16.mxu0 0
  %1576 = vmatpush1.bf16.msra.mxu0 %v1565
  %1577 = vmatprep.subr.bf16.mxu0 0
  %1578 = vmatpush1.bf16.msra.mxu0 %v1566
  %1579 = vmatprep.subr.bf16.mxu0 0
  %1580 = vmatpush1.bf16.msra.mxu0 %v1567
  %1581 = vmatprep.subr.bf16.mxu0 0
  %1582 = vmatpush1.bf16.msra.mxu0 %v1568
  %1583 = vmatprep.subr.bf16.mxu0 0
  %1584 = vmatpush1.bf16.msra.mxu0 %v1569
  %1585 = vmatprep.subr.bf16.mxu0 0
  %1586 = vmatpush1.bf16.msra.mxu0 %v1570
  %1587 = vmatprep.subr.bf16.mxu0 0
  %1588 = vmatpush1.bf16.msra.mxu0 %v1571
  %1589 = vmatprep.subr.bf16.mxu0 0
  %1590 = vmatpush1.bf16.msra.mxu0 0
  %1591 = vmatprep.subr.bf16.mxu0 0
  %1592 = vmatpush1.bf16.msra.mxu0 0
  %1593 = vmatprep.subr.bf16.mxu0 0
  %1594 = vmatpush1.bf16.msra.mxu0 0
  %1595 = vmatprep.subr.bf16.mxu0 0
  %1596 = vmatpush1.bf16.msra.mxu0 0
  %1597 = vmatprep.subr.bf16.mxu0 0
  %1598 = vmatpush1.bf16.msra.mxu0 0
  %1599 = vmatprep.subr.bf16.mxu0 0
  %1600 = vmatpush1.bf16.msra.mxu0 0
  %1601 = vmatprep.subr.bf16.mxu0 0
  %1602 = vmatpush1.bf16.msra.mxu0 0
  %1603 = vmatprep.subr.bf16.mxu0 0
  %1604 = vmatpush1.bf16.msra.mxu0 0
  %1605 = vmatprep.mubr.bf16.mxu0 0
  %1606 = vmatmul.mubr.bf16.gmra.mrb[0].mxu0 %v1572
  %v1607 = vpop.f32.mrb[0].mxu0
  %v1608 = vadd.f32 0.0, %v1607
  %v1609 = vpop.f32.mrb[0].mxu0
  %v1610 = vpop.f32.mrb[0].mxu0
  %v1611 = vpop.f32.mrb[0].mxu0
  %1612 = vdwg.mxu0
  %v1613 = vadd.f32 %v1547, %v1608
  %v1614 = vld [vmem:[%s12 + $0x480] sm:$0xff]
  %v1615 = vld [vmem:[%s12 + $0x488] sm:$0xff]
  %v1616 = vld [vmem:[%s12 + $0x490] sm:$0xff]
  %v1617 = vld [vmem:[%s12 + $0x498] sm:$0xff]
  %v1618 = vld [vmem:[%s12 + $0x4a0] sm:$0xff]
  %v1619 = vld [vmem:[%s12 + $0x4a8] sm:$0xff]
  %v1620 = vld [vmem:[%s12 + $0x4b0] sm:$0xff]
  %v1621 = vld [vmem:[%s12 + $0x4b8] sm:$0xff]
  %v1622 = vld [vmem:[%s12 + $0x4c0] sm:$0xff]
  %v1623 = vld [vmem:[%s12 + $0x4c8] sm:$0xff]
  %v1624 = vld [vmem:[%s12 + $0x4d0] sm:$0xff]
  %v1625 = vld [vmem:[%s12 + $0x4d8] sm:$0xff]
  %v1626 = vld [vmem:[%s12 + $0x4e0] sm:$0xff]
  %v1627 = vld [vmem:[%s12 + $0x4e8] sm:$0xff]
  %v1628 = vld [vmem:[%s12 + $0x4f0] sm:$0xff]
  %v1629 = vld [vmem:[%s12 + $0x4f8] sm:$0xff]
  %v1630 = vpack.c.bf16 %v1615, %v1614
  %v1631 = vpack.c.bf16 %v1617, %v1616
  %v1632 = vpack.c.bf16 %v1619, %v1618
  %v1633 = vpack.c.bf16 %v1621, %v1620
  %v1634 = vpack.c.bf16 %v1623, %v1622
  %v1635 = vpack.c.bf16 %v1625, %v1624
  %v1636 = vpack.c.bf16 %v1627, %v1626
  %v1637 = vpack.c.bf16 %v1629, %v1628
  %v1638 = vpack.c.bf16 %v683, %v683
  %1639 = vmatprep.subr.bf16.mxu0 0
  %1640 = vmatpush1.bf16.msra.mxu0 %v1630
  %1641 = vmatprep.subr.bf16.mxu0 0
  %1642 = vmatpush1.bf16.msra.mxu0 %v1631
  %1643 = vmatprep.subr.bf16.mxu0 0
  %1644 = vmatpush1.bf16.msra.mxu0 %v1632
  %1645 = vmatprep.subr.bf16.mxu0 0
  %1646 = vmatpush1.bf16.msra.mxu0 %v1633
  %1647 = vmatprep.subr.bf16.mxu0 0
  %1648 = vmatpush1.bf16.msra.mxu0 %v1634
  %1649 = vmatprep.subr.bf16.mxu0 0
  %1650 = vmatpush1.bf16.msra.mxu0 %v1635
  %1651 = vmatprep.subr.bf16.mxu0 0
  %1652 = vmatpush1.bf16.msra.mxu0 %v1636
  %1653 = vmatprep.subr.bf16.mxu0 0
  %1654 = vmatpush1.bf16.msra.mxu0 %v1637
  %1655 = vmatprep.subr.bf16.mxu0 0
  %1656 = vmatpush1.bf16.msra.mxu0 0
  %1657 = vmatprep.subr.bf16.mxu0 0
  %1658 = vmatpush1.bf16.msra.mxu0 0
  %1659 = vmatprep.subr.bf16.mxu0 0
  %1660 = vmatpush1.bf16.msra.mxu0 0
  %1661 = vmatprep.subr.bf16.mxu0 0
  %1662 = vmatpush1.bf16.msra.mxu0 0
  %1663 = vmatprep.subr.bf16.mxu0 0
  %1664 = vmatpush1.bf16.msra.mxu0 0
  %1665 = vmatprep.subr.bf16.mxu0 0
  %1666 = vmatpush1.bf16.msra.mxu0 0
  %1667 = vmatprep.subr.bf16.mxu0 0
  %1668 = vmatpush1.bf16.msra.mxu0 0
  %1669 = vmatprep.subr.bf16.mxu0 0
  %1670 = vmatpush1.bf16.msra.mxu0 0
  %1671 = vmatprep.mubr.bf16.mxu0 0
  %1672 = vmatmul.mubr.bf16.gmra.mrb[0].mxu0 %v1638
  %v1673 = vpop.f32.mrb[0].mxu0
  %v1674 = vadd.f32 0.0, %v1673
  %v1675 = vpop.f32.mrb[0].mxu0
  %v1676 = vpop.f32.mrb[0].mxu0
  %v1677 = vpop.f32.mrb[0].mxu0
  %1678 = vdwg.mxu0
  %v1679 = vadd.f32 %v1613, %v1674
  %v1680 = vld [vmem:[%s12 + $0x500] sm:$0xff]
  %v1681 = vld [vmem:[%s12 + $0x508] sm:$0xff]
  %v1682 = vpack.c.bf16 %v1681, %v1680
  %v1683 = vpack.c.bf16 %v790, %v790
  %v1685 = vsel %vm716, %v1683, 0
  %1687 = vmatprep.subr.bf16.mxu0 0
  %1688 = vmatpush1.bf16.msra.mxu0 %v1682
  %1689 = vmatprep.subr.bf16.mxu0 0
  %1690 = vmatpush1.bf16.msra.mxu0 0
  %1691 = vmatprep.subr.bf16.mxu0 0
  %1692 = vmatpush1.bf16.msra.mxu0 0
  %1693 = vmatprep.subr.bf16.mxu0 0
  %1694 = vmatpush1.bf16.msra.mxu0 0
  %1695 = vmatprep.subr.bf16.mxu0 0
  %1696 = vmatpush1.bf16.msra.mxu0 0
  %1697 = vmatprep.subr.bf16.mxu0 0
  %1698 = vmatpush1.bf16.msra.mxu0 0
  %1699 = vmatprep.subr.bf16.mxu0 0
  %1700 = vmatpush1.bf16.msra.mxu0 0
  %1701 = vmatprep.subr.bf16.mxu0 0
  %1702 = vmatpush1.bf16.msra.mxu0 0
  %1703 = vmatprep.subr.bf16.mxu0 0
  %1704 = vmatpush1.bf16.msra.mxu0 0
  %1705 = vmatprep.subr.bf16.mxu0 0
  %1706 = vmatpush1.bf16.msra.mxu0 0
  %1707 = vmatprep.subr.bf16.mxu0 0
  %1708 = vmatpush1.bf16.msra.mxu0 0
  %1709 = vmatprep.subr.bf16.mxu0 0
  %1710 = vmatpush1.bf16.msra.mxu0 0
  %1711 = vmatprep.subr.bf16.mxu0 0
  %1712 = vmatpush1.bf16.msra.mxu0 0
  %1713 = vmatprep.subr.bf16.mxu0 0
  %1714 = vmatpush1.bf16.msra.mxu0 0
  %1715 = vmatprep.subr.bf16.mxu0 0
  %1716 = vmatpush1.bf16.msra.mxu0 0
  %1717 = vmatprep.subr.bf16.mxu0 0
  %1718 = vmatpush1.bf16.msra.mxu0 0
  %1719 = vmatprep.mubr.bf16.mxu0 0
  %1720 = vmatmul.mubr.bf16.gmra.mrb[0].mxu0 %v1685
  %v1721 = vpop.f32.mrb[0].mxu0
  %v1722 = vadd.f32 0.0, %v1721
  %v1723 = vpop.f32.mrb[0].mxu0
  %v1724 = vpop.f32.mrb[0].mxu0
  %v1725 = vpop.f32.mrb[0].mxu0
  %1726 = vdwg.mxu0
  %v1727 = vadd.f32 %v1679, %v1722
  %v1728 = vld [vmem:[%s12 + $0x510] sm:$0xff]
  %v1729 = vld [vmem:[%s12 + $0x518] sm:$0xff]
  %v1730 = vpack.c.bf16 %v1729, %v1728
  %v1731 = vpack.c.bf16 %v901, %v901
  %v1733 = vsel %vm716, %v1731, 0
  %1735 = vmatprep.subr.bf16.mxu0 0
  %1736 = vmatpush1.bf16.msra.mxu0 %v1730
  %1737 = vmatprep.subr.bf16.mxu0 0
  %1738 = vmatpush1.bf16.msra.mxu0 0
  %1739 = vmatprep.subr.bf16.mxu0 0
  %1740 = vmatpush1.bf16.msra.mxu0 0
  %1741 = vmatprep.subr.bf16.mxu0 0
  %1742 = vmatpush1.bf16.msra.mxu0 0
  %1743 = vmatprep.subr.bf16.mxu0 0
  %1744 = vmatpush1.bf16.msra.mxu0 0
  %1745 = vmatprep.subr.bf16.mxu0 0
  %1746 = vmatpush1.bf16.msra.mxu0 0
  %1747 = vmatprep.subr.bf16.mxu0 0
  %1748 = vmatpush1.bf16.msra.mxu0 0
  %1749 = vmatprep.subr.bf16.mxu0 0
  %1750 = vmatpush1.bf16.msra.mxu0 0
  %1751 = vmatprep.subr.bf16.mxu0 0
  %1752 = vmatpush1.bf16.msra.mxu0 0
  %1753 = vmatprep.subr.bf16.mxu0 0
  %1754 = vmatpush1.bf16.msra.mxu0 0
  %1755 = vmatprep.subr.bf16.mxu0 0
  %1756 = vmatpush1.bf16.msra.mxu0 0
  %1757 = vmatprep.subr.bf16.mxu0 0
  %1758 = vmatpush1.bf16.msra.mxu0 0
  %1759 = vmatprep.subr.bf16.mxu0 0
  %1760 = vmatpush1.bf16.msra.mxu0 0
  %1761 = vmatprep.subr.bf16.mxu0 0
  %1762 = vmatpush1.bf16.msra.mxu0 0
  %1763 = vmatprep.subr.bf16.mxu0 0
  %1764 = vmatpush1.bf16.msra.mxu0 0
  %1765 = vmatprep.subr.bf16.mxu0 0
  %1766 = vmatpush1.bf16.msra.mxu0 0
  %1767 = vmatprep.mubr.bf16.mxu0 0
  %1768 = vmatmul.mubr.bf16.gmra.mrb[0].mxu0 %v1733
  %v1769 = vpop.f32.mrb[0].mxu0
  %v1770 = vadd.f32 0.0, %v1769
  %v1771 = vpop.f32.mrb[0].mxu0
  %v1772 = vpop.f32.mrb[0].mxu0
  %v1773 = vpop.f32.mrb[0].mxu0
  %1774 = vdwg.mxu0
  %v1775 = vadd.f32 %v1727, %v1770
  %v1776 = vld [vmem:[%s12 + $0x520] sm:$0xff]
  %v1777 = vld [vmem:[%s12 + $0x528] sm:$0xff]
  %v1778 = vpack.c.bf16 %v1777, %v1776
  %v1779 = vpack.c.bf16 %v1012, %v1012
  %v1781 = vsel %vm716, %v1779, 0
  %1783 = vmatprep.subr.bf16.mxu0 0
  %1784 = vmatpush1.bf16.msra.mxu0 %v1778
  %1785 = vmatprep.subr.bf16.mxu0 0
  %1786 = vmatpush1.bf16.msra.mxu0 0
  %1787 = vmatprep.subr.bf16.mxu0 0
  %1788 = vmatpush1.bf16.msra.mxu0 0
  %1789 = vmatprep.subr.bf16.mxu0 0
  %1790 = vmatpush1.bf16.msra.mxu0 0
  %1791 = vmatprep.subr.bf16.mxu0 0
  %1792 = vmatpush1.bf16.msra.mxu0 0
  %1793 = vmatprep.subr.bf16.mxu0 0
  %1794 = vmatpush1.bf16.msra.mxu0 0
  %1795 = vmatprep.subr.bf16.mxu0 0
  %1796 = vmatpush1.bf16.msra.mxu0 0
  %1797 = vmatprep.subr.bf16.mxu0 0
  %1798 = vmatpush1.bf16.msra.mxu0 0
  %1799 = vmatprep.subr.bf16.mxu0 0
  %1800 = vmatpush1.bf16.msra.mxu0 0
  %1801 = vmatprep.subr.bf16.mxu0 0
  %1802 = vmatpush1.bf16.msra.mxu0 0
  %1803 = vmatprep.subr.bf16.mxu0 0
  %1804 = vmatpush1.bf16.msra.mxu0 0
  %1805 = vmatprep.subr.bf16.mxu0 0
  %1806 = vmatpush1.bf16.msra.mxu0 0
  %1807 = vmatprep.subr.bf16.mxu0 0
  %1808 = vmatpush1.bf16.msra.mxu0 0
  %1809 = vmatprep.subr.bf16.mxu0 0
  %1810 = vmatpush1.bf16.msra.mxu0 0
  %1811 = vmatprep.subr.bf16.mxu0 0
  %1812 = vmatpush1.bf16.msra.mxu0 0
  %1813 = vmatprep.subr.bf16.mxu0 0
  %1814 = vmatpush1.bf16.msra.mxu0 0
  %1815 = vmatprep.mubr.bf16.mxu0 0
  %1816 = vmatmul.mubr.bf16.gmra.mrb[0].mxu0 %v1781
  %v1817 = vpop.f32.mrb[0].mxu0
  %v1818 = vadd.f32 0.0, %v1817
  %v1819 = vpop.f32.mrb[0].mxu0
  %v1820 = vpop.f32.mrb[0].mxu0
  %v1821 = vpop.f32.mrb[0].mxu0
  %1822 = vdwg.mxu0
  %v1823 = vadd.f32 %v1775, %v1818
  %v1824 = vmax.f32 %v1823, 0.0
  %v1825 = vld [vmem:[%s14] sm:$0xff]
  %v1826 = vld [vmem:[%s14 + $0x8] sm:$0xff]
  %v1827 = vld [vmem:[%s14 + $0x10] sm:$0xff]
  %v1828 = vld [vmem:[%s14 + $0x18] sm:$0xff]
  %v1829 = vld [vmem:[%s14 + $0x20] sm:$0xff]
  %v1830 = vld [vmem:[%s14 + $0x28] sm:$0xff]
  %v1831 = vld [vmem:[%s14 + $0x30] sm:$0xff]
  %v1832 = vld [vmem:[%s14 + $0x38] sm:$0xff]
  %v1833 = vld [vmem:[#allocation2] sm:$0x1]
  %v1835 = vlaneseq
  %v1836 = vshrl.u32 %v1835, 7
  %v1837 = vsub.s32 0, %v1836
  %v1838 = vrot.slane %v1833, %v1837
  %vm1840 = vcmask 523264
  %v1842 = vsel %vm1840, %v1824, 0
  %1844 = vmatprep.subr.mxu0 0.0
  %1845 = vmatpush1.msra.mxu0 %v1825
  %1846 = vmatprep.subr.mxu0 0.0
  %1847 = vmatpush1.msra.mxu0 %v1826
  %1848 = vmatprep.subr.mxu0 0.0
  %1849 = vmatpush1.msra.mxu0 %v1827
  %1850 = vmatprep.subr.mxu0 0.0
  %1851 = vmatpush1.msra.mxu0 %v1828
  %1852 = vmatprep.subr.mxu0 0.0
  %1853 = vmatpush1.msra.mxu0 %v1829
  %1854 = vmatprep.subr.mxu0 0.0
  %1855 = vmatpush1.msra.mxu0 %v1830
  %1856 = vmatprep.subr.mxu0 0.0
  %1857 = vmatpush1.msra.mxu0 %v1831
  %1858 = vmatprep.subr.mxu0 0.0
  %1859 = vmatpush1.msra.mxu0 %v1832
  %1860 = vmatprep.subr.mxu0 0.0
  %1861 = vmatpush1.msra.mxu0 0.0
  %1862 = vmatprep.subr.mxu0 0.0
  %1863 = vmatpush1.msra.mxu0 0.0
  %1864 = vmatprep.subr.mxu0 0.0
  %1865 = vmatpush1.msra.mxu0 0.0
  %1866 = vmatprep.subr.mxu0 0.0
  %1867 = vmatpush1.msra.mxu0 0.0
  %1868 = vmatprep.subr.mxu0 0.0
  %1869 = vmatpush1.msra.mxu0 0.0
  %1870 = vmatprep.subr.mxu0 0.0
  %1871 = vmatpush1.msra.mxu0 0.0
  %1872 = vmatprep.subr.mxu0 0.0
  %1873 = vmatpush1.msra.mxu0 0.0
  %1874 = vmatprep.subr.mxu0 0.0
  %1875 = vmatpush1.msra.mxu0 0.0
  %1876 = vmatprep.subr.mxu0 0.0
  %1877 = vmatpush1.msra.mxu0 0.0
  %1878 = vmatprep.subr.mxu0 0.0
  %1879 = vmatpush1.msra.mxu0 0.0
  %1880 = vmatprep.subr.mxu0 0.0
  %1881 = vmatpush1.msra.mxu0 0.0
  %1882 = vmatprep.subr.mxu0 0.0
  %1883 = vmatpush1.msra.mxu0 0.0
  %1884 = vmatprep.subr.mxu0 0.0
  %1885 = vmatpush1.msra.mxu0 0.0
  %1886 = vmatprep.subr.mxu0 0.0
  %1887 = vmatpush1.msra.mxu0 0.0
  %1888 = vmatprep.subr.mxu0 0.0
  %1889 = vmatpush1.msra.mxu0 0.0
  %1890 = vmatprep.subr.mxu0 0.0
  %1891 = vmatpush1.msra.mxu0 0.0
  %1892 = vmatprep.subr.mxu0 0.0
  %1893 = vmatpush1.msra.mxu0 0.0
  %1894 = vmatprep.subr.mxu0 0.0
  %1895 = vmatpush1.msra.mxu0 0.0
  %1896 = vmatprep.subr.mxu0 0.0
  %1897 = vmatpush1.msra.mxu0 0.0
  %1898 = vmatprep.subr.mxu0 0.0
  %1899 = vmatpush1.msra.mxu0 0.0
  %1900 = vmatprep.subr.mxu0 0.0
  %1901 = vmatpush1.msra.mxu0 0.0
  %1902 = vmatprep.subr.mxu0 0.0
  %1903 = vmatpush1.msra.mxu0 0.0
  %1904 = vmatprep.subr.mxu0 0.0
  %1905 = vmatpush1.msra.mxu0 0.0
  %1906 = vmatprep.subr.mxu0 0.0
  %1907 = vmatpush1.msra.mxu0 0.0
  %1908 = vmatprep.mubr.f32.mxu0 0.0
  %1909 = vmatmul.mubr.f32.gmra.mrb[0].mxu0 %v1842
  %v1910 = vpop.f32.mrb[0].mxu0
  %v1911 = vadd.f32 %v1838, %v1910
  %v1912 = vpop.f32.mrb[0].mxu0
  %1913 = vdwg.mxu0
  %1914 = vst.msk [vmem:[%s16] sm:$0x3] %vm251, %v1911
  // Predicated region
  $region66: #{forward.5} parent=0 // pred_check
    _
  $region67: #{forward.5} parent=0 // pred_check_branch
    %1916 = sbr.rel (0) target = $region69
  $region68: #{forward.5} parent=0 // pred_region
    _
  $region69: #{forward.5} parent=0 // pred_fallthru
    _
  // Predicated region
  $region70: #{forward.5} parent=0 // pred_check
    _
  $region71: #{forward.5} parent=0 // pred_check_branch
    %1918 = sbr.rel (0) target = $region73
  $region72: #{forward.5} parent=0 // pred_region
    _
  $region73: #{forward.5} parent=0 // pred_fallthru
    _

</llo_original>
